<compile_context>
chip_gen: v5e
topology: v5e:2x2
jax: 0.10.0
libtpu: 0.0.40
codegen_flags: <defaults>
</compile_context>

<pallas_src>
import numpy as np

import jax
import jax.numpy as jnp
from jax.experimental import pallas as pl
from jax.experimental.pallas import tpu as pltpu


# ----------------------------------------------------------------------------
# Deterministic parameter init (no checkpoint loading)
# ----------------------------------------------------------------------------
def _init_conv(key, cout, cin, k):
    kw_, kb_ = jax.random.split(key)
    fan_in = cin * k * k
    scale = 1.0 / jnp.sqrt(jnp.float32(fan_in))
    w = jax.random.normal(kw_, (cout, cin, k, k), jnp.float32) * scale
    b = jax.random.normal(kb_, (cout,), jnp.float32) * scale
    return w, b


def init_params(seed=0, c_in=4):
    keys = jax.random.split(jax.random.PRNGKey(seed), 4)
    return {
        "enc1": _init_conv(keys[0], 8, c_in, 3),
        "enc2": _init_conv(keys[1], 16, 8, 3),
        "dec1": _init_conv(keys[2], 8, 16, 3),
        "dec2": _init_conv(keys[3], c_in, 8, 3),
    }


# ----------------------------------------------------------------------------
# One-time host-side folding:  (optional nearest-upsample x2) + Conv2d(3x3)
# becomes a dense matrix on the NCHW-flattened per-sample activation:
#   out_flat = in_flat @ M + b_full
# ----------------------------------------------------------------------------
def _fold_layer(w, b, hi, wi, stride, pad, upsample):
    w = np.asarray(w, dtype=np.float32)          # (Co, Ci, kh, kw)
    b = np.asarray(b, dtype=np.float32)          # (Co,)
    co_n, ci_n, kh, kw = w.shape
    f = 2 if upsample else 1
    hc, wc = hi * f, wi * f                      # spatial size the conv sees
    ho = (hc + 2 * pad - kh) // stride + 1
    wo = (wc + 2 * pad - kw) // stride + 1
    m = np.zeros((ci_n * hi * wi, co_n * ho * wo), np.float32)
    ci_idx = np.arange(ci_n)
    co_idx = np.arange(co_n)
    for di in range(kh):
        for dj in range(kw):
            tap = w[:, :, di, dj].T              # (Ci, Co)
            for oh in range(ho):
                ih_c = stride * oh + di - pad
                if ih_c < 0 or ih_c >= hc:
                    continue
                ih = ih_c // f                   # fold nearest-upsample
                for ow in range(wo):
                    iw_c = stride * ow + dj - pad
                    if iw_c < 0 or iw_c >= wc:
                        continue
                    iw = iw_c // f
                    rows = (ci_idx * hi + ih) * wi + iw
                    cols = (co_idx * ho + oh) * wo + ow
                    m[np.ix_(rows, cols)] += tap
    b_full = np.repeat(b, ho * wo)               # NCHW flattening: bias per-channel
    return m, b_full, ho, wo


def fold_params(params, c_in=4, hw=16):
    w1, b1 = params["enc1"]
    w2, b2 = params["enc2"]
    w3, b3 = params["dec1"]
    w4, b4 = params["dec2"]
    m1, bf1, h1, _ = _fold_layer(w1, b1, hw, hw, stride=2, pad=1, upsample=False)  # 16 -> 8
    m2, bf2, h2, _ = _fold_layer(w2, b2, h1, h1, stride=2, pad=1, upsample=False)  # 8  -> 4
    m3, bf3, h3, _ = _fold_layer(w3, b3, h2, h2, stride=1, pad=1, upsample=True)   # 4  -> 8
    m4, bf4, h4, _ = _fold_layer(w4, b4, h3, h3, stride=1, pad=1, upsample=True)   # 8  -> 16
    assert h4 == hw
    # Weights bf16 (halves dominant HBM fetch, avoids 3-pass f32 MXU emulation).
    # Biases stay f32: all elementwise math is f32 (v5e has no bf16 VPU).
    return {
        "m1": jnp.asarray(m1, dtype=jnp.bfloat16), "b1": jnp.asarray(bf1).reshape(1, -1),
        "m2": jnp.asarray(m2, dtype=jnp.bfloat16), "b2": jnp.asarray(bf2).reshape(1, -1),
        "m3": jnp.asarray(m3, dtype=jnp.bfloat16), "b3": jnp.asarray(bf3).reshape(1, -1),
        "m4": jnp.asarray(m4, dtype=jnp.bfloat16), "b4": jnp.asarray(bf4).reshape(1, -1),
    }


# ----------------------------------------------------------------------------
# Fused Pallas kernel: full AE forward for the whole batch in one grid step.
# All intermediate activations stay in VMEM/vregs; weights are fetched once.
# ----------------------------------------------------------------------------
def _ae_fused_kernel(x_ref, m1_ref, b1_ref, m2_ref, b2_ref,
                     m3_ref, b3_ref, m4_ref, b4_ref, o_ref, err_ref):
    # x_ref: (N, D_in) f32; m*: (Dk, Dk+1) bf16; b*: (1, Dk+1) f32
    # o_ref: (N, D_out) f32; err_ref: (N, 1) f32
    x = x_ref[...]                                                  # f32
    h = jnp.dot(x.astype(jnp.bfloat16), m1_ref[...],
                preferred_element_type=jnp.float32) + b1_ref[...]
    h = jnp.maximum(h, 0.0)
    h = jnp.dot(h.astype(jnp.bfloat16), m2_ref[...],
                preferred_element_type=jnp.float32) + b2_ref[...]
    h = jnp.maximum(h, 0.0)
    h = jnp.dot(h.astype(jnp.bfloat16), m3_ref[...],
                preferred_element_type=jnp.float32) + b3_ref[...]
    h = jnp.maximum(h, 0.0)
    h = jnp.dot(h.astype(jnp.bfloat16), m4_ref[...],
                preferred_element_type=jnp.float32) + b4_ref[...]
    o_ref[...] = h
    # Fused per-sample reconstruction error: mean((recon - x)^2) over features.
    err_ref[...] = jnp.mean((h - x) ** 2, axis=-1, keepdims=True)


def _vmem_budget_bytes(dense, n, d_in, d_out):
    w_bytes = sum(int(np.prod(v.shape)) * v.dtype.itemsize for v in dense.values())
    act_bytes = (n * d_in + n * d_out + n) * 4
    # allow for double-buffering + compiler scratch headroom
    return int(2 * (w_bytes + act_bytes)) + (8 << 20)


def _ae_pallas(dense, x_flat):
    n, d_in = x_flat.shape
    d_out = dense["m4"].shape[1]
    assert d_in == d_out  # autoencoder reconstructs its input shape

    def w_spec(a):  # full-array resident block (single grid step -> single fetch)
        return pl.BlockSpec(a.shape, lambda i: (0, 0))

    recon, err = pl.pallas_call(
        _ae_fused_kernel,
        out_shape=(jax.ShapeDtypeStruct((n, d_out), jnp.float32),
                   jax.ShapeDtypeStruct((n, 1), jnp.float32)),
        grid=(1,),
        in_specs=[
            pl.BlockSpec((n, d_in), lambda i: (0, 0)),
            w_spec(dense["m1"]), w_spec(dense["b1"]),
            w_spec(dense["m2"]), w_spec(dense["b2"]),
            w_spec(dense["m3"]), w_spec(dense["b3"]),
            w_spec(dense["m4"]), w_spec(dense["b4"]),
        ],
        out_specs=(pl.BlockSpec((n, d_out), lambda i: (0, 0)),
                   pl.BlockSpec((n, 1), lambda i: (0, 0))),
        compiler_params=pltpu.CompilerParams(
            dimension_semantics=("arbitrary",),   # single step; no TC weight duplication
            vmem_limit_bytes=_vmem_budget_bytes(dense, n, d_in, d_out),
        ),
    )(x_flat, dense["m1"], dense["b1"], dense["m2"], dense["b2"],
      dense["m3"], dense["b3"], dense["m4"], dense["b4"])
    return recon, err


@jax.jit
def _ae_apply(dense, x):
    """x: (N, C, H, W) f32 (NCHW) -> (recon (N,C,H,W) f32, per-sample err (N,))."""
    n, c, hh, ww = x.shape
    x_flat = x.reshape(n, c * hh * ww).astype(jnp.float32)
    recon, err = _ae_pallas(dense, x_flat)
    return recon.reshape(n, c, hh, ww), err[:, 0]


def ae_forward(dense, x):
    return _ae_apply(dense, x)[0]


def recon_error(dense, x):
    # ((recon - x) ** 2).view(len(x), -1).mean(dim=1), fused into the kernel.
    return _ae_apply(dense, x)[1]


# ----------------------------------------------------------------------------
# Plain-JAX reference (self-check only; not on the hot path)
# ----------------------------------------------------------------------------
def _conv_ref(x, w, b, stride, pad):
    y = jax.lax.conv_general_dilated(
        x, w, window_strides=(stride, stride),
        padding=((pad, pad), (pad, pad)),
        dimension_numbers=("NCHW", "OIHW", "NCHW"),
        precision=jax.lax.Precision.HIGHEST)
    return y + b.reshape(1, -1, 1, 1)


def _up2_ref(x):
    return jnp.repeat(jnp.repeat(x, 2, axis=2), 2, axis=3)


def ae_forward_reference(params, x):
    w1, b1 = params["enc1"]
    w2, b2 = params["enc2"]
    w3, b3 = params["dec1"]
    w4, b4 = params["dec2"]
    h = jax.nn.relu(_conv_ref(x, w1, b1, 2, 1))
    z = jax.nn.relu(_conv_ref(h, w2, b2, 2, 1))
    h = jax.nn.relu(_conv_ref(_up2_ref(z), w3, b3, 1, 1))
    return _conv_ref(_up2_ref(h), w4, b4, 1, 1)


if __name__ == "__main__":
    key = jax.random.PRNGKey(0)
    x = jax.random.normal(key, (2, 4, 16, 16), jnp.float32)   # NCHW, like PyTorch

    params = init_params(seed=0, c_in=4)
    dense = fold_params(params, c_in=4, hw=16)                # one-time weight folding

    recon = ae_forward(dense, x)
    err = recon_error(dense, x)
    jax.block_until_ready((recon, err))
    assert recon.shape == x.shape, (recon.shape, x.shape)
    assert recon.dtype == jnp.float32
    assert err.shape == (2,)

    # Self-check against a plain-JAX f32 conv/upsample reference.  Tolerance is
    # loose on purpose (bf16 folded weights with f32 accumulation); a real
    # folding/indexing bug would produce O(1) errors.
    ref = ae_forward_reference(params, x)
    np.testing.assert_allclose(np.asarray(recon), np.asarray(ref), rtol=5e-2, atol=5e-2)

    # Fused error output must match the error computed from the kernel's own recon.
    err_host = np.mean((np.asarray(recon).reshape(2, -1)
                        - np.asarray(x).reshape(2, -1)) ** 2, axis=1)
    np.testing.assert_allclose(np.asarray(err), err_host, rtol=1e-4, atol=1e-6)

    print("KERNEL_OK")
</pallas_src>

<mosaic_0001>
module attributes {stable_mosaic.version = 11 : i64} {
  func.func @_ae_fused_kernel(%arg0: i32, %arg1: memref<2x1024xf32, #tpu.memory_space<vmem>>, %arg2: memref<1024x512xbf16, #tpu.memory_space<vmem>>, %arg3: memref<1x512xf32, #tpu.memory_space<vmem>>, %arg4: memref<512x256xbf16, #tpu.memory_space<vmem>>, %arg5: memref<1x256xf32, #tpu.memory_space<vmem>>, %arg6: memref<256x512xbf16, #tpu.memory_space<vmem>>, %arg7: memref<1x512xf32, #tpu.memory_space<vmem>>, %arg8: memref<512x1024xbf16, #tpu.memory_space<vmem>>, %arg9: memref<1x1024xf32, #tpu.memory_space<vmem>>, %arg10: memref<2x1024xf32, #tpu.memory_space<vmem>>, %arg11: memref<2x1xf32, #tpu.memory_space<vmem>>) attributes {dimension_semantics = [#tpu.dimension_semantics<arbitrary>], iteration_bounds = array<i64: 1>, scalar_prefetch = 0 : i64, scratch_operands = 0 : i64, tpu.core_type = #tpu.core_type<tc>, window_params = [{pipeline_mode = #tpu.pipeline_mode<synchronous>, transform_indices = @transform_0, window_bounds = array<i64: 2, 1024>}, {pipeline_mode = #tpu.pipeline_mode<synchronous>, transform_indices = @transform_1, window_bounds = array<i64: 1024, 512>}, {pipeline_mode = #tpu.pipeline_mode<synchronous>, transform_indices = @transform_2, window_bounds = array<i64: 1, 512>}, {pipeline_mode = #tpu.pipeline_mode<synchronous>, transform_indices = @transform_3, window_bounds = array<i64: 512, 256>}, {pipeline_mode = #tpu.pipeline_mode<synchronous>, transform_indices = @transform_4, window_bounds = array<i64: 1, 256>}, {pipeline_mode = #tpu.pipeline_mode<synchronous>, transform_indices = @transform_5, window_bounds = array<i64: 256, 512>}, {pipeline_mode = #tpu.pipeline_mode<synchronous>, transform_indices = @transform_6, window_bounds = array<i64: 1, 512>}, {pipeline_mode = #tpu.pipeline_mode<synchronous>, transform_indices = @transform_7, window_bounds = array<i64: 512, 1024>}, {pipeline_mode = #tpu.pipeline_mode<synchronous>, transform_indices = @transform_8, window_bounds = array<i64: 1, 1024>}, {pipeline_mode = #tpu.pipeline_mode<synchronous>, transform_indices = @transform_9, window_bounds = array<i64: 2, 1024>}, {pipeline_mode = #tpu.pipeline_mode<synchronous>, transform_indices = @transform_10, window_bounds = array<i64: 2, 1>}]} {
    %c0 = arith.constant 0 : index
    %c0_0 = arith.constant 0 : index
    %0 = vector.load %arg1[%c0, %c0_0] : memref<2x1024xf32, #tpu.memory_space<vmem>>, vector<2x1024xf32>
    %1 = arith.truncf %0 : vector<2x1024xf32> to vector<2x1024xbf16>
    %c0_1 = arith.constant 0 : index
    %c0_2 = arith.constant 0 : index
    %2 = vector.load %arg2[%c0_1, %c0_2] : memref<1024x512xbf16, #tpu.memory_space<vmem>>, vector<1024x512xbf16>
    %cst = arith.constant dense<0.000000e+00> : vector<2x512xf32>
    %3 = tpu.matmul %1, %2, %cst {dimension_numbers = #tpu.dot_dimension_numbers<[1], [0], [0], [1], [0, 0, 1, 1], [], []>} : vector<2x1024xbf16>, vector<1024x512xbf16>, vector<2x512xf32> -> vector<2x512xf32>
    %c0_3 = arith.constant 0 : index
    %c0_4 = arith.constant 0 : index
    %4 = vector.load %arg3[%c0_3, %c0_4] : memref<1x512xf32, #tpu.memory_space<vmem>>, vector<1x512xf32>
    %5 = vector.broadcast %4 : vector<1x512xf32> to vector<2x512xf32>
    %6 = arith.addf %3, %5 : vector<2x512xf32>
    %cst_5 = arith.constant 0.000000e+00 : f32
    %7 = vector.broadcast %cst_5 : f32 to vector<2x512xf32>
    %8 = arith.maximumf %6, %7 : vector<2x512xf32>
    %9 = arith.truncf %8 : vector<2x512xf32> to vector<2x512xbf16>
    %c0_6 = arith.constant 0 : index
    %c0_7 = arith.constant 0 : index
    %10 = vector.load %arg4[%c0_6, %c0_7] : memref<512x256xbf16, #tpu.memory_space<vmem>>, vector<512x256xbf16>
    %cst_8 = arith.constant dense<0.000000e+00> : vector<2x256xf32>
    %11 = tpu.matmul %9, %10, %cst_8 {dimension_numbers = #tpu.dot_dimension_numbers<[1], [0], [0], [1], [0, 0, 1, 1], [], []>} : vector<2x512xbf16>, vector<512x256xbf16>, vector<2x256xf32> -> vector<2x256xf32>
    %c0_9 = arith.constant 0 : index
    %c0_10 = arith.constant 0 : index
    %12 = vector.load %arg5[%c0_9, %c0_10] : memref<1x256xf32, #tpu.memory_space<vmem>>, vector<1x256xf32>
    %13 = vector.broadcast %12 : vector<1x256xf32> to vector<2x256xf32>
    %14 = arith.addf %11, %13 : vector<2x256xf32>
    %cst_11 = arith.constant 0.000000e+00 : f32
    %15 = vector.broadcast %cst_11 : f32 to vector<2x256xf32>
    %16 = arith.maximumf %14, %15 : vector<2x256xf32>
    %17 = arith.truncf %16 : vector<2x256xf32> to vector<2x256xbf16>
    %c0_12 = arith.constant 0 : index
    %c0_13 = arith.constant 0 : index
    %18 = vector.load %arg6[%c0_12, %c0_13] : memref<256x512xbf16, #tpu.memory_space<vmem>>, vector<256x512xbf16>
    %cst_14 = arith.constant dense<0.000000e+00> : vector<2x512xf32>
    %19 = tpu.matmul %17, %18, %cst_14 {dimension_numbers = #tpu.dot_dimension_numbers<[1], [0], [0], [1], [0, 0, 1, 1], [], []>} : vector<2x256xbf16>, vector<256x512xbf16>, vector<2x512xf32> -> vector<2x512xf32>
    %c0_15 = arith.constant 0 : index
    %c0_16 = arith.constant 0 : index
    %20 = vector.load %arg7[%c0_15, %c0_16] : memref<1x512xf32, #tpu.memory_space<vmem>>, vector<1x512xf32>
    %21 = vector.broadcast %20 : vector<1x512xf32> to vector<2x512xf32>
    %22 = arith.addf %19, %21 : vector<2x512xf32>
    %cst_17 = arith.constant 0.000000e+00 : f32
    %23 = vector.broadcast %cst_17 : f32 to vector<2x512xf32>
    %24 = arith.maximumf %22, %23 : vector<2x512xf32>
    %25 = arith.truncf %24 : vector<2x512xf32> to vector<2x512xbf16>
    %c0_18 = arith.constant 0 : index
    %c0_19 = arith.constant 0 : index
    %26 = vector.load %arg8[%c0_18, %c0_19] : memref<512x1024xbf16, #tpu.memory_space<vmem>>, vector<512x1024xbf16>
    %cst_20 = arith.constant dense<0.000000e+00> : vector<2x1024xf32>
    %27 = tpu.matmul %25, %26, %cst_20 {dimension_numbers = #tpu.dot_dimension_numbers<[1], [0], [0], [1], [0, 0, 1, 1], [], []>} : vector<2x512xbf16>, vector<512x1024xbf16>, vector<2x1024xf32> -> vector<2x1024xf32>
    %c0_21 = arith.constant 0 : index
    %c0_22 = arith.constant 0 : index
    %28 = vector.load %arg9[%c0_21, %c0_22] : memref<1x1024xf32, #tpu.memory_space<vmem>>, vector<1x1024xf32>
    %29 = vector.broadcast %28 : vector<1x1024xf32> to vector<2x1024xf32>
    %30 = arith.addf %27, %29 : vector<2x1024xf32>
    %c0_23 = arith.constant 0 : index
    %c0_24 = arith.constant 0 : index
    %31 = vector.load %arg10[%c0_23, %c0_24] : memref<2x1024xf32, #tpu.memory_space<vmem>>, vector<2x1024xf32>
    tpu.vector_store %arg10[%c0_23, %c0_24], %30 {strides = array<i32>} : memref<2x1024xf32, #tpu.memory_space<vmem>>, vector<2x1024xf32>,
    %32 = arith.subf %30, %0 : vector<2x1024xf32>
    %33 = arith.mulf %32, %32 : vector<2x1024xf32>
    %cst_25 = arith.constant dense<0.000000e+00> : vector<2xf32>
    %34 = vector.multi_reduction <add>, %33, %cst_25 [1] : vector<2x1024xf32> to vector<2xf32>
    %35 = vector.shape_cast %34 : vector<2xf32> to vector<2x1xf32>
    %cst_26 = arith.constant 1.024000e+03 : f32
    %36 = vector.broadcast %cst_26 : f32 to vector<2x1xf32>
    %37 = arith.divf %35, %36 : vector<2x1xf32>
    %c0_27 = arith.constant 0 : index
    %c0_28 = arith.constant 0 : index
    %38 = vector.load %arg11[%c0_27, %c0_28] : memref<2x1xf32, #tpu.memory_space<vmem>>, vector<2x1xf32>
    tpu.vector_store %arg11[%c0_27, %c0_28], %37 {strides = array<i32>} : memref<2x1xf32, #tpu.memory_space<vmem>>, vector<2x1xf32>,
    return
  }
  func.func @transform_0(%arg0: i32) -> (i32, i32) {
    %c0_i32 = arith.constant 0 : i32
    %c0_i32_0 = arith.constant 0 : i32
    %c0_i32_1 = arith.constant 0 : i32
    return %c0_i32, %c0_i32_0 : i32, i32
  }
  func.func @transform_1(%arg0: i32) -> (i32, i32) {
    %c0_i32 = arith.constant 0 : i32
    %c0_i32_0 = arith.constant 0 : i32
    %c0_i32_1 = arith.constant 0 : i32
    return %c0_i32, %c0_i32_0 : i32, i32
  }
  func.func @transform_2(%arg0: i32) -> (i32, i32) {
    %c0_i32 = arith.constant 0 : i32
    %c0_i32_0 = arith.constant 0 : i32
    %c0_i32_1 = arith.constant 0 : i32
    return %c0_i32, %c0_i32_0 : i32, i32
  }
  func.func @transform_3(%arg0: i32) -> (i32, i32) {
    %c0_i32 = arith.constant 0 : i32
    %c0_i32_0 = arith.constant 0 : i32
    %c0_i32_1 = arith.constant 0 : i32
    return %c0_i32, %c0_i32_0 : i32, i32
  }
  func.func @transform_4(%arg0: i32) -> (i32, i32) {
    %c0_i32 = arith.constant 0 : i32
    %c0_i32_0 = arith.constant 0 : i32
    %c0_i32_1 = arith.constant 0 : i32
    return %c0_i32, %c0_i32_0 : i32, i32
  }
  func.func @transform_5(%arg0: i32) -> (i32, i32) {
    %c0_i32 = arith.constant 0 : i32
    %c0_i32_0 = arith.constant 0 : i32
    %c0_i32_1 = arith.constant 0 : i32
    return %c0_i32, %c0_i32_0 : i32, i32
  }
  func.func @transform_6(%arg0: i32) -> (i32, i32) {
    %c0_i32 = arith.constant 0 : i32
    %c0_i32_0 = arith.constant 0 : i32
    %c0_i32_1 = arith.constant 0 : i32
    return %c0_i32, %c0_i32_0 : i32, i32
  }
  func.func @transform_7(%arg0: i32) -> (i32, i32) {
    %c0_i32 = arith.constant 0 : i32
    %c0_i32_0 = arith.constant 0 : i32
    %c0_i32_1 = arith.constant 0 : i32
    return %c0_i32, %c0_i32_0 : i32, i32
  }
  func.func @transform_8(%arg0: i32) -> (i32, i32) {
    %c0_i32 = arith.constant 0 : i32
    %c0_i32_0 = arith.constant 0 : i32
    %c0_i32_1 = arith.constant 0 : i32
    return %c0_i32, %c0_i32_0 : i32, i32
  }
  func.func @transform_9(%arg0: i32) -> (i32, i32) {
    %c0_i32 = arith.constant 0 : i32
    %c0_i32_0 = arith.constant 0 : i32
    %c0_i32_1 = arith.constant 0 : i32
    return %c0_i32, %c0_i32_0 : i32, i32
  }
  func.func @transform_10(%arg0: i32) -> (i32, i32) {
    %c0_i32 = arith.constant 0 : i32
    %c0_i32_0 = arith.constant 0 : i32
    %c0_i32_1 = arith.constant 0 : i32
    return %c0_i32, %c0_i32_0 : i32, i32
  }
}

</mosaic_0001>

<llo_original>
// kernel: _ae_apply.1
$region0: #{_ae_apply.1}
  #allocation0 [shape = 'u32[]', space=smem, size = 0x4, offset = 0x4, fixed_abs, tag = 'smem constant byte address 0x4 - core index']
  #allocation1 [shape = 'u32[72,128]{1,0:T(1,128)}', space=vmem, size = 0x9000, scoped, tag = 'internal scratch']
  %s0 = inlined_call_operand.vmem [shape: f32[2,1024], index: 0, kind: input, shape index: {}]
  %s1 = inlined_call_operand.hbm [shape: bf16[1024,512], index: 1, kind: input, shape index: {}]
  %s2 = inlined_call_operand.vmem [shape: f32[1,512], index: 2, kind: input, shape index: {}]
  %s3 = inlined_call_operand.hbm [shape: bf16[512,256], index: 3, kind: input, shape index: {}]
  %s4 = inlined_call_operand.vmem [shape: f32[1,256], index: 4, kind: input, shape index: {}]
  %s5 = inlined_call_operand.hbm [shape: bf16[256,512], index: 5, kind: input, shape index: {}]
  %s6 = inlined_call_operand.vmem [shape: f32[1,512], index: 6, kind: input, shape index: {}]
  %s7 = inlined_call_operand.hbm [shape: bf16[512,1024], index: 7, kind: input, shape index: {}]
  %s8 = inlined_call_operand.vmem [shape: f32[1,1024], index: 8, kind: input, shape index: {}]
  %s9 = inlined_call_operand.vmem [shape: f32[2,1024], index: 9, kind: output, shape index: {0}]
  %s10 = inlined_call_operand.vmem [shape: f32[2,1], index: 10, kind: output, shape index: {1}]
  %11 = xla_tuple %s9, %s10
  %s12 = sld [smem:[#allocation0]]
  $region70: #{_ae_apply.1} parent=0
    _
  %s14 = ssub.s32 1, %s12
  %s15 = scalar_select 0, %s14, %s12
  $region1: #{_ae_apply.1} parent=0
    #allocation2 [shape = 'u8[1048576]{0}', space=vmem, size = 0x100000, scoped, tag = 'input window, operand 1, single buffered']
    #allocation3 [shape = 's32[1]{0}', space=sflag, size = 0x4, scoped, tag = 'scoped memory for _ae_apply.1']
    #allocation4 [shape = 'u8[262144]{0}', space=vmem, size = 0x40000, scoped, tag = 'input window, operand 3, single buffered']
    #allocation5 [shape = 's32[1]{0}', space=sflag, size = 0x4, scoped, tag = 'scoped memory for _ae_apply.1']
    #allocation6 [shape = 'u8[262144]{0}', space=vmem, size = 0x40000, scoped, tag = 'input window, operand 5, single buffered']
    #allocation7 [shape = 'u8[1048576]{0}', space=vmem, size = 0x100000, scoped, tag = 'input window, operand 7, single buffered']
    #allocation8 [shape = 's32[1]{0}', space=sflag, size = 0x4, scoped, tag = 'scoped memory for _ae_apply.1']
    %16 = vsyncpa [#allocation3], 0
    %17 = vsyncpa [#allocation5], 0
    %18 = vsyncpa [#allocation8], 0
    // Predicated region
    $region2: #{_ae_apply.1} parent=1 // pred_check
      _
    $region3: #{_ae_apply.1} parent=1 // pred_check_branch
      %20 = sbr.rel (0) target = $region5
    $region4: #{_ae_apply.1} parent=1 // pred_region
      _
    $region5: #{_ae_apply.1} parent=1 // pred_fallthru
      _
    // Predicated region
    $region6: #{_ae_apply.1} parent=1 // pred_check
      _
    $region7: #{_ae_apply.1} parent=1 // pred_check_branch
      %22 = sbr.rel (0) target = $region9
    $region8: #{_ae_apply.1} parent=1 // pred_region
      %24 = vsyncadd [#allocation3], 0
      %s25 = sshll.u32 %s1, 4
      %s26 = int_to_ptr.hbm [resolvable:$true] %s25
      %s27 = sshll.u32 [#allocation2], 4
      %s28 = int_to_ptr.vmem [resolvable:$true] %s27
      %33 = dma.hbm_to_vmem [thread:$0]  %s26, 32768, %s28, [#allocation3], 256, 256, 16
    $region9: #{_ae_apply.1} parent=1 // pred_fallthru
      _
    // Predicated region
    $region10: #{_ae_apply.1} parent=1 // pred_check
      _
    $region11: #{_ae_apply.1} parent=1 // pred_check_branch
      %35 = sbr.rel (0) target = $region13
    $region12: #{_ae_apply.1} parent=1 // pred_region
      _
    $region13: #{_ae_apply.1} parent=1 // pred_fallthru
      _
    // Predicated region
    $region14: #{_ae_apply.1} parent=1 // pred_check
      _
    $region15: #{_ae_apply.1} parent=1 // pred_check_branch
      %37 = sbr.rel (0) target = $region17
    $region16: #{_ae_apply.1} parent=1 // pred_region
      %39 = vsyncadd [#allocation5], 0
      %s40 = sshll.u32 %s3, 4
      %s41 = int_to_ptr.hbm [resolvable:$true] %s40
      %s42 = sshll.u32 [#allocation4], 4
      %s43 = int_to_ptr.vmem [resolvable:$true] %s42
      %48 = dma.hbm_to_vmem [thread:$0]  %s41, 8192, %s43, [#allocation5], 128, 128, 8
    $region17: #{_ae_apply.1} parent=1 // pred_fallthru
      _
    // Predicated region
    $region18: #{_ae_apply.1} parent=1 // pred_check
      _
    $region19: #{_ae_apply.1} parent=1 // pred_check_branch
      %50 = sbr.rel (0) target = $region21
    $region20: #{_ae_apply.1} parent=1 // pred_region
      _
    $region21: #{_ae_apply.1} parent=1 // pred_fallthru
      _
    // Predicated region
    $region22: #{_ae_apply.1} parent=1 // pred_check
      _
    $region23: #{_ae_apply.1} parent=1 // pred_check_branch
      %52 = sbr.rel (0) target = $region25
    $region24: #{_ae_apply.1} parent=1 // pred_region
      %54 = vsyncadd [#allocation5], 0
      %s55 = sshll.u32 %s5, 4
      %s56 = int_to_ptr.hbm [resolvable:$true] %s55
      %s57 = sshll.u32 [#allocation6], 4
      %s58 = int_to_ptr.vmem [resolvable:$true] %s57
      %63 = dma.hbm_to_vmem [thread:$0]  %s56, 8192, %s58, [#allocation5], 256, 256, 16
    $region25: #{_ae_apply.1} parent=1 // pred_fallthru
      _
    // Predicated region
    $region26: #{_ae_apply.1} parent=1 // pred_check
      _
    $region27: #{_ae_apply.1} parent=1 // pred_check_branch
      %65 = sbr.rel (0) target = $region29
    $region28: #{_ae_apply.1} parent=1 // pred_region
      _
    $region29: #{_ae_apply.1} parent=1 // pred_fallthru
      _
    // Predicated region
    $region30: #{_ae_apply.1} parent=1 // pred_check
      _
    $region31: #{_ae_apply.1} parent=1 // pred_check_branch
      %67 = sbr.rel (0) target = $region33
    $region32: #{_ae_apply.1} parent=1 // pred_region
      %69 = vsyncadd [#allocation8], 0
      %s70 = sshll.u32 %s7, 4
      %s71 = int_to_ptr.hbm [resolvable:$true] %s70
      %s72 = sshll.u32 [#allocation7], 4
      %s73 = int_to_ptr.vmem [resolvable:$true] %s72
      %78 = dma.hbm_to_vmem [thread:$0]  %s71, 32768, %s73, [#allocation8], 512, 512, 32
    $region33: #{_ae_apply.1} parent=1 // pred_fallthru
      _
    // Predicated region
    $region34: #{_ae_apply.1} parent=1 // pred_check
      _
    $region35: #{_ae_apply.1} parent=1 // pred_check_branch
      %80 = sbr.rel (0) target = $region37
    $region36: #{_ae_apply.1} parent=1 // pred_region
      _
    $region37: #{_ae_apply.1} parent=1 // pred_fallthru
      _
    // Predicated region
    $region38: #{_ae_apply.1} parent=1 // pred_check
      _
    $region39: #{_ae_apply.1} parent=1 // pred_check_branch
      %82 = sbr.rel (0) target = $region41
    $region40: #{_ae_apply.1} parent=1 // pred_region
      %84 = dma.done [#allocation3], 32768
    $region41: #{_ae_apply.1} parent=1 // pred_fallthru
      _
    // Predicated region
    $region42: #{_ae_apply.1} parent=1 // pred_check
      _
    $region43: #{_ae_apply.1} parent=1 // pred_check_branch
      %86 = sbr.rel (0) target = $region45
    $region44: #{_ae_apply.1} parent=1 // pred_region
      %88 = dma.done [#allocation5], 8192
    $region45: #{_ae_apply.1} parent=1 // pred_fallthru
      _
    // Predicated region
    $region46: #{_ae_apply.1} parent=1 // pred_check
      _
    $region47: #{_ae_apply.1} parent=1 // pred_check_branch
      %90 = sbr.rel (0) target = $region49
    $region48: #{_ae_apply.1} parent=1 // pred_region
      %92 = dma.done [#allocation5], 8192
    $region49: #{_ae_apply.1} parent=1 // pred_fallthru
      _
    // Predicated region
    $region50: #{_ae_apply.1} parent=1 // pred_check
      _
    $region51: #{_ae_apply.1} parent=1 // pred_check_branch
      %94 = sbr.rel (0) target = $region53
    $region52: #{_ae_apply.1} parent=1 // pred_region
      %96 = dma.done [#allocation8], 32768
    $region53: #{_ae_apply.1} parent=1 // pred_fallthru
      _
    %v97 = vld [vmem:[%s0] sm:$0xff]
    %v98 = vld [vmem:[%s0 + $0x8] sm:$0xff]
    %101 = vst [vmem:[#allocation1] ss:$4 sm:$0xff] %v97
    %s102 = scalar_lea.vmem [#allocation1], 32
    %103 = vst [vmem:[%s102] ss:$4 sm:$0xff] %v98
    %v104 = vld.sshfl [vmem:[#allocation1] sm:$0xff pattern:$0x73625140]
    %v105 = vld.sshfl [vmem:[#allocation1 + $0x8] sm:$0xff pattern:$0x73625140]
    %v106 = vld.sshfl [vmem:[#allocation1 + $0x10] sm:$0xff pattern:$0x73625140]
    %v107 = vld.sshfl [vmem:[#allocation1 + $0x18] sm:$0xff pattern:$0x73625140]
    %v108 = vld.sshfl [vmem:[#allocation1 + $0x20] sm:$0xff pattern:$0x73625140]
    %v109 = vld.sshfl [vmem:[#allocation1 + $0x28] sm:$0xff pattern:$0x73625140]
    %v110 = vld.sshfl [vmem:[#allocation1 + $0x30] sm:$0xff pattern:$0x73625140]
    %v111 = vld.sshfl [vmem:[#allocation1 + $0x38] sm:$0xff pattern:$0x73625140]
    %v120 = vpack.c.bf16 %v104, %v104
    %v121 = vpack.c.bf16 %v105, %v105
    %v122 = vpack.c.bf16 %v106, %v106
    %v123 = vpack.c.bf16 %v107, %v107
    %v124 = vpack.c.bf16 %v108, %v108
    %v125 = vpack.c.bf16 %v109, %v109
    %v126 = vpack.c.bf16 %v110, %v110
    %v127 = vpack.c.bf16 %v111, %v111
    %v128 = vld [vmem:[#allocation2] sm:$0xff]
    %v129 = vld [vmem:[#allocation2 + $0x8] sm:$0xff]
    %v130 = vld [vmem:[#allocation2 + $0x10] sm:$0xff]
    %v131 = vld [vmem:[#allocation2 + $0x18] sm:$0xff]
    %v132 = vld [vmem:[#allocation2 + $0x20] sm:$0xff]
    %v133 = vld [vmem:[#allocation2 + $0x28] sm:$0xff]
    %v134 = vld [vmem:[#allocation2 + $0x30] sm:$0xff]
    %v135 = vld [vmem:[#allocation2 + $0x38] sm:$0xff]
    %v136 = vld [vmem:[#allocation2 + $0x40] sm:$0xff]
    %v137 = vld [vmem:[#allocation2 + $0x48] sm:$0xff]
    %v138 = vld [vmem:[#allocation2 + $0x50] sm:$0xff]
    %v139 = vld [vmem:[#allocation2 + $0x58] sm:$0xff]
    %v140 = vld [vmem:[#allocation2 + $0x60] sm:$0xff]
    %v141 = vld [vmem:[#allocation2 + $0x68] sm:$0xff]
    %v142 = vld [vmem:[#allocation2 + $0x70] sm:$0xff]
    %v143 = vld [vmem:[#allocation2 + $0x78] sm:$0xff]
    %v144 = vld [vmem:[#allocation2 + $0x80] sm:$0xff]
    %v145 = vld [vmem:[#allocation2 + $0x88] sm:$0xff]
    %v146 = vld [vmem:[#allocation2 + $0x90] sm:$0xff]
    %v147 = vld [vmem:[#allocation2 + $0x98] sm:$0xff]
    %v148 = vld [vmem:[#allocation2 + $0xa0] sm:$0xff]
    %v149 = vld [vmem:[#allocation2 + $0xa8] sm:$0xff]
    %v150 = vld [vmem:[#allocation2 + $0xb0] sm:$0xff]
    %v151 = vld [vmem:[#allocation2 + $0xb8] sm:$0xff]
    %v152 = vld [vmem:[#allocation2 + $0xc0] sm:$0xff]
    %v153 = vld [vmem:[#allocation2 + $0xc8] sm:$0xff]
    %v154 = vld [vmem:[#allocation2 + $0xd0] sm:$0xff]
    %v155 = vld [vmem:[#allocation2 + $0xd8] sm:$0xff]
    %v156 = vld [vmem:[#allocation2 + $0xe0] sm:$0xff]
    %v157 = vld [vmem:[#allocation2 + $0xe8] sm:$0xff]
    %v158 = vld [vmem:[#allocation2 + $0xf0] sm:$0xff]
    %v159 = vld [vmem:[#allocation2 + $0xf8] sm:$0xff]
    %v160 = vld [vmem:[#allocation2 + $0x100] sm:$0xff]
    %v161 = vld [vmem:[#allocation2 + $0x108] sm:$0xff]
    %v162 = vld [vmem:[#allocation2 + $0x110] sm:$0xff]
    %v163 = vld [vmem:[#allocation2 + $0x118] sm:$0xff]
    %v164 = vld [vmem:[#allocation2 + $0x120] sm:$0xff]
    %v165 = vld [vmem:[#allocation2 + $0x128] sm:$0xff]
    %v166 = vld [vmem:[#allocation2 + $0x130] sm:$0xff]
    %v167 = vld [vmem:[#allocation2 + $0x138] sm:$0xff]
    %v168 = vld [vmem:[#allocation2 + $0x140] sm:$0xff]
    %v169 = vld [vmem:[#allocation2 + $0x148] sm:$0xff]
    %v170 = vld [vmem:[#allocation2 + $0x150] sm:$0xff]
    %v171 = vld [vmem:[#allocation2 + $0x158] sm:$0xff]
    %v172 = vld [vmem:[#allocation2 + $0x160] sm:$0xff]
    %v173 = vld [vmem:[#allocation2 + $0x168] sm:$0xff]
    %v174 = vld [vmem:[#allocation2 + $0x170] sm:$0xff]
    %v175 = vld [vmem:[#allocation2 + $0x178] sm:$0xff]
    %v176 = vld [vmem:[#allocation2 + $0x180] sm:$0xff]
    %v177 = vld [vmem:[#allocation2 + $0x188] sm:$0xff]
    %v178 = vld [vmem:[#allocation2 + $0x190] sm:$0xff]
    %v179 = vld [vmem:[#allocation2 + $0x198] sm:$0xff]
    %v180 = vld [vmem:[#allocation2 + $0x1a0] sm:$0xff]
    %v181 = vld [vmem:[#allocation2 + $0x1a8] sm:$0xff]
    %v182 = vld [vmem:[#allocation2 + $0x1b0] sm:$0xff]
    %v183 = vld [vmem:[#allocation2 + $0x1b8] sm:$0xff]
    %v184 = vld [vmem:[#allocation2 + $0x1c0] sm:$0xff]
    %v185 = vld [vmem:[#allocation2 + $0x1c8] sm:$0xff]
    %v186 = vld [vmem:[#allocation2 + $0x1d0] sm:$0xff]
    %v187 = vld [vmem:[#allocation2 + $0x1d8] sm:$0xff]
    %v188 = vld [vmem:[#allocation2 + $0x1e0] sm:$0xff]
    %v189 = vld [vmem:[#allocation2 + $0x1e8] sm:$0xff]
    %v190 = vld [vmem:[#allocation2 + $0x1f0] sm:$0xff]
    %v191 = vld [vmem:[#allocation2 + $0x1f8] sm:$0xff]
    %v192 = vld [vmem:[#allocation2 + $0x200] sm:$0xff]
    %v193 = vld [vmem:[#allocation2 + $0x208] sm:$0xff]
    %v194 = vld [vmem:[#allocation2 + $0x210] sm:$0xff]
    %v195 = vld [vmem:[#allocation2 + $0x218] sm:$0xff]
    %v196 = vld [vmem:[#allocation2 + $0x220] sm:$0xff]
    %v197 = vld [vmem:[#allocation2 + $0x228] sm:$0xff]
    %v198 = vld [vmem:[#allocation2 + $0x230] sm:$0xff]
    %v199 = vld [vmem:[#allocation2 + $0x238] sm:$0xff]
    %v200 = vld [vmem:[#allocation2 + $0x240] sm:$0xff]
    %v201 = vld [vmem:[#allocation2 + $0x248] sm:$0xff]
    %v202 = vld [vmem:[#allocation2 + $0x250] sm:$0xff]
    %v203 = vld [vmem:[#allocation2 + $0x258] sm:$0xff]
    %v204 = vld [vmem:[#allocation2 + $0x260] sm:$0xff]
    %v205 = vld [vmem:[#allocation2 + $0x268] sm:$0xff]
    %v206 = vld [vmem:[#allocation2 + $0x270] sm:$0xff]
    %v207 = vld [vmem:[#allocation2 + $0x278] sm:$0xff]
    %v208 = vld [vmem:[#allocation2 + $0x280] sm:$0xff]
    %v209 = vld [vmem:[#allocation2 + $0x288] sm:$0xff]
    %v210 = vld [vmem:[#allocation2 + $0x290] sm:$0xff]
    %v211 = vld [vmem:[#allocation2 + $0x298] sm:$0xff]
    %v212 = vld [vmem:[#allocation2 + $0x2a0] sm:$0xff]
    %v213 = vld [vmem:[#allocation2 + $0x2a8] sm:$0xff]
    %v214 = vld [vmem:[#allocation2 + $0x2b0] sm:$0xff]
    %v215 = vld [vmem:[#allocation2 + $0x2b8] sm:$0xff]
    %v216 = vld [vmem:[#allocation2 + $0x2c0] sm:$0xff]
    %v217 = vld [vmem:[#allocation2 + $0x2c8] sm:$0xff]
    %v218 = vld [vmem:[#allocation2 + $0x2d0] sm:$0xff]
    %v219 = vld [vmem:[#allocation2 + $0x2d8] sm:$0xff]
    %v220 = vld [vmem:[#allocation2 + $0x2e0] sm:$0xff]
    %v221 = vld [vmem:[#allocation2 + $0x2e8] sm:$0xff]
    %v222 = vld [vmem:[#allocation2 + $0x2f0] sm:$0xff]
    %v223 = vld [vmem:[#allocation2 + $0x2f8] sm:$0xff]
    %v224 = vld [vmem:[#allocation2 + $0x300] sm:$0xff]
    %v225 = vld [vmem:[#allocation2 + $0x308] sm:$0xff]
    %v226 = vld [vmem:[#allocation2 + $0x310] sm:$0xff]
    %v227 = vld [vmem:[#allocation2 + $0x318] sm:$0xff]
    %v228 = vld [vmem:[#allocation2 + $0x320] sm:$0xff]
    %v229 = vld [vmem:[#allocation2 + $0x328] sm:$0xff]
    %v230 = vld [vmem:[#allocation2 + $0x330] sm:$0xff]
    %v231 = vld [vmem:[#allocation2 + $0x338] sm:$0xff]
    %v232 = vld [vmem:[#allocation2 + $0x340] sm:$0xff]
    %v233 = vld [vmem:[#allocation2 + $0x348] sm:$0xff]
    %v234 = vld [vmem:[#allocation2 + $0x350] sm:$0xff]
    %v235 = vld [vmem:[#allocation2 + $0x358] sm:$0xff]
    %v236 = vld [vmem:[#allocation2 + $0x360] sm:$0xff]
    %v237 = vld [vmem:[#allocation2 + $0x368] sm:$0xff]
    %v238 = vld [vmem:[#allocation2 + $0x370] sm:$0xff]
    %v239 = vld [vmem:[#allocation2 + $0x378] sm:$0xff]
    %v240 = vld [vmem:[#allocation2 + $0x380] sm:$0xff]
    %v241 = vld [vmem:[#allocation2 + $0x388] sm:$0xff]
    %v242 = vld [vmem:[#allocation2 + $0x390] sm:$0xff]
    %v243 = vld [vmem:[#allocation2 + $0x398] sm:$0xff]
    %v244 = vld [vmem:[#allocation2 + $0x3a0] sm:$0xff]
    %v245 = vld [vmem:[#allocation2 + $0x3a8] sm:$0xff]
    %v246 = vld [vmem:[#allocation2 + $0x3b0] sm:$0xff]
    %v247 = vld [vmem:[#allocation2 + $0x3b8] sm:$0xff]
    %v248 = vld [vmem:[#allocation2 + $0x3c0] sm:$0xff]
    %v249 = vld [vmem:[#allocation2 + $0x3c8] sm:$0xff]
    %v250 = vld [vmem:[#allocation2 + $0x3d0] sm:$0xff]
    %v251 = vld [vmem:[#allocation2 + $0x3d8] sm:$0xff]
    %v252 = vld [vmem:[#allocation2 + $0x3e0] sm:$0xff]
    %v253 = vld [vmem:[#allocation2 + $0x3e8] sm:$0xff]
    %v254 = vld [vmem:[#allocation2 + $0x3f0] sm:$0xff]
    %v255 = vld [vmem:[#allocation2 + $0x3f8] sm:$0xff]
    %v256 = vld [vmem:[#allocation2 + $0x400] sm:$0xff]
    %v257 = vld [vmem:[#allocation2 + $0x408] sm:$0xff]
    %v258 = vld [vmem:[#allocation2 + $0x410] sm:$0xff]
    %v259 = vld [vmem:[#allocation2 + $0x418] sm:$0xff]
    %v260 = vld [vmem:[#allocation2 + $0x420] sm:$0xff]
    %v261 = vld [vmem:[#allocation2 + $0x428] sm:$0xff]
    %v262 = vld [vmem:[#allocation2 + $0x430] sm:$0xff]
    %v263 = vld [vmem:[#allocation2 + $0x438] sm:$0xff]
    %v264 = vld [vmem:[#allocation2 + $0x440] sm:$0xff]
    %v265 = vld [vmem:[#allocation2 + $0x448] sm:$0xff]
    %v266 = vld [vmem:[#allocation2 + $0x450] sm:$0xff]
    %v267 = vld [vmem:[#allocation2 + $0x458] sm:$0xff]
    %v268 = vld [vmem:[#allocation2 + $0x460] sm:$0xff]
    %v269 = vld [vmem:[#allocation2 + $0x468] sm:$0xff]
    %v270 = vld [vmem:[#allocation2 + $0x470] sm:$0xff]
    %v271 = vld [vmem:[#allocation2 + $0x478] sm:$0xff]
    %v272 = vld [vmem:[#allocation2 + $0x480] sm:$0xff]
    %v273 = vld [vmem:[#allocation2 + $0x488] sm:$0xff]
    %v274 = vld [vmem:[#allocation2 + $0x490] sm:$0xff]
    %v275 = vld [vmem:[#allocation2 + $0x498] sm:$0xff]
    %v276 = vld [vmem:[#allocation2 + $0x4a0] sm:$0xff]
    %v277 = vld [vmem:[#allocation2 + $0x4a8] sm:$0xff]
    %v278 = vld [vmem:[#allocation2 + $0x4b0] sm:$0xff]
    %v279 = vld [vmem:[#allocation2 + $0x4b8] sm:$0xff]
    %v280 = vld [vmem:[#allocation2 + $0x4c0] sm:$0xff]
    %v281 = vld [vmem:[#allocation2 + $0x4c8] sm:$0xff]
    %v282 = vld [vmem:[#allocation2 + $0x4d0] sm:$0xff]
    %v283 = vld [vmem:[#allocation2 + $0x4d8] sm:$0xff]
    %v284 = vld [vmem:[#allocation2 + $0x4e0] sm:$0xff]
    %v285 = vld [vmem:[#allocation2 + $0x4e8] sm:$0xff]
    %v286 = vld [vmem:[#allocation2 + $0x4f0] sm:$0xff]
    %v287 = vld [vmem:[#allocation2 + $0x4f8] sm:$0xff]
    %v288 = vld [vmem:[#allocation2 + $0x500] sm:$0xff]
    %v289 = vld [vmem:[#allocation2 + $0x508] sm:$0xff]
    %v290 = vld [vmem:[#allocation2 + $0x510] sm:$0xff]
    %v291 = vld [vmem:[#allocation2 + $0x518] sm:$0xff]
    %v292 = vld [vmem:[#allocation2 + $0x520] sm:$0xff]
    %v293 = vld [vmem:[#allocation2 + $0x528] sm:$0xff]
    %v294 = vld [vmem:[#allocation2 + $0x530] sm:$0xff]
    %v295 = vld [vmem:[#allocation2 + $0x538] sm:$0xff]
    %v296 = vld [vmem:[#allocation2 + $0x540] sm:$0xff]
    %v297 = vld [vmem:[#allocation2 + $0x548] sm:$0xff]
    %v298 = vld [vmem:[#allocation2 + $0x550] sm:$0xff]
    %v299 = vld [vmem:[#allocation2 + $0x558] sm:$0xff]
    %v300 = vld [vmem:[#allocation2 + $0x560] sm:$0xff]
    %v301 = vld [vmem:[#allocation2 + $0x568] sm:$0xff]
    %v302 = vld [vmem:[#allocation2 + $0x570] sm:$0xff]
    %v303 = vld [vmem:[#allocation2 + $0x578] sm:$0xff]
    %v304 = vld [vmem:[#allocation2 + $0x580] sm:$0xff]
    %v305 = vld [vmem:[#allocation2 + $0x588] sm:$0xff]
    %v306 = vld [vmem:[#allocation2 + $0x590] sm:$0xff]
    %v307 = vld [vmem:[#allocation2 + $0x598] sm:$0xff]
    %v308 = vld [vmem:[#allocation2 + $0x5a0] sm:$0xff]
    %v309 = vld [vmem:[#allocation2 + $0x5a8] sm:$0xff]
    %v310 = vld [vmem:[#allocation2 + $0x5b0] sm:$0xff]
    %v311 = vld [vmem:[#allocation2 + $0x5b8] sm:$0xff]
    %v312 = vld [vmem:[#allocation2 + $0x5c0] sm:$0xff]
    %v313 = vld [vmem:[#allocation2 + $0x5c8] sm:$0xff]
    %v314 = vld [vmem:[#allocation2 + $0x5d0] sm:$0xff]
    %v315 = vld [vmem:[#allocation2 + $0x5d8] sm:$0xff]
    %v316 = vld [vmem:[#allocation2 + $0x5e0] sm:$0xff]
    %v317 = vld [vmem:[#allocation2 + $0x5e8] sm:$0xff]
    %v318 = vld [vmem:[#allocation2 + $0x5f0] sm:$0xff]
    %v319 = vld [vmem:[#allocation2 + $0x5f8] sm:$0xff]
    %v320 = vld [vmem:[#allocation2 + $0x600] sm:$0xff]
    %v321 = vld [vmem:[#allocation2 + $0x608] sm:$0xff]
    %v322 = vld [vmem:[#allocation2 + $0x610] sm:$0xff]
    %v323 = vld [vmem:[#allocation2 + $0x618] sm:$0xff]
    %v324 = vld [vmem:[#allocation2 + $0x620] sm:$0xff]
    %v325 = vld [vmem:[#allocation2 + $0x628] sm:$0xff]
    %v326 = vld [vmem:[#allocation2 + $0x630] sm:$0xff]
    %v327 = vld [vmem:[#allocation2 + $0x638] sm:$0xff]
    %v328 = vld [vmem:[#allocation2 + $0x640] sm:$0xff]
    %v329 = vld [vmem:[#allocation2 + $0x648] sm:$0xff]
    %v330 = vld [vmem:[#allocation2 + $0x650] sm:$0xff]
    %v331 = vld [vmem:[#allocation2 + $0x658] sm:$0xff]
    %v332 = vld [vmem:[#allocation2 + $0x660] sm:$0xff]
    %v333 = vld [vmem:[#allocation2 + $0x668] sm:$0xff]
    %v334 = vld [vmem:[#allocation2 + $0x670] sm:$0xff]
    %v335 = vld [vmem:[#allocation2 + $0x678] sm:$0xff]
    %v336 = vld [vmem:[#allocation2 + $0x680] sm:$0xff]
    %v337 = vld [vmem:[#allocation2 + $0x688] sm:$0xff]
    %v338 = vld [vmem:[#allocation2 + $0x690] sm:$0xff]
    %v339 = vld [vmem:[#allocation2 + $0x698] sm:$0xff]
    %v340 = vld [vmem:[#allocation2 + $0x6a0] sm:$0xff]
    %v341 = vld [vmem:[#allocation2 + $0x6a8] sm:$0xff]
    %v342 = vld [vmem:[#allocation2 + $0x6b0] sm:$0xff]
    %v343 = vld [vmem:[#allocation2 + $0x6b8] sm:$0xff]
    %v344 = vld [vmem:[#allocation2 + $0x6c0] sm:$0xff]
    %v345 = vld [vmem:[#allocation2 + $0x6c8] sm:$0xff]
    %v346 = vld [vmem:[#allocation2 + $0x6d0] sm:$0xff]
    %v347 = vld [vmem:[#allocation2 + $0x6d8] sm:$0xff]
    %v348 = vld [vmem:[#allocation2 + $0x6e0] sm:$0xff]
    %v349 = vld [vmem:[#allocation2 + $0x6e8] sm:$0xff]
    %v350 = vld [vmem:[#allocation2 + $0x6f0] sm:$0xff]
    %v351 = vld [vmem:[#allocation2 + $0x6f8] sm:$0xff]
    %v352 = vld [vmem:[#allocation2 + $0x700] sm:$0xff]
    %v353 = vld [vmem:[#allocation2 + $0x708] sm:$0xff]
    %v354 = vld [vmem:[#allocation2 + $0x710] sm:$0xff]
    %v355 = vld [vmem:[#allocation2 + $0x718] sm:$0xff]
    %v356 = vld [vmem:[#allocation2 + $0x720] sm:$0xff]
    %v357 = vld [vmem:[#allocation2 + $0x728] sm:$0xff]
    %v358 = vld [vmem:[#allocation2 + $0x730] sm:$0xff]
    %v359 = vld [vmem:[#allocation2 + $0x738] sm:$0xff]
    %v360 = vld [vmem:[#allocation2 + $0x740] sm:$0xff]
    %v361 = vld [vmem:[#allocation2 + $0x748] sm:$0xff]
    %v362 = vld [vmem:[#allocation2 + $0x750] sm:$0xff]
    %v363 = vld [vmem:[#allocation2 + $0x758] sm:$0xff]
    %v364 = vld [vmem:[#allocation2 + $0x760] sm:$0xff]
    %v365 = vld [vmem:[#allocation2 + $0x768] sm:$0xff]
    %v366 = vld [vmem:[#allocation2 + $0x770] sm:$0xff]
    %v367 = vld [vmem:[#allocation2 + $0x778] sm:$0xff]
    %v368 = vld [vmem:[#allocation2 + $0x780] sm:$0xff]
    %v369 = vld [vmem:[#allocation2 + $0x788] sm:$0xff]
    %v370 = vld [vmem:[#allocation2 + $0x790] sm:$0xff]
    %v371 = vld [vmem:[#allocation2 + $0x798] sm:$0xff]
    %v372 = vld [vmem:[#allocation2 + $0x7a0] sm:$0xff]
    %v373 = vld [vmem:[#allocation2 + $0x7a8] sm:$0xff]
    %v374 = vld [vmem:[#allocation2 + $0x7b0] sm:$0xff]
    %v375 = vld [vmem:[#allocation2 + $0x7b8] sm:$0xff]
    %v376 = vld [vmem:[#allocation2 + $0x7c0] sm:$0xff]
    %v377 = vld [vmem:[#allocation2 + $0x7c8] sm:$0xff]
    %v378 = vld [vmem:[#allocation2 + $0x7d0] sm:$0xff]
    %v379 = vld [vmem:[#allocation2 + $0x7d8] sm:$0xff]
    %v380 = vld [vmem:[#allocation2 + $0x7e0] sm:$0xff]
    %v381 = vld [vmem:[#allocation2 + $0x7e8] sm:$0xff]
    %v382 = vld [vmem:[#allocation2 + $0x7f0] sm:$0xff]
    %v383 = vld [vmem:[#allocation2 + $0x7f8] sm:$0xff]
    %v384 = vld [vmem:[%s2] sm:$0xf]
    %v386 = vperm.slane %v384, 0
    %v387 = vperm.slane %v384, 1
    %v388 = vperm.slane %v384, 2
    %v389 = vperm.slane %v384, 3
    %v650 = vunpack.c.l.b16 %v128
    %v651 = vunpack.c.h.b16 %v128
    %v652 = vunpack.c.l.b16 %v129
    %v653 = vunpack.c.h.b16 %v129
    %v654 = vunpack.c.l.b16 %v130
    %v655 = vunpack.c.h.b16 %v130
    %v656 = vunpack.c.l.b16 %v131
    %v657 = vunpack.c.h.b16 %v131
    %v658 = vunpack.c.l.b16 %v132
    %v659 = vunpack.c.h.b16 %v132
    %v660 = vunpack.c.l.b16 %v133
    %v661 = vunpack.c.h.b16 %v133
    %v662 = vunpack.c.l.b16 %v134
    %v663 = vunpack.c.h.b16 %v134
    %v664 = vunpack.c.l.b16 %v135
    %v665 = vunpack.c.h.b16 %v135
    %v666 = vunpack.c.l.b16 %v136
    %v667 = vunpack.c.h.b16 %v136
    %v668 = vunpack.c.l.b16 %v137
    %v669 = vunpack.c.h.b16 %v137
    %v670 = vunpack.c.l.b16 %v138
    %v671 = vunpack.c.h.b16 %v138
    %v672 = vunpack.c.l.b16 %v139
    %v673 = vunpack.c.h.b16 %v139
    %v674 = vunpack.c.l.b16 %v140
    %v675 = vunpack.c.h.b16 %v140
    %v676 = vunpack.c.l.b16 %v141
    %v677 = vunpack.c.h.b16 %v141
    %v678 = vunpack.c.l.b16 %v142
    %v679 = vunpack.c.h.b16 %v142
    %v680 = vunpack.c.l.b16 %v143
    %v681 = vunpack.c.h.b16 %v143
    %v682 = vunpack.c.l.b16 %v144
    %v683 = vunpack.c.h.b16 %v144
    %v684 = vunpack.c.l.b16 %v145
    %v685 = vunpack.c.h.b16 %v145
    %v686 = vunpack.c.l.b16 %v146
    %v687 = vunpack.c.h.b16 %v146
    %v688 = vunpack.c.l.b16 %v147
    %v689 = vunpack.c.h.b16 %v147
    %v690 = vunpack.c.l.b16 %v148
    %v691 = vunpack.c.h.b16 %v148
    %v692 = vunpack.c.l.b16 %v149
    %v693 = vunpack.c.h.b16 %v149
    %v694 = vunpack.c.l.b16 %v150
    %v695 = vunpack.c.h.b16 %v150
    %v696 = vunpack.c.l.b16 %v151
    %v697 = vunpack.c.h.b16 %v151
    %v698 = vunpack.c.l.b16 %v152
    %v699 = vunpack.c.h.b16 %v152
    %v700 = vunpack.c.l.b16 %v153
    %v701 = vunpack.c.h.b16 %v153
    %v702 = vunpack.c.l.b16 %v154
    %v703 = vunpack.c.h.b16 %v154
    %v704 = vunpack.c.l.b16 %v155
    %v705 = vunpack.c.h.b16 %v155
    %v706 = vunpack.c.l.b16 %v156
    %v707 = vunpack.c.h.b16 %v156
    %v708 = vunpack.c.l.b16 %v157
    %v709 = vunpack.c.h.b16 %v157
    %v710 = vunpack.c.l.b16 %v158
    %v711 = vunpack.c.h.b16 %v158
    %v712 = vunpack.c.l.b16 %v159
    %v713 = vunpack.c.h.b16 %v159
    %v714 = vunpack.c.l.b16 %v160
    %v715 = vunpack.c.h.b16 %v160
    %v716 = vunpack.c.l.b16 %v161
    %v717 = vunpack.c.h.b16 %v161
    %v718 = vunpack.c.l.b16 %v162
    %v719 = vunpack.c.h.b16 %v162
    %v720 = vunpack.c.l.b16 %v163
    %v721 = vunpack.c.h.b16 %v163
    %v722 = vunpack.c.l.b16 %v164
    %v723 = vunpack.c.h.b16 %v164
    %v724 = vunpack.c.l.b16 %v165
    %v725 = vunpack.c.h.b16 %v165
    %v726 = vunpack.c.l.b16 %v166
    %v727 = vunpack.c.h.b16 %v166
    %v728 = vunpack.c.l.b16 %v167
    %v729 = vunpack.c.h.b16 %v167
    %v730 = vunpack.c.l.b16 %v168
    %v731 = vunpack.c.h.b16 %v168
    %v732 = vunpack.c.l.b16 %v169
    %v733 = vunpack.c.h.b16 %v169
    %v734 = vunpack.c.l.b16 %v170
    %v735 = vunpack.c.h.b16 %v170
    %v736 = vunpack.c.l.b16 %v171
    %v737 = vunpack.c.h.b16 %v171
    %v738 = vunpack.c.l.b16 %v172
    %v739 = vunpack.c.h.b16 %v172
    %v740 = vunpack.c.l.b16 %v173
    %v741 = vunpack.c.h.b16 %v173
    %v742 = vunpack.c.l.b16 %v174
    %v743 = vunpack.c.h.b16 %v174
    %v744 = vunpack.c.l.b16 %v175
    %v745 = vunpack.c.h.b16 %v175
    %v746 = vunpack.c.l.b16 %v176
    %v747 = vunpack.c.h.b16 %v176
    %v748 = vunpack.c.l.b16 %v177
    %v749 = vunpack.c.h.b16 %v177
    %v750 = vunpack.c.l.b16 %v178
    %v751 = vunpack.c.h.b16 %v178
    %v752 = vunpack.c.l.b16 %v179
    %v753 = vunpack.c.h.b16 %v179
    %v754 = vunpack.c.l.b16 %v180
    %v755 = vunpack.c.h.b16 %v180
    %v756 = vunpack.c.l.b16 %v181
    %v757 = vunpack.c.h.b16 %v181
    %v758 = vunpack.c.l.b16 %v182
    %v759 = vunpack.c.h.b16 %v182
    %v760 = vunpack.c.l.b16 %v183
    %v761 = vunpack.c.h.b16 %v183
    %v762 = vunpack.c.l.b16 %v184
    %v763 = vunpack.c.h.b16 %v184
    %v764 = vunpack.c.l.b16 %v185
    %v765 = vunpack.c.h.b16 %v185
    %v766 = vunpack.c.l.b16 %v186
    %v767 = vunpack.c.h.b16 %v186
    %v768 = vunpack.c.l.b16 %v187
    %v769 = vunpack.c.h.b16 %v187
    %v770 = vunpack.c.l.b16 %v188
    %v771 = vunpack.c.h.b16 %v188
    %v772 = vunpack.c.l.b16 %v189
    %v773 = vunpack.c.h.b16 %v189
    %v774 = vunpack.c.l.b16 %v190
    %v775 = vunpack.c.h.b16 %v190
    %v776 = vunpack.c.l.b16 %v191
    %v777 = vunpack.c.h.b16 %v191
    %v778 = vunpack.c.l.b16 %v192
    %v779 = vunpack.c.h.b16 %v192
    %v780 = vunpack.c.l.b16 %v193
    %v781 = vunpack.c.h.b16 %v193
    %v782 = vunpack.c.l.b16 %v194
    %v783 = vunpack.c.h.b16 %v194
    %v784 = vunpack.c.l.b16 %v195
    %v785 = vunpack.c.h.b16 %v195
    %v786 = vunpack.c.l.b16 %v196
    %v787 = vunpack.c.h.b16 %v196
    %v788 = vunpack.c.l.b16 %v197
    %v789 = vunpack.c.h.b16 %v197
    %v790 = vunpack.c.l.b16 %v198
    %v791 = vunpack.c.h.b16 %v198
    %v792 = vunpack.c.l.b16 %v199
    %v793 = vunpack.c.h.b16 %v199
    %v794 = vunpack.c.l.b16 %v200
    %v795 = vunpack.c.h.b16 %v200
    %v796 = vunpack.c.l.b16 %v201
    %v797 = vunpack.c.h.b16 %v201
    %v798 = vunpack.c.l.b16 %v202
    %v799 = vunpack.c.h.b16 %v202
    %v800 = vunpack.c.l.b16 %v203
    %v801 = vunpack.c.h.b16 %v203
    %v802 = vunpack.c.l.b16 %v204
    %v803 = vunpack.c.h.b16 %v204
    %v804 = vunpack.c.l.b16 %v205
    %v805 = vunpack.c.h.b16 %v205
    %v806 = vunpack.c.l.b16 %v206
    %v807 = vunpack.c.h.b16 %v206
    %v808 = vunpack.c.l.b16 %v207
    %v809 = vunpack.c.h.b16 %v207
    %v810 = vunpack.c.l.b16 %v208
    %v811 = vunpack.c.h.b16 %v208
    %v812 = vunpack.c.l.b16 %v209
    %v813 = vunpack.c.h.b16 %v209
    %v814 = vunpack.c.l.b16 %v210
    %v815 = vunpack.c.h.b16 %v210
    %v816 = vunpack.c.l.b16 %v211
    %v817 = vunpack.c.h.b16 %v211
    %v818 = vunpack.c.l.b16 %v212
    %v819 = vunpack.c.h.b16 %v212
    %v820 = vunpack.c.l.b16 %v213
    %v821 = vunpack.c.h.b16 %v213
    %v822 = vunpack.c.l.b16 %v214
    %v823 = vunpack.c.h.b16 %v214
    %v824 = vunpack.c.l.b16 %v215
    %v825 = vunpack.c.h.b16 %v215
    %v826 = vunpack.c.l.b16 %v216
    %v827 = vunpack.c.h.b16 %v216
    %v828 = vunpack.c.l.b16 %v217
    %v829 = vunpack.c.h.b16 %v217
    %v830 = vunpack.c.l.b16 %v218
    %v831 = vunpack.c.h.b16 %v218
    %v832 = vunpack.c.l.b16 %v219
    %v833 = vunpack.c.h.b16 %v219
    %v834 = vunpack.c.l.b16 %v220
    %v835 = vunpack.c.h.b16 %v220
    %v836 = vunpack.c.l.b16 %v221
    %v837 = vunpack.c.h.b16 %v221
    %v838 = vunpack.c.l.b16 %v222
    %v839 = vunpack.c.h.b16 %v222
    %v840 = vunpack.c.l.b16 %v223
    %v841 = vunpack.c.h.b16 %v223
    %v842 = vunpack.c.l.b16 %v224
    %v843 = vunpack.c.h.b16 %v224
    %v844 = vunpack.c.l.b16 %v225
    %v845 = vunpack.c.h.b16 %v225
    %v846 = vunpack.c.l.b16 %v226
    %v847 = vunpack.c.h.b16 %v226
    %v848 = vunpack.c.l.b16 %v227
    %v849 = vunpack.c.h.b16 %v227
    %v850 = vunpack.c.l.b16 %v228
    %v851 = vunpack.c.h.b16 %v228
    %v852 = vunpack.c.l.b16 %v229
    %v853 = vunpack.c.h.b16 %v229
    %v854 = vunpack.c.l.b16 %v230
    %v855 = vunpack.c.h.b16 %v230
    %v856 = vunpack.c.l.b16 %v231
    %v857 = vunpack.c.h.b16 %v231
    %v858 = vunpack.c.l.b16 %v232
    %v859 = vunpack.c.h.b16 %v232
    %v860 = vunpack.c.l.b16 %v233
    %v861 = vunpack.c.h.b16 %v233
    %v862 = vunpack.c.l.b16 %v234
    %v863 = vunpack.c.h.b16 %v234
    %v864 = vunpack.c.l.b16 %v235
    %v865 = vunpack.c.h.b16 %v235
    %v866 = vunpack.c.l.b16 %v236
    %v867 = vunpack.c.h.b16 %v236
    %v868 = vunpack.c.l.b16 %v237
    %v869 = vunpack.c.h.b16 %v237
    %v870 = vunpack.c.l.b16 %v238
    %v871 = vunpack.c.h.b16 %v238
    %v872 = vunpack.c.l.b16 %v239
    %v873 = vunpack.c.h.b16 %v239
    %v874 = vunpack.c.l.b16 %v240
    %v875 = vunpack.c.h.b16 %v240
    %v876 = vunpack.c.l.b16 %v241
    %v877 = vunpack.c.h.b16 %v241
    %v878 = vunpack.c.l.b16 %v242
    %v879 = vunpack.c.h.b16 %v242
    %v880 = vunpack.c.l.b16 %v243
    %v881 = vunpack.c.h.b16 %v243
    %v882 = vunpack.c.l.b16 %v244
    %v883 = vunpack.c.h.b16 %v244
    %v884 = vunpack.c.l.b16 %v245
    %v885 = vunpack.c.h.b16 %v245
    %v886 = vunpack.c.l.b16 %v246
    %v887 = vunpack.c.h.b16 %v246
    %v888 = vunpack.c.l.b16 %v247
    %v889 = vunpack.c.h.b16 %v247
    %v890 = vunpack.c.l.b16 %v248
    %v891 = vunpack.c.h.b16 %v248
    %v892 = vunpack.c.l.b16 %v249
    %v893 = vunpack.c.h.b16 %v249
    %v894 = vunpack.c.l.b16 %v250
    %v895 = vunpack.c.h.b16 %v250
    %v896 = vunpack.c.l.b16 %v251
    %v897 = vunpack.c.h.b16 %v251
    %v898 = vunpack.c.l.b16 %v252
    %v899 = vunpack.c.h.b16 %v252
    %v900 = vunpack.c.l.b16 %v253
    %v901 = vunpack.c.h.b16 %v253
    %v902 = vunpack.c.l.b16 %v254
    %v903 = vunpack.c.h.b16 %v254
    %v904 = vunpack.c.l.b16 %v255
    %v905 = vunpack.c.h.b16 %v255
    %v906 = vunpack.c.l.b16 %v256
    %v907 = vunpack.c.h.b16 %v256
    %v908 = vunpack.c.l.b16 %v257
    %v909 = vunpack.c.h.b16 %v257
    %v910 = vunpack.c.l.b16 %v258
    %v911 = vunpack.c.h.b16 %v258
    %v912 = vunpack.c.l.b16 %v259
    %v913 = vunpack.c.h.b16 %v259
    %v914 = vunpack.c.l.b16 %v260
    %v915 = vunpack.c.h.b16 %v260
    %v916 = vunpack.c.l.b16 %v261
    %v917 = vunpack.c.h.b16 %v261
    %v918 = vunpack.c.l.b16 %v262
    %v919 = vunpack.c.h.b16 %v262
    %v920 = vunpack.c.l.b16 %v263
    %v921 = vunpack.c.h.b16 %v263
    %v922 = vunpack.c.l.b16 %v264
    %v923 = vunpack.c.h.b16 %v264
    %v924 = vunpack.c.l.b16 %v265
    %v925 = vunpack.c.h.b16 %v265
    %v926 = vunpack.c.l.b16 %v266
    %v927 = vunpack.c.h.b16 %v266
    %v928 = vunpack.c.l.b16 %v267
    %v929 = vunpack.c.h.b16 %v267
    %v930 = vunpack.c.l.b16 %v268
    %v931 = vunpack.c.h.b16 %v268
    %v932 = vunpack.c.l.b16 %v269
    %v933 = vunpack.c.h.b16 %v269
    %v934 = vunpack.c.l.b16 %v270
    %v935 = vunpack.c.h.b16 %v270
    %v936 = vunpack.c.l.b16 %v271
    %v937 = vunpack.c.h.b16 %v271
    %v938 = vunpack.c.l.b16 %v272
    %v939 = vunpack.c.h.b16 %v272
    %v940 = vunpack.c.l.b16 %v273
    %v941 = vunpack.c.h.b16 %v273
    %v942 = vunpack.c.l.b16 %v274
    %v943 = vunpack.c.h.b16 %v274
    %v944 = vunpack.c.l.b16 %v275
    %v945 = vunpack.c.h.b16 %v275
    %v946 = vunpack.c.l.b16 %v276
    %v947 = vunpack.c.h.b16 %v276
    %v948 = vunpack.c.l.b16 %v277
    %v949 = vunpack.c.h.b16 %v277
    %v950 = vunpack.c.l.b16 %v278
    %v951 = vunpack.c.h.b16 %v278
    %v952 = vunpack.c.l.b16 %v279
    %v953 = vunpack.c.h.b16 %v279
    %v954 = vunpack.c.l.b16 %v280
    %v955 = vunpack.c.h.b16 %v280
    %v956 = vunpack.c.l.b16 %v281
    %v957 = vunpack.c.h.b16 %v281
    %v958 = vunpack.c.l.b16 %v282
    %v959 = vunpack.c.h.b16 %v282
    %v960 = vunpack.c.l.b16 %v283
    %v961 = vunpack.c.h.b16 %v283
    %v962 = vunpack.c.l.b16 %v284
    %v963 = vunpack.c.h.b16 %v284
    %v964 = vunpack.c.l.b16 %v285
    %v965 = vunpack.c.h.b16 %v285
    %v966 = vunpack.c.l.b16 %v286
    %v967 = vunpack.c.h.b16 %v286
    %v968 = vunpack.c.l.b16 %v287
    %v969 = vunpack.c.h.b16 %v287
    %v970 = vunpack.c.l.b16 %v288
    %v971 = vunpack.c.h.b16 %v288
    %v972 = vunpack.c.l.b16 %v289
    %v973 = vunpack.c.h.b16 %v289
    %v974 = vunpack.c.l.b16 %v290
    %v975 = vunpack.c.h.b16 %v290
    %v976 = vunpack.c.l.b16 %v291
    %v977 = vunpack.c.h.b16 %v291
    %v978 = vunpack.c.l.b16 %v292
    %v979 = vunpack.c.h.b16 %v292
    %v980 = vunpack.c.l.b16 %v293
    %v981 = vunpack.c.h.b16 %v293
    %v982 = vunpack.c.l.b16 %v294
    %v983 = vunpack.c.h.b16 %v294
    %v984 = vunpack.c.l.b16 %v295
    %v985 = vunpack.c.h.b16 %v295
    %v986 = vunpack.c.l.b16 %v296
    %v987 = vunpack.c.h.b16 %v296
    %v988 = vunpack.c.l.b16 %v297
    %v989 = vunpack.c.h.b16 %v297
    %v990 = vunpack.c.l.b16 %v298
    %v991 = vunpack.c.h.b16 %v298
    %v992 = vunpack.c.l.b16 %v299
    %v993 = vunpack.c.h.b16 %v299
    %v994 = vunpack.c.l.b16 %v300
    %v995 = vunpack.c.h.b16 %v300
    %v996 = vunpack.c.l.b16 %v301
    %v997 = vunpack.c.h.b16 %v301
    %v998 = vunpack.c.l.b16 %v302
    %v999 = vunpack.c.h.b16 %v302
    %v1000 = vunpack.c.l.b16 %v303
    %v1001 = vunpack.c.h.b16 %v303
    %v1002 = vunpack.c.l.b16 %v304
    %v1003 = vunpack.c.h.b16 %v304
    %v1004 = vunpack.c.l.b16 %v305
    %v1005 = vunpack.c.h.b16 %v305
    %v1006 = vunpack.c.l.b16 %v306
    %v1007 = vunpack.c.h.b16 %v306
    %v1008 = vunpack.c.l.b16 %v307
    %v1009 = vunpack.c.h.b16 %v307
    %v1010 = vunpack.c.l.b16 %v308
    %v1011 = vunpack.c.h.b16 %v308
    %v1012 = vunpack.c.l.b16 %v309
    %v1013 = vunpack.c.h.b16 %v309
    %v1014 = vunpack.c.l.b16 %v310
    %v1015 = vunpack.c.h.b16 %v310
    %v1016 = vunpack.c.l.b16 %v311
    %v1017 = vunpack.c.h.b16 %v311
    %v1018 = vunpack.c.l.b16 %v312
    %v1019 = vunpack.c.h.b16 %v312
    %v1020 = vunpack.c.l.b16 %v313
    %v1021 = vunpack.c.h.b16 %v313
    %v1022 = vunpack.c.l.b16 %v314
    %v1023 = vunpack.c.h.b16 %v314
    %v1024 = vunpack.c.l.b16 %v315
    %v1025 = vunpack.c.h.b16 %v315
    %v1026 = vunpack.c.l.b16 %v316
    %v1027 = vunpack.c.h.b16 %v316
    %v1028 = vunpack.c.l.b16 %v317
    %v1029 = vunpack.c.h.b16 %v317
    %v1030 = vunpack.c.l.b16 %v318
    %v1031 = vunpack.c.h.b16 %v318
    %v1032 = vunpack.c.l.b16 %v319
    %v1033 = vunpack.c.h.b16 %v319
    %v1034 = vunpack.c.l.b16 %v320
    %v1035 = vunpack.c.h.b16 %v320
    %v1036 = vunpack.c.l.b16 %v321
    %v1037 = vunpack.c.h.b16 %v321
    %v1038 = vunpack.c.l.b16 %v322
    %v1039 = vunpack.c.h.b16 %v322
    %v1040 = vunpack.c.l.b16 %v323
    %v1041 = vunpack.c.h.b16 %v323
    %v1042 = vunpack.c.l.b16 %v324
    %v1043 = vunpack.c.h.b16 %v324
    %v1044 = vunpack.c.l.b16 %v325
    %v1045 = vunpack.c.h.b16 %v325
    %v1046 = vunpack.c.l.b16 %v326
    %v1047 = vunpack.c.h.b16 %v326
    %v1048 = vunpack.c.l.b16 %v327
    %v1049 = vunpack.c.h.b16 %v327
    %v1050 = vunpack.c.l.b16 %v328
    %v1051 = vunpack.c.h.b16 %v328
    %v1052 = vunpack.c.l.b16 %v329
    %v1053 = vunpack.c.h.b16 %v329
    %v1054 = vunpack.c.l.b16 %v330
    %v1055 = vunpack.c.h.b16 %v330
    %v1056 = vunpack.c.l.b16 %v331
    %v1057 = vunpack.c.h.b16 %v331
    %v1058 = vunpack.c.l.b16 %v332
    %v1059 = vunpack.c.h.b16 %v332
    %v1060 = vunpack.c.l.b16 %v333
    %v1061 = vunpack.c.h.b16 %v333
    %v1062 = vunpack.c.l.b16 %v334
    %v1063 = vunpack.c.h.b16 %v334
    %v1064 = vunpack.c.l.b16 %v335
    %v1065 = vunpack.c.h.b16 %v335
    %v1066 = vunpack.c.l.b16 %v336
    %v1067 = vunpack.c.h.b16 %v336
    %v1068 = vunpack.c.l.b16 %v337
    %v1069 = vunpack.c.h.b16 %v337
    %v1070 = vunpack.c.l.b16 %v338
    %v1071 = vunpack.c.h.b16 %v338
    %v1072 = vunpack.c.l.b16 %v339
    %v1073 = vunpack.c.h.b16 %v339
    %v1074 = vunpack.c.l.b16 %v340
    %v1075 = vunpack.c.h.b16 %v340
    %v1076 = vunpack.c.l.b16 %v341
    %v1077 = vunpack.c.h.b16 %v341
    %v1078 = vunpack.c.l.b16 %v342
    %v1079 = vunpack.c.h.b16 %v342
    %v1080 = vunpack.c.l.b16 %v343
    %v1081 = vunpack.c.h.b16 %v343
    %v1082 = vunpack.c.l.b16 %v344
    %v1083 = vunpack.c.h.b16 %v344
    %v1084 = vunpack.c.l.b16 %v345
    %v1085 = vunpack.c.h.b16 %v345
    %v1086 = vunpack.c.l.b16 %v346
    %v1087 = vunpack.c.h.b16 %v346
    %v1088 = vunpack.c.l.b16 %v347
    %v1089 = vunpack.c.h.b16 %v347
    %v1090 = vunpack.c.l.b16 %v348
    %v1091 = vunpack.c.h.b16 %v348
    %v1092 = vunpack.c.l.b16 %v349
    %v1093 = vunpack.c.h.b16 %v349
    %v1094 = vunpack.c.l.b16 %v350
    %v1095 = vunpack.c.h.b16 %v350
    %v1096 = vunpack.c.l.b16 %v351
    %v1097 = vunpack.c.h.b16 %v351
    %v1098 = vunpack.c.l.b16 %v352
    %v1099 = vunpack.c.h.b16 %v352
    %v1100 = vunpack.c.l.b16 %v353
    %v1101 = vunpack.c.h.b16 %v353
    %v1102 = vunpack.c.l.b16 %v354
    %v1103 = vunpack.c.h.b16 %v354
    %v1104 = vunpack.c.l.b16 %v355
    %v1105 = vunpack.c.h.b16 %v355
    %v1106 = vunpack.c.l.b16 %v356
    %v1107 = vunpack.c.h.b16 %v356
    %v1108 = vunpack.c.l.b16 %v357
    %v1109 = vunpack.c.h.b16 %v357
    %v1110 = vunpack.c.l.b16 %v358
    %v1111 = vunpack.c.h.b16 %v358
    %v1112 = vunpack.c.l.b16 %v359
    %v1113 = vunpack.c.h.b16 %v359
    %v1114 = vunpack.c.l.b16 %v360
    %v1115 = vunpack.c.h.b16 %v360
    %v1116 = vunpack.c.l.b16 %v361
    %v1117 = vunpack.c.h.b16 %v361
    %v1118 = vunpack.c.l.b16 %v362
    %v1119 = vunpack.c.h.b16 %v362
    %v1120 = vunpack.c.l.b16 %v363
    %v1121 = vunpack.c.h.b16 %v363
    %v1122 = vunpack.c.l.b16 %v364
    %v1123 = vunpack.c.h.b16 %v364
    %v1124 = vunpack.c.l.b16 %v365
    %v1125 = vunpack.c.h.b16 %v365
    %v1126 = vunpack.c.l.b16 %v366
    %v1127 = vunpack.c.h.b16 %v366
    %v1128 = vunpack.c.l.b16 %v367
    %v1129 = vunpack.c.h.b16 %v367
    %v1130 = vunpack.c.l.b16 %v368
    %v1131 = vunpack.c.h.b16 %v368
    %v1132 = vunpack.c.l.b16 %v369
    %v1133 = vunpack.c.h.b16 %v369
    %v1134 = vunpack.c.l.b16 %v370
    %v1135 = vunpack.c.h.b16 %v370
    %v1136 = vunpack.c.l.b16 %v371
    %v1137 = vunpack.c.h.b16 %v371
    %v1138 = vunpack.c.l.b16 %v372
    %v1139 = vunpack.c.h.b16 %v372
    %v1140 = vunpack.c.l.b16 %v373
    %v1141 = vunpack.c.h.b16 %v373
    %v1142 = vunpack.c.l.b16 %v374
    %v1143 = vunpack.c.h.b16 %v374
    %v1144 = vunpack.c.l.b16 %v375
    %v1145 = vunpack.c.h.b16 %v375
    %v1146 = vunpack.c.l.b16 %v376
    %v1147 = vunpack.c.h.b16 %v376
    %v1148 = vunpack.c.l.b16 %v377
    %v1149 = vunpack.c.h.b16 %v377
    %v1150 = vunpack.c.l.b16 %v378
    %v1151 = vunpack.c.h.b16 %v378
    %v1152 = vunpack.c.l.b16 %v379
    %v1153 = vunpack.c.h.b16 %v379
    %v1154 = vunpack.c.l.b16 %v380
    %v1155 = vunpack.c.h.b16 %v380
    %v1156 = vunpack.c.l.b16 %v381
    %v1157 = vunpack.c.h.b16 %v381
    %v1158 = vunpack.c.l.b16 %v382
    %v1159 = vunpack.c.h.b16 %v382
    %v1160 = vunpack.c.l.b16 %v383
    %v1161 = vunpack.c.h.b16 %v383
    %v1162 = vpack.c.b16 %v654, %v650
    %v1163 = vpack.c.b16 %v655, %v651
    %v1164 = vpack.c.b16 %v656, %v652
    %v1165 = vpack.c.b16 %v657, %v653
    %v1166 = vpack.c.b16 %v662, %v658
    %v1167 = vpack.c.b16 %v663, %v659
    %v1168 = vpack.c.b16 %v664, %v660
    %v1169 = vpack.c.b16 %v665, %v661
    %v1170 = vpack.c.b16 %v670, %v666
    %v1171 = vpack.c.b16 %v671, %v667
    %v1172 = vpack.c.b16 %v672, %v668
    %v1173 = vpack.c.b16 %v673, %v669
    %v1174 = vpack.c.b16 %v678, %v674
    %v1175 = vpack.c.b16 %v679, %v675
    %v1176 = vpack.c.b16 %v680, %v676
    %v1177 = vpack.c.b16 %v681, %v677
    %v1178 = vpack.c.b16 %v686, %v682
    %v1179 = vpack.c.b16 %v687, %v683
    %v1180 = vpack.c.b16 %v688, %v684
    %v1181 = vpack.c.b16 %v689, %v685
    %v1182 = vpack.c.b16 %v694, %v690
    %v1183 = vpack.c.b16 %v695, %v691
    %v1184 = vpack.c.b16 %v696, %v692
    %v1185 = vpack.c.b16 %v697, %v693
    %v1186 = vpack.c.b16 %v702, %v698
    %v1187 = vpack.c.b16 %v703, %v699
    %v1188 = vpack.c.b16 %v704, %v700
    %v1189 = vpack.c.b16 %v705, %v701
    %v1190 = vpack.c.b16 %v710, %v706
    %v1191 = vpack.c.b16 %v711, %v707
    %v1192 = vpack.c.b16 %v712, %v708
    %v1193 = vpack.c.b16 %v713, %v709
    %v1194 = vpack.c.b16 %v718, %v714
    %v1195 = vpack.c.b16 %v719, %v715
    %v1196 = vpack.c.b16 %v720, %v716
    %v1197 = vpack.c.b16 %v721, %v717
    %v1198 = vpack.c.b16 %v726, %v722
    %v1199 = vpack.c.b16 %v727, %v723
    %v1200 = vpack.c.b16 %v728, %v724
    %v1201 = vpack.c.b16 %v729, %v725
    %v1202 = vpack.c.b16 %v734, %v730
    %v1203 = vpack.c.b16 %v735, %v731
    %v1204 = vpack.c.b16 %v736, %v732
    %v1205 = vpack.c.b16 %v737, %v733
    %v1206 = vpack.c.b16 %v742, %v738
    %v1207 = vpack.c.b16 %v743, %v739
    %v1208 = vpack.c.b16 %v744, %v740
    %v1209 = vpack.c.b16 %v745, %v741
    %v1210 = vpack.c.b16 %v750, %v746
    %v1211 = vpack.c.b16 %v751, %v747
    %v1212 = vpack.c.b16 %v752, %v748
    %v1213 = vpack.c.b16 %v753, %v749
    %v1214 = vpack.c.b16 %v758, %v754
    %v1215 = vpack.c.b16 %v759, %v755
    %v1216 = vpack.c.b16 %v760, %v756
    %v1217 = vpack.c.b16 %v761, %v757
    %v1218 = vpack.c.b16 %v766, %v762
    %v1219 = vpack.c.b16 %v767, %v763
    %v1220 = vpack.c.b16 %v768, %v764
    %v1221 = vpack.c.b16 %v769, %v765
    %v1222 = vpack.c.b16 %v774, %v770
    %v1223 = vpack.c.b16 %v775, %v771
    %v1224 = vpack.c.b16 %v776, %v772
    %v1225 = vpack.c.b16 %v777, %v773
    %v1226 = vpack.c.b16 %v782, %v778
    %v1227 = vpack.c.b16 %v783, %v779
    %v1228 = vpack.c.b16 %v784, %v780
    %v1229 = vpack.c.b16 %v785, %v781
    %v1230 = vpack.c.b16 %v790, %v786
    %v1231 = vpack.c.b16 %v791, %v787
    %v1232 = vpack.c.b16 %v792, %v788
    %v1233 = vpack.c.b16 %v793, %v789
    %v1234 = vpack.c.b16 %v798, %v794
    %v1235 = vpack.c.b16 %v799, %v795
    %v1236 = vpack.c.b16 %v800, %v796
    %v1237 = vpack.c.b16 %v801, %v797
    %v1238 = vpack.c.b16 %v806, %v802
    %v1239 = vpack.c.b16 %v807, %v803
    %v1240 = vpack.c.b16 %v808, %v804
    %v1241 = vpack.c.b16 %v809, %v805
    %v1242 = vpack.c.b16 %v814, %v810
    %v1243 = vpack.c.b16 %v815, %v811
    %v1244 = vpack.c.b16 %v816, %v812
    %v1245 = vpack.c.b16 %v817, %v813
    %v1246 = vpack.c.b16 %v822, %v818
    %v1247 = vpack.c.b16 %v823, %v819
    %v1248 = vpack.c.b16 %v824, %v820
    %v1249 = vpack.c.b16 %v825, %v821
    %v1250 = vpack.c.b16 %v830, %v826
    %v1251 = vpack.c.b16 %v831, %v827
    %v1252 = vpack.c.b16 %v832, %v828
    %v1253 = vpack.c.b16 %v833, %v829
    %v1254 = vpack.c.b16 %v838, %v834
    %v1255 = vpack.c.b16 %v839, %v835
    %v1256 = vpack.c.b16 %v840, %v836
    %v1257 = vpack.c.b16 %v841, %v837
    %v1258 = vpack.c.b16 %v846, %v842
    %v1259 = vpack.c.b16 %v847, %v843
    %v1260 = vpack.c.b16 %v848, %v844
    %v1261 = vpack.c.b16 %v849, %v845
    %v1262 = vpack.c.b16 %v854, %v850
    %v1263 = vpack.c.b16 %v855, %v851
    %v1264 = vpack.c.b16 %v856, %v852
    %v1265 = vpack.c.b16 %v857, %v853
    %v1266 = vpack.c.b16 %v862, %v858
    %v1267 = vpack.c.b16 %v863, %v859
    %v1268 = vpack.c.b16 %v864, %v860
    %v1269 = vpack.c.b16 %v865, %v861
    %v1270 = vpack.c.b16 %v870, %v866
    %v1271 = vpack.c.b16 %v871, %v867
    %v1272 = vpack.c.b16 %v872, %v868
    %v1273 = vpack.c.b16 %v873, %v869
    %v1274 = vpack.c.b16 %v878, %v874
    %v1275 = vpack.c.b16 %v879, %v875
    %v1276 = vpack.c.b16 %v880, %v876
    %v1277 = vpack.c.b16 %v881, %v877
    %v1278 = vpack.c.b16 %v886, %v882
    %v1279 = vpack.c.b16 %v887, %v883
    %v1280 = vpack.c.b16 %v888, %v884
    %v1281 = vpack.c.b16 %v889, %v885
    %v1282 = vpack.c.b16 %v894, %v890
    %v1283 = vpack.c.b16 %v895, %v891
    %v1284 = vpack.c.b16 %v896, %v892
    %v1285 = vpack.c.b16 %v897, %v893
    %v1286 = vpack.c.b16 %v902, %v898
    %v1287 = vpack.c.b16 %v903, %v899
    %v1288 = vpack.c.b16 %v904, %v900
    %v1289 = vpack.c.b16 %v905, %v901
    %v1290 = vpack.c.b16 %v910, %v906
    %v1291 = vpack.c.b16 %v911, %v907
    %v1292 = vpack.c.b16 %v912, %v908
    %v1293 = vpack.c.b16 %v913, %v909
    %v1294 = vpack.c.b16 %v918, %v914
    %v1295 = vpack.c.b16 %v919, %v915
    %v1296 = vpack.c.b16 %v920, %v916
    %v1297 = vpack.c.b16 %v921, %v917
    %v1298 = vpack.c.b16 %v926, %v922
    %v1299 = vpack.c.b16 %v927, %v923
    %v1300 = vpack.c.b16 %v928, %v924
    %v1301 = vpack.c.b16 %v929, %v925
    %v1302 = vpack.c.b16 %v934, %v930
    %v1303 = vpack.c.b16 %v935, %v931
    %v1304 = vpack.c.b16 %v936, %v932
    %v1305 = vpack.c.b16 %v937, %v933
    %v1306 = vpack.c.b16 %v942, %v938
    %v1307 = vpack.c.b16 %v943, %v939
    %v1308 = vpack.c.b16 %v944, %v940
    %v1309 = vpack.c.b16 %v945, %v941
    %v1310 = vpack.c.b16 %v950, %v946
    %v1311 = vpack.c.b16 %v951, %v947
    %v1312 = vpack.c.b16 %v952, %v948
    %v1313 = vpack.c.b16 %v953, %v949
    %v1314 = vpack.c.b16 %v958, %v954
    %v1315 = vpack.c.b16 %v959, %v955
    %v1316 = vpack.c.b16 %v960, %v956
    %v1317 = vpack.c.b16 %v961, %v957
    %v1318 = vpack.c.b16 %v966, %v962
    %v1319 = vpack.c.b16 %v967, %v963
    %v1320 = vpack.c.b16 %v968, %v964
    %v1321 = vpack.c.b16 %v969, %v965
    %v1322 = vpack.c.b16 %v974, %v970
    %v1323 = vpack.c.b16 %v975, %v971
    %v1324 = vpack.c.b16 %v976, %v972
    %v1325 = vpack.c.b16 %v977, %v973
    %v1326 = vpack.c.b16 %v982, %v978
    %v1327 = vpack.c.b16 %v983, %v979
    %v1328 = vpack.c.b16 %v984, %v980
    %v1329 = vpack.c.b16 %v985, %v981
    %v1330 = vpack.c.b16 %v990, %v986
    %v1331 = vpack.c.b16 %v991, %v987
    %v1332 = vpack.c.b16 %v992, %v988
    %v1333 = vpack.c.b16 %v993, %v989
    %v1334 = vpack.c.b16 %v998, %v994
    %v1335 = vpack.c.b16 %v999, %v995
    %v1336 = vpack.c.b16 %v1000, %v996
    %v1337 = vpack.c.b16 %v1001, %v997
    %v1338 = vpack.c.b16 %v1006, %v1002
    %v1339 = vpack.c.b16 %v1007, %v1003
    %v1340 = vpack.c.b16 %v1008, %v1004
    %v1341 = vpack.c.b16 %v1009, %v1005
    %v1342 = vpack.c.b16 %v1014, %v1010
    %v1343 = vpack.c.b16 %v1015, %v1011
    %v1344 = vpack.c.b16 %v1016, %v1012
    %v1345 = vpack.c.b16 %v1017, %v1013
    %v1346 = vpack.c.b16 %v1022, %v1018
    %v1347 = vpack.c.b16 %v1023, %v1019
    %v1348 = vpack.c.b16 %v1024, %v1020
    %v1349 = vpack.c.b16 %v1025, %v1021
    %v1350 = vpack.c.b16 %v1030, %v1026
    %v1351 = vpack.c.b16 %v1031, %v1027
    %v1352 = vpack.c.b16 %v1032, %v1028
    %v1353 = vpack.c.b16 %v1033, %v1029
    %v1354 = vpack.c.b16 %v1038, %v1034
    %v1355 = vpack.c.b16 %v1039, %v1035
    %v1356 = vpack.c.b16 %v1040, %v1036
    %v1357 = vpack.c.b16 %v1041, %v1037
    %v1358 = vpack.c.b16 %v1046, %v1042
    %v1359 = vpack.c.b16 %v1047, %v1043
    %v1360 = vpack.c.b16 %v1048, %v1044
    %v1361 = vpack.c.b16 %v1049, %v1045
    %v1362 = vpack.c.b16 %v1054, %v1050
    %v1363 = vpack.c.b16 %v1055, %v1051
    %v1364 = vpack.c.b16 %v1056, %v1052
    %v1365 = vpack.c.b16 %v1057, %v1053
    %v1366 = vpack.c.b16 %v1062, %v1058
    %v1367 = vpack.c.b16 %v1063, %v1059
    %v1368 = vpack.c.b16 %v1064, %v1060
    %v1369 = vpack.c.b16 %v1065, %v1061
    %v1370 = vpack.c.b16 %v1070, %v1066
    %v1371 = vpack.c.b16 %v1071, %v1067
    %v1372 = vpack.c.b16 %v1072, %v1068
    %v1373 = vpack.c.b16 %v1073, %v1069
    %v1374 = vpack.c.b16 %v1078, %v1074
    %v1375 = vpack.c.b16 %v1079, %v1075
    %v1376 = vpack.c.b16 %v1080, %v1076
    %v1377 = vpack.c.b16 %v1081, %v1077
    %v1378 = vpack.c.b16 %v1086, %v1082
    %v1379 = vpack.c.b16 %v1087, %v1083
    %v1380 = vpack.c.b16 %v1088, %v1084
    %v1381 = vpack.c.b16 %v1089, %v1085
    %v1382 = vpack.c.b16 %v1094, %v1090
    %v1383 = vpack.c.b16 %v1095, %v1091
    %v1384 = vpack.c.b16 %v1096, %v1092
    %v1385 = vpack.c.b16 %v1097, %v1093
    %v1386 = vpack.c.b16 %v1102, %v1098
    %v1387 = vpack.c.b16 %v1103, %v1099
    %v1388 = vpack.c.b16 %v1104, %v1100
    %v1389 = vpack.c.b16 %v1105, %v1101
    %v1390 = vpack.c.b16 %v1110, %v1106
    %v1391 = vpack.c.b16 %v1111, %v1107
    %v1392 = vpack.c.b16 %v1112, %v1108
    %v1393 = vpack.c.b16 %v1113, %v1109
    %v1394 = vpack.c.b16 %v1118, %v1114
    %v1395 = vpack.c.b16 %v1119, %v1115
    %v1396 = vpack.c.b16 %v1120, %v1116
    %v1397 = vpack.c.b16 %v1121, %v1117
    %v1398 = vpack.c.b16 %v1126, %v1122
    %v1399 = vpack.c.b16 %v1127, %v1123
    %v1400 = vpack.c.b16 %v1128, %v1124
    %v1401 = vpack.c.b16 %v1129, %v1125
    %v1402 = vpack.c.b16 %v1134, %v1130
    %v1403 = vpack.c.b16 %v1135, %v1131
    %v1404 = vpack.c.b16 %v1136, %v1132
    %v1405 = vpack.c.b16 %v1137, %v1133
    %v1406 = vpack.c.b16 %v1142, %v1138
    %v1407 = vpack.c.b16 %v1143, %v1139
    %v1408 = vpack.c.b16 %v1144, %v1140
    %v1409 = vpack.c.b16 %v1145, %v1141
    %v1410 = vpack.c.b16 %v1150, %v1146
    %v1411 = vpack.c.b16 %v1151, %v1147
    %v1412 = vpack.c.b16 %v1152, %v1148
    %v1413 = vpack.c.b16 %v1153, %v1149
    %v1414 = vpack.c.b16 %v1158, %v1154
    %v1415 = vpack.c.b16 %v1159, %v1155
    %v1416 = vpack.c.b16 %v1160, %v1156
    %v1417 = vpack.c.b16 %v1161, %v1157
    %1674 = vmatpush.bf16.msra.mxu0 %v1190
    %1675 = vmatpush.bf16.msra.mxu0 %v1186
    %1676 = vmatpush.bf16.msra.mxu0 %v1182
    %1677 = vmatpush.bf16.msra.mxu0 %v1178
    %1678 = vmatpush.bf16.msra.mxu0 %v1174
    %1679 = vmatpush.bf16.msra.mxu0 %v1170
    %1680 = vmatpush.bf16.msra.mxu0 %v1166
    %1681 = vmatpush.bf16.msra.mxu0 %v1162
    %1682 = vmatmul.bf16.gmra.mxu0 %v120
    %v1683 = vpop.f32.mrf.mxu0
    %v1684 = vadd.f32 %v386, %v1683
    %v1685 = vpop.f32.mrf.mxu0
    %1686 = vdwg.mxu0
    %1687 = vmatpush.bf16.msra.mxu0 %v1222
    %1688 = vmatpush.bf16.msra.mxu0 %v1218
    %1689 = vmatpush.bf16.msra.mxu0 %v1214
    %1690 = vmatpush.bf16.msra.mxu0 %v1210
    %1691 = vmatpush.bf16.msra.mxu0 %v1206
    %1692 = vmatpush.bf16.msra.mxu0 %v1202
    %1693 = vmatpush.bf16.msra.mxu0 %v1198
    %1694 = vmatpush.bf16.msra.mxu0 %v1194
    %1695 = vmatmul.bf16.gmra.mxu0 %v121
    %v1696 = vpop.f32.mrf.mxu0
    %v1697 = vadd.f32 %v1684, %v1696
    %v1698 = vpop.f32.mrf.mxu0
    %1699 = vdwg.mxu0
    %1700 = vmatpush.bf16.msra.mxu0 %v1254
    %1701 = vmatpush.bf16.msra.mxu0 %v1250
    %1702 = vmatpush.bf16.msra.mxu0 %v1246
    %1703 = vmatpush.bf16.msra.mxu0 %v1242
    %1704 = vmatpush.bf16.msra.mxu0 %v1238
    %1705 = vmatpush.bf16.msra.mxu0 %v1234
    %1706 = vmatpush.bf16.msra.mxu0 %v1230
    %1707 = vmatpush.bf16.msra.mxu0 %v1226
    %1708 = vmatmul.bf16.gmra.mxu0 %v122
    %v1709 = vpop.f32.mrf.mxu0
    %v1710 = vadd.f32 %v1697, %v1709
    %v1711 = vpop.f32.mrf.mxu0
    %1712 = vdwg.mxu0
    %1713 = vmatpush.bf16.msra.mxu0 %v1286
    %1714 = vmatpush.bf16.msra.mxu0 %v1282
    %1715 = vmatpush.bf16.msra.mxu0 %v1278
    %1716 = vmatpush.bf16.msra.mxu0 %v1274
    %1717 = vmatpush.bf16.msra.mxu0 %v1270
    %1718 = vmatpush.bf16.msra.mxu0 %v1266
    %1719 = vmatpush.bf16.msra.mxu0 %v1262
    %1720 = vmatpush.bf16.msra.mxu0 %v1258
    %1721 = vmatmul.bf16.gmra.mxu0 %v123
    %v1722 = vpop.f32.mrf.mxu0
    %v1723 = vadd.f32 %v1710, %v1722
    %v1724 = vpop.f32.mrf.mxu0
    %1725 = vdwg.mxu0
    %1726 = vmatpush.bf16.msra.mxu0 %v1318
    %1727 = vmatpush.bf16.msra.mxu0 %v1314
    %1728 = vmatpush.bf16.msra.mxu0 %v1310
    %1729 = vmatpush.bf16.msra.mxu0 %v1306
    %1730 = vmatpush.bf16.msra.mxu0 %v1302
    %1731 = vmatpush.bf16.msra.mxu0 %v1298
    %1732 = vmatpush.bf16.msra.mxu0 %v1294
    %1733 = vmatpush.bf16.msra.mxu0 %v1290
    %1734 = vmatmul.bf16.gmra.mxu0 %v124
    %v1735 = vpop.f32.mrf.mxu0
    %v1736 = vadd.f32 %v1723, %v1735
    %v1737 = vpop.f32.mrf.mxu0
    %1738 = vdwg.mxu0
    %1739 = vmatpush.bf16.msra.mxu0 %v1350
    %1740 = vmatpush.bf16.msra.mxu0 %v1346
    %1741 = vmatpush.bf16.msra.mxu0 %v1342
    %1742 = vmatpush.bf16.msra.mxu0 %v1338
    %1743 = vmatpush.bf16.msra.mxu0 %v1334
    %1744 = vmatpush.bf16.msra.mxu0 %v1330
    %1745 = vmatpush.bf16.msra.mxu0 %v1326
    %1746 = vmatpush.bf16.msra.mxu0 %v1322
    %1747 = vmatmul.bf16.gmra.mxu0 %v125
    %v1748 = vpop.f32.mrf.mxu0
    %v1749 = vadd.f32 %v1736, %v1748
    %v1750 = vpop.f32.mrf.mxu0
    %1751 = vdwg.mxu0
    %1752 = vmatpush.bf16.msra.mxu0 %v1382
    %1753 = vmatpush.bf16.msra.mxu0 %v1378
    %1754 = vmatpush.bf16.msra.mxu0 %v1374
    %1755 = vmatpush.bf16.msra.mxu0 %v1370
    %1756 = vmatpush.bf16.msra.mxu0 %v1366
    %1757 = vmatpush.bf16.msra.mxu0 %v1362
    %1758 = vmatpush.bf16.msra.mxu0 %v1358
    %1759 = vmatpush.bf16.msra.mxu0 %v1354
    %1760 = vmatmul.bf16.gmra.mxu0 %v126
    %v1761 = vpop.f32.mrf.mxu0
    %v1762 = vadd.f32 %v1749, %v1761
    %v1763 = vpop.f32.mrf.mxu0
    %1764 = vdwg.mxu0
    %1765 = vmatpush.bf16.msra.mxu0 %v1414
    %1766 = vmatpush.bf16.msra.mxu0 %v1410
    %1767 = vmatpush.bf16.msra.mxu0 %v1406
    %1768 = vmatpush.bf16.msra.mxu0 %v1402
    %1769 = vmatpush.bf16.msra.mxu0 %v1398
    %1770 = vmatpush.bf16.msra.mxu0 %v1394
    %1771 = vmatpush.bf16.msra.mxu0 %v1390
    %1772 = vmatpush.bf16.msra.mxu0 %v1386
    %1773 = vmatmul.bf16.gmra.mxu0 %v127
    %v1774 = vpop.f32.mrf.mxu0
    %v1775 = vadd.f32 %v1762, %v1774
    %v1776 = vpop.f32.mrf.mxu0
    %1777 = vdwg.mxu0
    %1778 = vmatpush.bf16.msra.mxu0 %v1191
    %1779 = vmatpush.bf16.msra.mxu0 %v1187
    %1780 = vmatpush.bf16.msra.mxu0 %v1183
    %1781 = vmatpush.bf16.msra.mxu0 %v1179
    %1782 = vmatpush.bf16.msra.mxu0 %v1175
    %1783 = vmatpush.bf16.msra.mxu0 %v1171
    %1784 = vmatpush.bf16.msra.mxu0 %v1167
    %1785 = vmatpush.bf16.msra.mxu0 %v1163
    %1786 = vmatmul.bf16.gmra.mxu0 %v120
    %v1787 = vpop.f32.mrf.mxu0
    %v1788 = vadd.f32 %v387, %v1787
    %v1789 = vpop.f32.mrf.mxu0
    %1790 = vdwg.mxu0
    %1791 = vmatpush.bf16.msra.mxu0 %v1223
    %1792 = vmatpush.bf16.msra.mxu0 %v1219
    %1793 = vmatpush.bf16.msra.mxu0 %v1215
    %1794 = vmatpush.bf16.msra.mxu0 %v1211
    %1795 = vmatpush.bf16.msra.mxu0 %v1207
    %1796 = vmatpush.bf16.msra.mxu0 %v1203
    %1797 = vmatpush.bf16.msra.mxu0 %v1199
    %1798 = vmatpush.bf16.msra.mxu0 %v1195
    %1799 = vmatmul.bf16.gmra.mxu0 %v121
    %v1800 = vpop.f32.mrf.mxu0
    %v1801 = vadd.f32 %v1788, %v1800
    %v1802 = vpop.f32.mrf.mxu0
    %1803 = vdwg.mxu0
    %1804 = vmatpush.bf16.msra.mxu0 %v1255
    %1805 = vmatpush.bf16.msra.mxu0 %v1251
    %1806 = vmatpush.bf16.msra.mxu0 %v1247
    %1807 = vmatpush.bf16.msra.mxu0 %v1243
    %1808 = vmatpush.bf16.msra.mxu0 %v1239
    %1809 = vmatpush.bf16.msra.mxu0 %v1235
    %1810 = vmatpush.bf16.msra.mxu0 %v1231
    %1811 = vmatpush.bf16.msra.mxu0 %v1227
    %1812 = vmatmul.bf16.gmra.mxu0 %v122
    %v1813 = vpop.f32.mrf.mxu0
    %v1814 = vadd.f32 %v1801, %v1813
    %v1815 = vpop.f32.mrf.mxu0
    %1816 = vdwg.mxu0
    %1817 = vmatpush.bf16.msra.mxu0 %v1287
    %1818 = vmatpush.bf16.msra.mxu0 %v1283
    %1819 = vmatpush.bf16.msra.mxu0 %v1279
    %1820 = vmatpush.bf16.msra.mxu0 %v1275
    %1821 = vmatpush.bf16.msra.mxu0 %v1271
    %1822 = vmatpush.bf16.msra.mxu0 %v1267
    %1823 = vmatpush.bf16.msra.mxu0 %v1263
    %1824 = vmatpush.bf16.msra.mxu0 %v1259
    %1825 = vmatmul.bf16.gmra.mxu0 %v123
    %v1826 = vpop.f32.mrf.mxu0
    %v1827 = vadd.f32 %v1814, %v1826
    %v1828 = vpop.f32.mrf.mxu0
    %1829 = vdwg.mxu0
    %1830 = vmatpush.bf16.msra.mxu0 %v1319
    %1831 = vmatpush.bf16.msra.mxu0 %v1315
    %1832 = vmatpush.bf16.msra.mxu0 %v1311
    %1833 = vmatpush.bf16.msra.mxu0 %v1307
    %1834 = vmatpush.bf16.msra.mxu0 %v1303
    %1835 = vmatpush.bf16.msra.mxu0 %v1299
    %1836 = vmatpush.bf16.msra.mxu0 %v1295
    %1837 = vmatpush.bf16.msra.mxu0 %v1291
    %1838 = vmatmul.bf16.gmra.mxu0 %v124
    %v1839 = vpop.f32.mrf.mxu0
    %v1840 = vadd.f32 %v1827, %v1839
    %v1841 = vpop.f32.mrf.mxu0
    %1842 = vdwg.mxu0
    %1843 = vmatpush.bf16.msra.mxu0 %v1351
    %1844 = vmatpush.bf16.msra.mxu0 %v1347
    %1845 = vmatpush.bf16.msra.mxu0 %v1343
    %1846 = vmatpush.bf16.msra.mxu0 %v1339
    %1847 = vmatpush.bf16.msra.mxu0 %v1335
    %1848 = vmatpush.bf16.msra.mxu0 %v1331
    %1849 = vmatpush.bf16.msra.mxu0 %v1327
    %1850 = vmatpush.bf16.msra.mxu0 %v1323
    %1851 = vmatmul.bf16.gmra.mxu0 %v125
    %v1852 = vpop.f32.mrf.mxu0
    %v1853 = vadd.f32 %v1840, %v1852
    %v1854 = vpop.f32.mrf.mxu0
    %1855 = vdwg.mxu0
    %1856 = vmatpush.bf16.msra.mxu0 %v1383
    %1857 = vmatpush.bf16.msra.mxu0 %v1379
    %1858 = vmatpush.bf16.msra.mxu0 %v1375
    %1859 = vmatpush.bf16.msra.mxu0 %v1371
    %1860 = vmatpush.bf16.msra.mxu0 %v1367
    %1861 = vmatpush.bf16.msra.mxu0 %v1363
    %1862 = vmatpush.bf16.msra.mxu0 %v1359
    %1863 = vmatpush.bf16.msra.mxu0 %v1355
    %1864 = vmatmul.bf16.gmra.mxu0 %v126
    %v1865 = vpop.f32.mrf.mxu0
    %v1866 = vadd.f32 %v1853, %v1865
    %v1867 = vpop.f32.mrf.mxu0
    %1868 = vdwg.mxu0
    %1869 = vmatpush.bf16.msra.mxu0 %v1415
    %1870 = vmatpush.bf16.msra.mxu0 %v1411
    %1871 = vmatpush.bf16.msra.mxu0 %v1407
    %1872 = vmatpush.bf16.msra.mxu0 %v1403
    %1873 = vmatpush.bf16.msra.mxu0 %v1399
    %1874 = vmatpush.bf16.msra.mxu0 %v1395
    %1875 = vmatpush.bf16.msra.mxu0 %v1391
    %1876 = vmatpush.bf16.msra.mxu0 %v1387
    %1877 = vmatmul.bf16.gmra.mxu0 %v127
    %v1878 = vpop.f32.mrf.mxu0
    %v1879 = vadd.f32 %v1866, %v1878
    %v1880 = vpop.f32.mrf.mxu0
    %1881 = vdwg.mxu0
    %1882 = vmatpush.bf16.msra.mxu0 %v1192
    %1883 = vmatpush.bf16.msra.mxu0 %v1188
    %1884 = vmatpush.bf16.msra.mxu0 %v1184
    %1885 = vmatpush.bf16.msra.mxu0 %v1180
    %1886 = vmatpush.bf16.msra.mxu0 %v1176
    %1887 = vmatpush.bf16.msra.mxu0 %v1172
    %1888 = vmatpush.bf16.msra.mxu0 %v1168
    %1889 = vmatpush.bf16.msra.mxu0 %v1164
    %1890 = vmatmul.bf16.gmra.mxu0 %v120
    %v1891 = vpop.f32.mrf.mxu0
    %v1892 = vadd.f32 %v388, %v1891
    %v1893 = vpop.f32.mrf.mxu0
    %1894 = vdwg.mxu0
    %1895 = vmatpush.bf16.msra.mxu0 %v1224
    %1896 = vmatpush.bf16.msra.mxu0 %v1220
    %1897 = vmatpush.bf16.msra.mxu0 %v1216
    %1898 = vmatpush.bf16.msra.mxu0 %v1212
    %1899 = vmatpush.bf16.msra.mxu0 %v1208
    %1900 = vmatpush.bf16.msra.mxu0 %v1204
    %1901 = vmatpush.bf16.msra.mxu0 %v1200
    %1902 = vmatpush.bf16.msra.mxu0 %v1196
    %1903 = vmatmul.bf16.gmra.mxu0 %v121
    %v1904 = vpop.f32.mrf.mxu0
    %v1905 = vadd.f32 %v1892, %v1904
    %v1906 = vpop.f32.mrf.mxu0
    %1907 = vdwg.mxu0
    %1908 = vmatpush.bf16.msra.mxu0 %v1256
    %1909 = vmatpush.bf16.msra.mxu0 %v1252
    %1910 = vmatpush.bf16.msra.mxu0 %v1248
    %1911 = vmatpush.bf16.msra.mxu0 %v1244
    %1912 = vmatpush.bf16.msra.mxu0 %v1240
    %1913 = vmatpush.bf16.msra.mxu0 %v1236
    %1914 = vmatpush.bf16.msra.mxu0 %v1232
    %1915 = vmatpush.bf16.msra.mxu0 %v1228
    %1916 = vmatmul.bf16.gmra.mxu0 %v122
    %v1917 = vpop.f32.mrf.mxu0
    %v1918 = vadd.f32 %v1905, %v1917
    %v1919 = vpop.f32.mrf.mxu0
    %1920 = vdwg.mxu0
    %1921 = vmatpush.bf16.msra.mxu0 %v1288
    %1922 = vmatpush.bf16.msra.mxu0 %v1284
    %1923 = vmatpush.bf16.msra.mxu0 %v1280
    %1924 = vmatpush.bf16.msra.mxu0 %v1276
    %1925 = vmatpush.bf16.msra.mxu0 %v1272
    %1926 = vmatpush.bf16.msra.mxu0 %v1268
    %1927 = vmatpush.bf16.msra.mxu0 %v1264
    %1928 = vmatpush.bf16.msra.mxu0 %v1260
    %1929 = vmatmul.bf16.gmra.mxu0 %v123
    %v1930 = vpop.f32.mrf.mxu0
    %v1931 = vadd.f32 %v1918, %v1930
    %v1932 = vpop.f32.mrf.mxu0
    %1933 = vdwg.mxu0
    %1934 = vmatpush.bf16.msra.mxu0 %v1320
    %1935 = vmatpush.bf16.msra.mxu0 %v1316
    %1936 = vmatpush.bf16.msra.mxu0 %v1312
    %1937 = vmatpush.bf16.msra.mxu0 %v1308
    %1938 = vmatpush.bf16.msra.mxu0 %v1304
    %1939 = vmatpush.bf16.msra.mxu0 %v1300
    %1940 = vmatpush.bf16.msra.mxu0 %v1296
    %1941 = vmatpush.bf16.msra.mxu0 %v1292
    %1942 = vmatmul.bf16.gmra.mxu0 %v124
    %v1943 = vpop.f32.mrf.mxu0
    %v1944 = vadd.f32 %v1931, %v1943
    %v1945 = vpop.f32.mrf.mxu0
    %1946 = vdwg.mxu0
    %1947 = vmatpush.bf16.msra.mxu0 %v1352
    %1948 = vmatpush.bf16.msra.mxu0 %v1348
    %1949 = vmatpush.bf16.msra.mxu0 %v1344
    %1950 = vmatpush.bf16.msra.mxu0 %v1340
    %1951 = vmatpush.bf16.msra.mxu0 %v1336
    %1952 = vmatpush.bf16.msra.mxu0 %v1332
    %1953 = vmatpush.bf16.msra.mxu0 %v1328
    %1954 = vmatpush.bf16.msra.mxu0 %v1324
    %1955 = vmatmul.bf16.gmra.mxu0 %v125
    %v1956 = vpop.f32.mrf.mxu0
    %v1957 = vadd.f32 %v1944, %v1956
    %v1958 = vpop.f32.mrf.mxu0
    %1959 = vdwg.mxu0
    %1960 = vmatpush.bf16.msra.mxu0 %v1384
    %1961 = vmatpush.bf16.msra.mxu0 %v1380
    %1962 = vmatpush.bf16.msra.mxu0 %v1376
    %1963 = vmatpush.bf16.msra.mxu0 %v1372
    %1964 = vmatpush.bf16.msra.mxu0 %v1368
    %1965 = vmatpush.bf16.msra.mxu0 %v1364
    %1966 = vmatpush.bf16.msra.mxu0 %v1360
    %1967 = vmatpush.bf16.msra.mxu0 %v1356
    %1968 = vmatmul.bf16.gmra.mxu0 %v126
    %v1969 = vpop.f32.mrf.mxu0
    %v1970 = vadd.f32 %v1957, %v1969
    %v1971 = vpop.f32.mrf.mxu0
    %1972 = vdwg.mxu0
    %1973 = vmatpush.bf16.msra.mxu0 %v1416
    %1974 = vmatpush.bf16.msra.mxu0 %v1412
    %1975 = vmatpush.bf16.msra.mxu0 %v1408
    %1976 = vmatpush.bf16.msra.mxu0 %v1404
    %1977 = vmatpush.bf16.msra.mxu0 %v1400
    %1978 = vmatpush.bf16.msra.mxu0 %v1396
    %1979 = vmatpush.bf16.msra.mxu0 %v1392
    %1980 = vmatpush.bf16.msra.mxu0 %v1388
    %1981 = vmatmul.bf16.gmra.mxu0 %v127
    %v1982 = vpop.f32.mrf.mxu0
    %v1983 = vadd.f32 %v1970, %v1982
    %v1984 = vpop.f32.mrf.mxu0
    %1985 = vdwg.mxu0
    %1986 = vmatpush.bf16.msra.mxu0 %v1193
    %1987 = vmatpush.bf16.msra.mxu0 %v1189
    %1988 = vmatpush.bf16.msra.mxu0 %v1185
    %1989 = vmatpush.bf16.msra.mxu0 %v1181
    %1990 = vmatpush.bf16.msra.mxu0 %v1177
    %1991 = vmatpush.bf16.msra.mxu0 %v1173
    %1992 = vmatpush.bf16.msra.mxu0 %v1169
    %1993 = vmatpush.bf16.msra.mxu0 %v1165
    %1994 = vmatmul.bf16.gmra.mxu0 %v120
    %v1995 = vpop.f32.mrf.mxu0
    %v1996 = vadd.f32 %v389, %v1995
    %v1997 = vpop.f32.mrf.mxu0
    %1998 = vdwg.mxu0
    %1999 = vmatpush.bf16.msra.mxu0 %v1225
    %2000 = vmatpush.bf16.msra.mxu0 %v1221
    %2001 = vmatpush.bf16.msra.mxu0 %v1217
    %2002 = vmatpush.bf16.msra.mxu0 %v1213
    %2003 = vmatpush.bf16.msra.mxu0 %v1209
    %2004 = vmatpush.bf16.msra.mxu0 %v1205
    %2005 = vmatpush.bf16.msra.mxu0 %v1201
    %2006 = vmatpush.bf16.msra.mxu0 %v1197
    %2007 = vmatmul.bf16.gmra.mxu0 %v121
    %v2008 = vpop.f32.mrf.mxu0
    %v2009 = vadd.f32 %v1996, %v2008
    %v2010 = vpop.f32.mrf.mxu0
    %2011 = vdwg.mxu0
    %2012 = vmatpush.bf16.msra.mxu0 %v1257
    %2013 = vmatpush.bf16.msra.mxu0 %v1253
    %2014 = vmatpush.bf16.msra.mxu0 %v1249
    %2015 = vmatpush.bf16.msra.mxu0 %v1245
    %2016 = vmatpush.bf16.msra.mxu0 %v1241
    %2017 = vmatpush.bf16.msra.mxu0 %v1237
    %2018 = vmatpush.bf16.msra.mxu0 %v1233
    %2019 = vmatpush.bf16.msra.mxu0 %v1229
    %2020 = vmatmul.bf16.gmra.mxu0 %v122
    %v2021 = vpop.f32.mrf.mxu0
    %v2022 = vadd.f32 %v2009, %v2021
    %v2023 = vpop.f32.mrf.mxu0
    %2024 = vdwg.mxu0
    %2025 = vmatpush.bf16.msra.mxu0 %v1289
    %2026 = vmatpush.bf16.msra.mxu0 %v1285
    %2027 = vmatpush.bf16.msra.mxu0 %v1281
    %2028 = vmatpush.bf16.msra.mxu0 %v1277
    %2029 = vmatpush.bf16.msra.mxu0 %v1273
    %2030 = vmatpush.bf16.msra.mxu0 %v1269
    %2031 = vmatpush.bf16.msra.mxu0 %v1265
    %2032 = vmatpush.bf16.msra.mxu0 %v1261
    %2033 = vmatmul.bf16.gmra.mxu0 %v123
    %v2034 = vpop.f32.mrf.mxu0
    %v2035 = vadd.f32 %v2022, %v2034
    %v2036 = vpop.f32.mrf.mxu0
    %2037 = vdwg.mxu0
    %2038 = vmatpush.bf16.msra.mxu0 %v1321
    %2039 = vmatpush.bf16.msra.mxu0 %v1317
    %2040 = vmatpush.bf16.msra.mxu0 %v1313
    %2041 = vmatpush.bf16.msra.mxu0 %v1309
    %2042 = vmatpush.bf16.msra.mxu0 %v1305
    %2043 = vmatpush.bf16.msra.mxu0 %v1301
    %2044 = vmatpush.bf16.msra.mxu0 %v1297
    %2045 = vmatpush.bf16.msra.mxu0 %v1293
    %2046 = vmatmul.bf16.gmra.mxu0 %v124
    %v2047 = vpop.f32.mrf.mxu0
    %v2048 = vadd.f32 %v2035, %v2047
    %v2049 = vpop.f32.mrf.mxu0
    %2050 = vdwg.mxu0
    %2051 = vmatpush.bf16.msra.mxu0 %v1353
    %2052 = vmatpush.bf16.msra.mxu0 %v1349
    %2053 = vmatpush.bf16.msra.mxu0 %v1345
    %2054 = vmatpush.bf16.msra.mxu0 %v1341
    %2055 = vmatpush.bf16.msra.mxu0 %v1337
    %2056 = vmatpush.bf16.msra.mxu0 %v1333
    %2057 = vmatpush.bf16.msra.mxu0 %v1329
    %2058 = vmatpush.bf16.msra.mxu0 %v1325
    %2059 = vmatmul.bf16.gmra.mxu0 %v125
    %v2060 = vpop.f32.mrf.mxu0
    %v2061 = vadd.f32 %v2048, %v2060
    %v2062 = vpop.f32.mrf.mxu0
    %2063 = vdwg.mxu0
    %2064 = vmatpush.bf16.msra.mxu0 %v1385
    %2065 = vmatpush.bf16.msra.mxu0 %v1381
    %2066 = vmatpush.bf16.msra.mxu0 %v1377
    %2067 = vmatpush.bf16.msra.mxu0 %v1373
    %2068 = vmatpush.bf16.msra.mxu0 %v1369
    %2069 = vmatpush.bf16.msra.mxu0 %v1365
    %2070 = vmatpush.bf16.msra.mxu0 %v1361
    %2071 = vmatpush.bf16.msra.mxu0 %v1357
    %2072 = vmatmul.bf16.gmra.mxu0 %v126
    %v2073 = vpop.f32.mrf.mxu0
    %v2074 = vadd.f32 %v2061, %v2073
    %v2075 = vpop.f32.mrf.mxu0
    %2076 = vdwg.mxu0
    %2077 = vmatpush.bf16.msra.mxu0 %v1417
    %2078 = vmatpush.bf16.msra.mxu0 %v1413
    %2079 = vmatpush.bf16.msra.mxu0 %v1409
    %2080 = vmatpush.bf16.msra.mxu0 %v1405
    %2081 = vmatpush.bf16.msra.mxu0 %v1401
    %2082 = vmatpush.bf16.msra.mxu0 %v1397
    %2083 = vmatpush.bf16.msra.mxu0 %v1393
    %2084 = vmatpush.bf16.msra.mxu0 %v1389
    %2085 = vmatmul.bf16.gmra.mxu0 %v127
    %v2086 = vpop.f32.mrf.mxu0
    %v2087 = vadd.f32 %v2074, %v2086
    %v2088 = vpop.f32.mrf.mxu0
    %2089 = vdwg.mxu0
    %v2090 = vmax.f32 %v1775, 0.0
    %v2091 = vmax.f32 %v1879, 0.0
    %v2092 = vmax.f32 %v1983, 0.0
    %v2093 = vmax.f32 %v2087, 0.0
    %v2094 = vpack.c.bf16 %v2090, %v2090
    %v2095 = vpack.c.bf16 %v2091, %v2091
    %v2096 = vpack.c.bf16 %v2092, %v2092
    %v2097 = vpack.c.bf16 %v2093, %v2093
    %v2098 = vld [vmem:[#allocation4] sm:$0xff]
    %v2099 = vld [vmem:[#allocation4 + $0x8] sm:$0xff]
    %v2100 = vld [vmem:[#allocation4 + $0x10] sm:$0xff]
    %v2101 = vld [vmem:[#allocation4 + $0x18] sm:$0xff]
    %v2102 = vld [vmem:[#allocation4 + $0x20] sm:$0xff]
    %v2103 = vld [vmem:[#allocation4 + $0x28] sm:$0xff]
    %v2104 = vld [vmem:[#allocation4 + $0x30] sm:$0xff]
    %v2105 = vld [vmem:[#allocation4 + $0x38] sm:$0xff]
    %v2106 = vld [vmem:[#allocation4 + $0x40] sm:$0xff]
    %v2107 = vld [vmem:[#allocation4 + $0x48] sm:$0xff]
    %v2108 = vld [vmem:[#allocation4 + $0x50] sm:$0xff]
    %v2109 = vld [vmem:[#allocation4 + $0x58] sm:$0xff]
    %v2110 = vld [vmem:[#allocation4 + $0x60] sm:$0xff]
    %v2111 = vld [vmem:[#allocation4 + $0x68] sm:$0xff]
    %v2112 = vld [vmem:[#allocation4 + $0x70] sm:$0xff]
    %v2113 = vld [vmem:[#allocation4 + $0x78] sm:$0xff]
    %v2114 = vld [vmem:[#allocation4 + $0x80] sm:$0xff]
    %v2115 = vld [vmem:[#allocation4 + $0x88] sm:$0xff]
    %v2116 = vld [vmem:[#allocation4 + $0x90] sm:$0xff]
    %v2117 = vld [vmem:[#allocation4 + $0x98] sm:$0xff]
    %v2118 = vld [vmem:[#allocation4 + $0xa0] sm:$0xff]
    %v2119 = vld [vmem:[#allocation4 + $0xa8] sm:$0xff]
    %v2120 = vld [vmem:[#allocation4 + $0xb0] sm:$0xff]
    %v2121 = vld [vmem:[#allocation4 + $0xb8] sm:$0xff]
    %v2122 = vld [vmem:[#allocation4 + $0xc0] sm:$0xff]
    %v2123 = vld [vmem:[#allocation4 + $0xc8] sm:$0xff]
    %v2124 = vld [vmem:[#allocation4 + $0xd0] sm:$0xff]
    %v2125 = vld [vmem:[#allocation4 + $0xd8] sm:$0xff]
    %v2126 = vld [vmem:[#allocation4 + $0xe0] sm:$0xff]
    %v2127 = vld [vmem:[#allocation4 + $0xe8] sm:$0xff]
    %v2128 = vld [vmem:[#allocation4 + $0xf0] sm:$0xff]
    %v2129 = vld [vmem:[#allocation4 + $0xf8] sm:$0xff]
    %v2130 = vld [vmem:[#allocation4 + $0x100] sm:$0xff]
    %v2131 = vld [vmem:[#allocation4 + $0x108] sm:$0xff]
    %v2132 = vld [vmem:[#allocation4 + $0x110] sm:$0xff]
    %v2133 = vld [vmem:[#allocation4 + $0x118] sm:$0xff]
    %v2134 = vld [vmem:[#allocation4 + $0x120] sm:$0xff]
    %v2135 = vld [vmem:[#allocation4 + $0x128] sm:$0xff]
    %v2136 = vld [vmem:[#allocation4 + $0x130] sm:$0xff]
    %v2137 = vld [vmem:[#allocation4 + $0x138] sm:$0xff]
    %v2138 = vld [vmem:[#allocation4 + $0x140] sm:$0xff]
    %v2139 = vld [vmem:[#allocation4 + $0x148] sm:$0xff]
    %v2140 = vld [vmem:[#allocation4 + $0x150] sm:$0xff]
    %v2141 = vld [vmem:[#allocation4 + $0x158] sm:$0xff]
    %v2142 = vld [vmem:[#allocation4 + $0x160] sm:$0xff]
    %v2143 = vld [vmem:[#allocation4 + $0x168] sm:$0xff]
    %v2144 = vld [vmem:[#allocation4 + $0x170] sm:$0xff]
    %v2145 = vld [vmem:[#allocation4 + $0x178] sm:$0xff]
    %v2146 = vld [vmem:[#allocation4 + $0x180] sm:$0xff]
    %v2147 = vld [vmem:[#allocation4 + $0x188] sm:$0xff]
    %v2148 = vld [vmem:[#allocation4 + $0x190] sm:$0xff]
    %v2149 = vld [vmem:[#allocation4 + $0x198] sm:$0xff]
    %v2150 = vld [vmem:[#allocation4 + $0x1a0] sm:$0xff]
    %v2151 = vld [vmem:[#allocation4 + $0x1a8] sm:$0xff]
    %v2152 = vld [vmem:[#allocation4 + $0x1b0] sm:$0xff]
    %v2153 = vld [vmem:[#allocation4 + $0x1b8] sm:$0xff]
    %v2154 = vld [vmem:[#allocation4 + $0x1c0] sm:$0xff]
    %v2155 = vld [vmem:[#allocation4 + $0x1c8] sm:$0xff]
    %v2156 = vld [vmem:[#allocation4 + $0x1d0] sm:$0xff]
    %v2157 = vld [vmem:[#allocation4 + $0x1d8] sm:$0xff]
    %v2158 = vld [vmem:[#allocation4 + $0x1e0] sm:$0xff]
    %v2159 = vld [vmem:[#allocation4 + $0x1e8] sm:$0xff]
    %v2160 = vld [vmem:[#allocation4 + $0x1f0] sm:$0xff]
    %v2161 = vld [vmem:[#allocation4 + $0x1f8] sm:$0xff]
    %v2162 = vld [vmem:[%s4] sm:$0x3]
    %v2164 = vperm.slane %v2162, 0
    %v2165 = vperm.slane %v2162, 1
    %v2232 = vunpack.c.l.b16 %v2098
    %v2233 = vunpack.c.h.b16 %v2098
    %v2234 = vunpack.c.l.b16 %v2099
    %v2235 = vunpack.c.h.b16 %v2099
    %v2236 = vunpack.c.l.b16 %v2100
    %v2237 = vunpack.c.h.b16 %v2100
    %v2238 = vunpack.c.l.b16 %v2101
    %v2239 = vunpack.c.h.b16 %v2101
    %v2240 = vunpack.c.l.b16 %v2102
    %v2241 = vunpack.c.h.b16 %v2102
    %v2242 = vunpack.c.l.b16 %v2103
    %v2243 = vunpack.c.h.b16 %v2103
    %v2244 = vunpack.c.l.b16 %v2104
    %v2245 = vunpack.c.h.b16 %v2104
    %v2246 = vunpack.c.l.b16 %v2105
    %v2247 = vunpack.c.h.b16 %v2105
    %v2248 = vunpack.c.l.b16 %v2106
    %v2249 = vunpack.c.h.b16 %v2106
    %v2250 = vunpack.c.l.b16 %v2107
    %v2251 = vunpack.c.h.b16 %v2107
    %v2252 = vunpack.c.l.b16 %v2108
    %v2253 = vunpack.c.h.b16 %v2108
    %v2254 = vunpack.c.l.b16 %v2109
    %v2255 = vunpack.c.h.b16 %v2109
    %v2256 = vunpack.c.l.b16 %v2110
    %v2257 = vunpack.c.h.b16 %v2110
    %v2258 = vunpack.c.l.b16 %v2111
    %v2259 = vunpack.c.h.b16 %v2111
    %v2260 = vunpack.c.l.b16 %v2112
    %v2261 = vunpack.c.h.b16 %v2112
    %v2262 = vunpack.c.l.b16 %v2113
    %v2263 = vunpack.c.h.b16 %v2113
    %v2264 = vunpack.c.l.b16 %v2114
    %v2265 = vunpack.c.h.b16 %v2114
    %v2266 = vunpack.c.l.b16 %v2115
    %v2267 = vunpack.c.h.b16 %v2115
    %v2268 = vunpack.c.l.b16 %v2116
    %v2269 = vunpack.c.h.b16 %v2116
    %v2270 = vunpack.c.l.b16 %v2117
    %v2271 = vunpack.c.h.b16 %v2117
    %v2272 = vunpack.c.l.b16 %v2118
    %v2273 = vunpack.c.h.b16 %v2118
    %v2274 = vunpack.c.l.b16 %v2119
    %v2275 = vunpack.c.h.b16 %v2119
    %v2276 = vunpack.c.l.b16 %v2120
    %v2277 = vunpack.c.h.b16 %v2120
    %v2278 = vunpack.c.l.b16 %v2121
    %v2279 = vunpack.c.h.b16 %v2121
    %v2280 = vunpack.c.l.b16 %v2122
    %v2281 = vunpack.c.h.b16 %v2122
    %v2282 = vunpack.c.l.b16 %v2123
    %v2283 = vunpack.c.h.b16 %v2123
    %v2284 = vunpack.c.l.b16 %v2124
    %v2285 = vunpack.c.h.b16 %v2124
    %v2286 = vunpack.c.l.b16 %v2125
    %v2287 = vunpack.c.h.b16 %v2125
    %v2288 = vunpack.c.l.b16 %v2126
    %v2289 = vunpack.c.h.b16 %v2126
    %v2290 = vunpack.c.l.b16 %v2127
    %v2291 = vunpack.c.h.b16 %v2127
    %v2292 = vunpack.c.l.b16 %v2128
    %v2293 = vunpack.c.h.b16 %v2128
    %v2294 = vunpack.c.l.b16 %v2129
    %v2295 = vunpack.c.h.b16 %v2129
    %v2296 = vunpack.c.l.b16 %v2130
    %v2297 = vunpack.c.h.b16 %v2130
    %v2298 = vunpack.c.l.b16 %v2131
    %v2299 = vunpack.c.h.b16 %v2131
    %v2300 = vunpack.c.l.b16 %v2132
    %v2301 = vunpack.c.h.b16 %v2132
    %v2302 = vunpack.c.l.b16 %v2133
    %v2303 = vunpack.c.h.b16 %v2133
    %v2304 = vunpack.c.l.b16 %v2134
    %v2305 = vunpack.c.h.b16 %v2134
    %v2306 = vunpack.c.l.b16 %v2135
    %v2307 = vunpack.c.h.b16 %v2135
    %v2308 = vunpack.c.l.b16 %v2136
    %v2309 = vunpack.c.h.b16 %v2136
    %v2310 = vunpack.c.l.b16 %v2137
    %v2311 = vunpack.c.h.b16 %v2137
    %v2312 = vunpack.c.l.b16 %v2138
    %v2313 = vunpack.c.h.b16 %v2138
    %v2314 = vunpack.c.l.b16 %v2139
    %v2315 = vunpack.c.h.b16 %v2139
    %v2316 = vunpack.c.l.b16 %v2140
    %v2317 = vunpack.c.h.b16 %v2140
    %v2318 = vunpack.c.l.b16 %v2141
    %v2319 = vunpack.c.h.b16 %v2141
    %v2320 = vunpack.c.l.b16 %v2142
    %v2321 = vunpack.c.h.b16 %v2142
    %v2322 = vunpack.c.l.b16 %v2143
    %v2323 = vunpack.c.h.b16 %v2143
    %v2324 = vunpack.c.l.b16 %v2144
    %v2325 = vunpack.c.h.b16 %v2144
    %v2326 = vunpack.c.l.b16 %v2145
    %v2327 = vunpack.c.h.b16 %v2145
    %v2328 = vunpack.c.l.b16 %v2146
    %v2329 = vunpack.c.h.b16 %v2146
    %v2330 = vunpack.c.l.b16 %v2147
    %v2331 = vunpack.c.h.b16 %v2147
    %v2332 = vunpack.c.l.b16 %v2148
    %v2333 = vunpack.c.h.b16 %v2148
    %v2334 = vunpack.c.l.b16 %v2149
    %v2335 = vunpack.c.h.b16 %v2149
    %v2336 = vunpack.c.l.b16 %v2150
    %v2337 = vunpack.c.h.b16 %v2150
    %v2338 = vunpack.c.l.b16 %v2151
    %v2339 = vunpack.c.h.b16 %v2151
    %v2340 = vunpack.c.l.b16 %v2152
    %v2341 = vunpack.c.h.b16 %v2152
    %v2342 = vunpack.c.l.b16 %v2153
    %v2343 = vunpack.c.h.b16 %v2153
    %v2344 = vunpack.c.l.b16 %v2154
    %v2345 = vunpack.c.h.b16 %v2154
    %v2346 = vunpack.c.l.b16 %v2155
    %v2347 = vunpack.c.h.b16 %v2155
    %v2348 = vunpack.c.l.b16 %v2156
    %v2349 = vunpack.c.h.b16 %v2156
    %v2350 = vunpack.c.l.b16 %v2157
    %v2351 = vunpack.c.h.b16 %v2157
    %v2352 = vunpack.c.l.b16 %v2158
    %v2353 = vunpack.c.h.b16 %v2158
    %v2354 = vunpack.c.l.b16 %v2159
    %v2355 = vunpack.c.h.b16 %v2159
    %v2356 = vunpack.c.l.b16 %v2160
    %v2357 = vunpack.c.h.b16 %v2160
    %v2358 = vunpack.c.l.b16 %v2161
    %v2359 = vunpack.c.h.b16 %v2161
    %v2360 = vpack.c.b16 %v2234, %v2232
    %v2361 = vpack.c.b16 %v2235, %v2233
    %v2362 = vpack.c.b16 %v2238, %v2236
    %v2363 = vpack.c.b16 %v2239, %v2237
    %v2364 = vpack.c.b16 %v2242, %v2240
    %v2365 = vpack.c.b16 %v2243, %v2241
    %v2366 = vpack.c.b16 %v2246, %v2244
    %v2367 = vpack.c.b16 %v2247, %v2245
    %v2368 = vpack.c.b16 %v2250, %v2248
    %v2369 = vpack.c.b16 %v2251, %v2249
    %v2370 = vpack.c.b16 %v2254, %v2252
    %v2371 = vpack.c.b16 %v2255, %v2253
    %v2372 = vpack.c.b16 %v2258, %v2256
    %v2373 = vpack.c.b16 %v2259, %v2257
    %v2374 = vpack.c.b16 %v2262, %v2260
    %v2375 = vpack.c.b16 %v2263, %v2261
    %v2376 = vpack.c.b16 %v2266, %v2264
    %v2377 = vpack.c.b16 %v2267, %v2265
    %v2378 = vpack.c.b16 %v2270, %v2268
    %v2379 = vpack.c.b16 %v2271, %v2269
    %v2380 = vpack.c.b16 %v2274, %v2272
    %v2381 = vpack.c.b16 %v2275, %v2273
    %v2382 = vpack.c.b16 %v2278, %v2276
    %v2383 = vpack.c.b16 %v2279, %v2277
    %v2384 = vpack.c.b16 %v2282, %v2280
    %v2385 = vpack.c.b16 %v2283, %v2281
    %v2386 = vpack.c.b16 %v2286, %v2284
    %v2387 = vpack.c.b16 %v2287, %v2285
    %v2388 = vpack.c.b16 %v2290, %v2288
    %v2389 = vpack.c.b16 %v2291, %v2289
    %v2390 = vpack.c.b16 %v2294, %v2292
    %v2391 = vpack.c.b16 %v2295, %v2293
    %v2392 = vpack.c.b16 %v2298, %v2296
    %v2393 = vpack.c.b16 %v2299, %v2297
    %v2394 = vpack.c.b16 %v2302, %v2300
    %v2395 = vpack.c.b16 %v2303, %v2301
    %v2396 = vpack.c.b16 %v2306, %v2304
    %v2397 = vpack.c.b16 %v2307, %v2305
    %v2398 = vpack.c.b16 %v2310, %v2308
    %v2399 = vpack.c.b16 %v2311, %v2309
    %v2400 = vpack.c.b16 %v2314, %v2312
    %v2401 = vpack.c.b16 %v2315, %v2313
    %v2402 = vpack.c.b16 %v2318, %v2316
    %v2403 = vpack.c.b16 %v2319, %v2317
    %v2404 = vpack.c.b16 %v2322, %v2320
    %v2405 = vpack.c.b16 %v2323, %v2321
    %v2406 = vpack.c.b16 %v2326, %v2324
    %v2407 = vpack.c.b16 %v2327, %v2325
    %v2408 = vpack.c.b16 %v2330, %v2328
    %v2409 = vpack.c.b16 %v2331, %v2329
    %v2410 = vpack.c.b16 %v2334, %v2332
    %v2411 = vpack.c.b16 %v2335, %v2333
    %v2412 = vpack.c.b16 %v2338, %v2336
    %v2413 = vpack.c.b16 %v2339, %v2337
    %v2414 = vpack.c.b16 %v2342, %v2340
    %v2415 = vpack.c.b16 %v2343, %v2341
    %v2416 = vpack.c.b16 %v2346, %v2344
    %v2417 = vpack.c.b16 %v2347, %v2345
    %v2418 = vpack.c.b16 %v2350, %v2348
    %v2419 = vpack.c.b16 %v2351, %v2349
    %v2420 = vpack.c.b16 %v2354, %v2352
    %v2421 = vpack.c.b16 %v2355, %v2353
    %v2422 = vpack.c.b16 %v2358, %v2356
    %v2423 = vpack.c.b16 %v2359, %v2357
    %2488 = vmatpush.bf16.msra.mxu0 %v2374
    %2489 = vmatpush.bf16.msra.mxu0 %v2372
    %2490 = vmatpush.bf16.msra.mxu0 %v2370
    %2491 = vmatpush.bf16.msra.mxu0 %v2368
    %2492 = vmatpush.bf16.msra.mxu0 %v2366
    %2493 = vmatpush.bf16.msra.mxu0 %v2364
    %2494 = vmatpush.bf16.msra.mxu0 %v2362
    %2495 = vmatpush.bf16.msra.mxu0 %v2360
    %2496 = vmatmul.bf16.gmra.mxu0 %v2094
    %v2497 = vpop.f32.mrf.mxu0
    %v2498 = vadd.f32 %v2164, %v2497
    %v2499 = vpop.f32.mrf.mxu0
    %2500 = vdwg.mxu0
    %2501 = vmatpush.bf16.msra.mxu0 %v2390
    %2502 = vmatpush.bf16.msra.mxu0 %v2388
    %2503 = vmatpush.bf16.msra.mxu0 %v2386
    %2504 = vmatpush.bf16.msra.mxu0 %v2384
    %2505 = vmatpush.bf16.msra.mxu0 %v2382
    %2506 = vmatpush.bf16.msra.mxu0 %v2380
    %2507 = vmatpush.bf16.msra.mxu0 %v2378
    %2508 = vmatpush.bf16.msra.mxu0 %v2376
    %2509 = vmatmul.bf16.gmra.mxu0 %v2095
    %v2510 = vpop.f32.mrf.mxu0
    %v2511 = vadd.f32 %v2498, %v2510
    %v2512 = vpop.f32.mrf.mxu0
    %2513 = vdwg.mxu0
    %2514 = vmatpush.bf16.msra.mxu0 %v2406
    %2515 = vmatpush.bf16.msra.mxu0 %v2404
    %2516 = vmatpush.bf16.msra.mxu0 %v2402
    %2517 = vmatpush.bf16.msra.mxu0 %v2400
    %2518 = vmatpush.bf16.msra.mxu0 %v2398
    %2519 = vmatpush.bf16.msra.mxu0 %v2396
    %2520 = vmatpush.bf16.msra.mxu0 %v2394
    %2521 = vmatpush.bf16.msra.mxu0 %v2392
    %2522 = vmatmul.bf16.gmra.mxu0 %v2096
    %v2523 = vpop.f32.mrf.mxu0
    %v2524 = vadd.f32 %v2511, %v2523
    %v2525 = vpop.f32.mrf.mxu0
    %2526 = vdwg.mxu0
    %2527 = vmatpush.bf16.msra.mxu0 %v2422
    %2528 = vmatpush.bf16.msra.mxu0 %v2420
    %2529 = vmatpush.bf16.msra.mxu0 %v2418
    %2530 = vmatpush.bf16.msra.mxu0 %v2416
    %2531 = vmatpush.bf16.msra.mxu0 %v2414
    %2532 = vmatpush.bf16.msra.mxu0 %v2412
    %2533 = vmatpush.bf16.msra.mxu0 %v2410
    %2534 = vmatpush.bf16.msra.mxu0 %v2408
    %2535 = vmatmul.bf16.gmra.mxu0 %v2097
    %v2536 = vpop.f32.mrf.mxu0
    %v2537 = vadd.f32 %v2524, %v2536
    %v2538 = vpop.f32.mrf.mxu0
    %2539 = vdwg.mxu0
    %2540 = vmatpush.bf16.msra.mxu0 %v2375
    %2541 = vmatpush.bf16.msra.mxu0 %v2373
    %2542 = vmatpush.bf16.msra.mxu0 %v2371
    %2543 = vmatpush.bf16.msra.mxu0 %v2369
    %2544 = vmatpush.bf16.msra.mxu0 %v2367
    %2545 = vmatpush.bf16.msra.mxu0 %v2365
    %2546 = vmatpush.bf16.msra.mxu0 %v2363
    %2547 = vmatpush.bf16.msra.mxu0 %v2361
    %2548 = vmatmul.bf16.gmra.mxu0 %v2094
    %v2549 = vpop.f32.mrf.mxu0
    %v2550 = vadd.f32 %v2165, %v2549
    %v2551 = vpop.f32.mrf.mxu0
    %2552 = vdwg.mxu0
    %2553 = vmatpush.bf16.msra.mxu0 %v2391
    %2554 = vmatpush.bf16.msra.mxu0 %v2389
    %2555 = vmatpush.bf16.msra.mxu0 %v2387
    %2556 = vmatpush.bf16.msra.mxu0 %v2385
    %2557 = vmatpush.bf16.msra.mxu0 %v2383
    %2558 = vmatpush.bf16.msra.mxu0 %v2381
    %2559 = vmatpush.bf16.msra.mxu0 %v2379
    %2560 = vmatpush.bf16.msra.mxu0 %v2377
    %2561 = vmatmul.bf16.gmra.mxu0 %v2095
    %v2562 = vpop.f32.mrf.mxu0
    %v2563 = vadd.f32 %v2550, %v2562
    %v2564 = vpop.f32.mrf.mxu0
    %2565 = vdwg.mxu0
    %2566 = vmatpush.bf16.msra.mxu0 %v2407
    %2567 = vmatpush.bf16.msra.mxu0 %v2405
    %2568 = vmatpush.bf16.msra.mxu0 %v2403
    %2569 = vmatpush.bf16.msra.mxu0 %v2401
    %2570 = vmatpush.bf16.msra.mxu0 %v2399
    %2571 = vmatpush.bf16.msra.mxu0 %v2397
    %2572 = vmatpush.bf16.msra.mxu0 %v2395
    %2573 = vmatpush.bf16.msra.mxu0 %v2393
    %2574 = vmatmul.bf16.gmra.mxu0 %v2096
    %v2575 = vpop.f32.mrf.mxu0
    %v2576 = vadd.f32 %v2563, %v2575
    %v2577 = vpop.f32.mrf.mxu0
    %2578 = vdwg.mxu0
    %2579 = vmatpush.bf16.msra.mxu0 %v2423
    %2580 = vmatpush.bf16.msra.mxu0 %v2421
    %2581 = vmatpush.bf16.msra.mxu0 %v2419
    %2582 = vmatpush.bf16.msra.mxu0 %v2417
    %2583 = vmatpush.bf16.msra.mxu0 %v2415
    %2584 = vmatpush.bf16.msra.mxu0 %v2413
    %2585 = vmatpush.bf16.msra.mxu0 %v2411
    %2586 = vmatpush.bf16.msra.mxu0 %v2409
    %2587 = vmatmul.bf16.gmra.mxu0 %v2097
    %v2588 = vpop.f32.mrf.mxu0
    %v2589 = vadd.f32 %v2576, %v2588
    %v2590 = vpop.f32.mrf.mxu0
    %2591 = vdwg.mxu0
    %v2592 = vmax.f32 %v2537, 0.0
    %v2593 = vmax.f32 %v2589, 0.0
    %v2594 = vpack.c.bf16 %v2592, %v2592
    %v2595 = vpack.c.bf16 %v2593, %v2593
    %v2596 = vld [vmem:[#allocation6] sm:$0xff]
    %v2597 = vld [vmem:[#allocation6 + $0x8] sm:$0xff]
    %v2598 = vld [vmem:[#allocation6 + $0x10] sm:$0xff]
    %v2599 = vld [vmem:[#allocation6 + $0x18] sm:$0xff]
    %v2600 = vld [vmem:[#allocation6 + $0x20] sm:$0xff]
    %v2601 = vld [vmem:[#allocation6 + $0x28] sm:$0xff]
    %v2602 = vld [vmem:[#allocation6 + $0x30] sm:$0xff]
    %v2603 = vld [vmem:[#allocation6 + $0x38] sm:$0xff]
    %v2604 = vld [vmem:[#allocation6 + $0x40] sm:$0xff]
    %v2605 = vld [vmem:[#allocation6 + $0x48] sm:$0xff]
    %v2606 = vld [vmem:[#allocation6 + $0x50] sm:$0xff]
    %v2607 = vld [vmem:[#allocation6 + $0x58] sm:$0xff]
    %v2608 = vld [vmem:[#allocation6 + $0x60] sm:$0xff]
    %v2609 = vld [vmem:[#allocation6 + $0x68] sm:$0xff]
    %v2610 = vld [vmem:[#allocation6 + $0x70] sm:$0xff]
    %v2611 = vld [vmem:[#allocation6 + $0x78] sm:$0xff]
    %v2612 = vld [vmem:[#allocation6 + $0x80] sm:$0xff]
    %v2613 = vld [vmem:[#allocation6 + $0x88] sm:$0xff]
    %v2614 = vld [vmem:[#allocation6 + $0x90] sm:$0xff]
    %v2615 = vld [vmem:[#allocation6 + $0x98] sm:$0xff]
    %v2616 = vld [vmem:[#allocation6 + $0xa0] sm:$0xff]
    %v2617 = vld [vmem:[#allocation6 + $0xa8] sm:$0xff]
    %v2618 = vld [vmem:[#allocation6 + $0xb0] sm:$0xff]
    %v2619 = vld [vmem:[#allocation6 + $0xb8] sm:$0xff]
    %v2620 = vld [vmem:[#allocation6 + $0xc0] sm:$0xff]
    %v2621 = vld [vmem:[#allocation6 + $0xc8] sm:$0xff]
    %v2622 = vld [vmem:[#allocation6 + $0xd0] sm:$0xff]
    %v2623 = vld [vmem:[#allocation6 + $0xd8] sm:$0xff]
    %v2624 = vld [vmem:[#allocation6 + $0xe0] sm:$0xff]
    %v2625 = vld [vmem:[#allocation6 + $0xe8] sm:$0xff]
    %v2626 = vld [vmem:[#allocation6 + $0xf0] sm:$0xff]
    %v2627 = vld [vmem:[#allocation6 + $0xf8] sm:$0xff]
    %v2628 = vld [vmem:[#allocation6 + $0x100] sm:$0xff]
    %v2629 = vld [vmem:[#allocation6 + $0x108] sm:$0xff]
    %v2630 = vld [vmem:[#allocation6 + $0x110] sm:$0xff]
    %v2631 = vld [vmem:[#allocation6 + $0x118] sm:$0xff]
    %v2632 = vld [vmem:[#allocation6 + $0x120] sm:$0xff]
    %v2633 = vld [vmem:[#allocation6 + $0x128] sm:$0xff]
    %v2634 = vld [vmem:[#allocation6 + $0x130] sm:$0xff]
    %v2635 = vld [vmem:[#allocation6 + $0x138] sm:$0xff]
    %v2636 = vld [vmem:[#allocation6 + $0x140] sm:$0xff]
    %v2637 = vld [vmem:[#allocation6 + $0x148] sm:$0xff]
    %v2638 = vld [vmem:[#allocation6 + $0x150] sm:$0xff]
    %v2639 = vld [vmem:[#allocation6 + $0x158] sm:$0xff]
    %v2640 = vld [vmem:[#allocation6 + $0x160] sm:$0xff]
    %v2641 = vld [vmem:[#allocation6 + $0x168] sm:$0xff]
    %v2642 = vld [vmem:[#allocation6 + $0x170] sm:$0xff]
    %v2643 = vld [vmem:[#allocation6 + $0x178] sm:$0xff]
    %v2644 = vld [vmem:[#allocation6 + $0x180] sm:$0xff]
    %v2645 = vld [vmem:[#allocation6 + $0x188] sm:$0xff]
    %v2646 = vld [vmem:[#allocation6 + $0x190] sm:$0xff]
    %v2647 = vld [vmem:[#allocation6 + $0x198] sm:$0xff]
    %v2648 = vld [vmem:[#allocation6 + $0x1a0] sm:$0xff]
    %v2649 = vld [vmem:[#allocation6 + $0x1a8] sm:$0xff]
    %v2650 = vld [vmem:[#allocation6 + $0x1b0] sm:$0xff]
    %v2651 = vld [vmem:[#allocation6 + $0x1b8] sm:$0xff]
    %v2652 = vld [vmem:[#allocation6 + $0x1c0] sm:$0xff]
    %v2653 = vld [vmem:[#allocation6 + $0x1c8] sm:$0xff]
    %v2654 = vld [vmem:[#allocation6 + $0x1d0] sm:$0xff]
    %v2655 = vld [vmem:[#allocation6 + $0x1d8] sm:$0xff]
    %v2656 = vld [vmem:[#allocation6 + $0x1e0] sm:$0xff]
    %v2657 = vld [vmem:[#allocation6 + $0x1e8] sm:$0xff]
    %v2658 = vld [vmem:[#allocation6 + $0x1f0] sm:$0xff]
    %v2659 = vld [vmem:[#allocation6 + $0x1f8] sm:$0xff]
    %v2660 = vld [vmem:[%s6] sm:$0xf]
    %v2662 = vperm.slane %v2660, 0
    %v2663 = vperm.slane %v2660, 1
    %v2664 = vperm.slane %v2660, 2
    %v2665 = vperm.slane %v2660, 3
    %v2734 = vunpack.c.l.b16 %v2596
    %v2735 = vunpack.c.h.b16 %v2596
    %v2736 = vunpack.c.l.b16 %v2597
    %v2737 = vunpack.c.h.b16 %v2597
    %v2738 = vunpack.c.l.b16 %v2598
    %v2739 = vunpack.c.h.b16 %v2598
    %v2740 = vunpack.c.l.b16 %v2599
    %v2741 = vunpack.c.h.b16 %v2599
    %v2742 = vunpack.c.l.b16 %v2600
    %v2743 = vunpack.c.h.b16 %v2600
    %v2744 = vunpack.c.l.b16 %v2601
    %v2745 = vunpack.c.h.b16 %v2601
    %v2746 = vunpack.c.l.b16 %v2602
    %v2747 = vunpack.c.h.b16 %v2602
    %v2748 = vunpack.c.l.b16 %v2603
    %v2749 = vunpack.c.h.b16 %v2603
    %v2750 = vunpack.c.l.b16 %v2604
    %v2751 = vunpack.c.h.b16 %v2604
    %v2752 = vunpack.c.l.b16 %v2605
    %v2753 = vunpack.c.h.b16 %v2605
    %v2754 = vunpack.c.l.b16 %v2606
    %v2755 = vunpack.c.h.b16 %v2606
    %v2756 = vunpack.c.l.b16 %v2607
    %v2757 = vunpack.c.h.b16 %v2607
    %v2758 = vunpack.c.l.b16 %v2608
    %v2759 = vunpack.c.h.b16 %v2608
    %v2760 = vunpack.c.l.b16 %v2609
    %v2761 = vunpack.c.h.b16 %v2609
    %v2762 = vunpack.c.l.b16 %v2610
    %v2763 = vunpack.c.h.b16 %v2610
    %v2764 = vunpack.c.l.b16 %v2611
    %v2765 = vunpack.c.h.b16 %v2611
    %v2766 = vunpack.c.l.b16 %v2612
    %v2767 = vunpack.c.h.b16 %v2612
    %v2768 = vunpack.c.l.b16 %v2613
    %v2769 = vunpack.c.h.b16 %v2613
    %v2770 = vunpack.c.l.b16 %v2614
    %v2771 = vunpack.c.h.b16 %v2614
    %v2772 = vunpack.c.l.b16 %v2615
    %v2773 = vunpack.c.h.b16 %v2615
    %v2774 = vunpack.c.l.b16 %v2616
    %v2775 = vunpack.c.h.b16 %v2616
    %v2776 = vunpack.c.l.b16 %v2617
    %v2777 = vunpack.c.h.b16 %v2617
    %v2778 = vunpack.c.l.b16 %v2618
    %v2779 = vunpack.c.h.b16 %v2618
    %v2780 = vunpack.c.l.b16 %v2619
    %v2781 = vunpack.c.h.b16 %v2619
    %v2782 = vunpack.c.l.b16 %v2620
    %v2783 = vunpack.c.h.b16 %v2620
    %v2784 = vunpack.c.l.b16 %v2621
    %v2785 = vunpack.c.h.b16 %v2621
    %v2786 = vunpack.c.l.b16 %v2622
    %v2787 = vunpack.c.h.b16 %v2622
    %v2788 = vunpack.c.l.b16 %v2623
    %v2789 = vunpack.c.h.b16 %v2623
    %v2790 = vunpack.c.l.b16 %v2624
    %v2791 = vunpack.c.h.b16 %v2624
    %v2792 = vunpack.c.l.b16 %v2625
    %v2793 = vunpack.c.h.b16 %v2625
    %v2794 = vunpack.c.l.b16 %v2626
    %v2795 = vunpack.c.h.b16 %v2626
    %v2796 = vunpack.c.l.b16 %v2627
    %v2797 = vunpack.c.h.b16 %v2627
    %v2798 = vunpack.c.l.b16 %v2628
    %v2799 = vunpack.c.h.b16 %v2628
    %v2800 = vunpack.c.l.b16 %v2629
    %v2801 = vunpack.c.h.b16 %v2629
    %v2802 = vunpack.c.l.b16 %v2630
    %v2803 = vunpack.c.h.b16 %v2630
    %v2804 = vunpack.c.l.b16 %v2631
    %v2805 = vunpack.c.h.b16 %v2631
    %v2806 = vunpack.c.l.b16 %v2632
    %v2807 = vunpack.c.h.b16 %v2632
    %v2808 = vunpack.c.l.b16 %v2633
    %v2809 = vunpack.c.h.b16 %v2633
    %v2810 = vunpack.c.l.b16 %v2634
    %v2811 = vunpack.c.h.b16 %v2634
    %v2812 = vunpack.c.l.b16 %v2635
    %v2813 = vunpack.c.h.b16 %v2635
    %v2814 = vunpack.c.l.b16 %v2636
    %v2815 = vunpack.c.h.b16 %v2636
    %v2816 = vunpack.c.l.b16 %v2637
    %v2817 = vunpack.c.h.b16 %v2637
    %v2818 = vunpack.c.l.b16 %v2638
    %v2819 = vunpack.c.h.b16 %v2638
    %v2820 = vunpack.c.l.b16 %v2639
    %v2821 = vunpack.c.h.b16 %v2639
    %v2822 = vunpack.c.l.b16 %v2640
    %v2823 = vunpack.c.h.b16 %v2640
    %v2824 = vunpack.c.l.b16 %v2641
    %v2825 = vunpack.c.h.b16 %v2641
    %v2826 = vunpack.c.l.b16 %v2642
    %v2827 = vunpack.c.h.b16 %v2642
    %v2828 = vunpack.c.l.b16 %v2643
    %v2829 = vunpack.c.h.b16 %v2643
    %v2830 = vunpack.c.l.b16 %v2644
    %v2831 = vunpack.c.h.b16 %v2644
    %v2832 = vunpack.c.l.b16 %v2645
    %v2833 = vunpack.c.h.b16 %v2645
    %v2834 = vunpack.c.l.b16 %v2646
    %v2835 = vunpack.c.h.b16 %v2646
    %v2836 = vunpack.c.l.b16 %v2647
    %v2837 = vunpack.c.h.b16 %v2647
    %v2838 = vunpack.c.l.b16 %v2648
    %v2839 = vunpack.c.h.b16 %v2648
    %v2840 = vunpack.c.l.b16 %v2649
    %v2841 = vunpack.c.h.b16 %v2649
    %v2842 = vunpack.c.l.b16 %v2650
    %v2843 = vunpack.c.h.b16 %v2650
    %v2844 = vunpack.c.l.b16 %v2651
    %v2845 = vunpack.c.h.b16 %v2651
    %v2846 = vunpack.c.l.b16 %v2652
    %v2847 = vunpack.c.h.b16 %v2652
    %v2848 = vunpack.c.l.b16 %v2653
    %v2849 = vunpack.c.h.b16 %v2653
    %v2850 = vunpack.c.l.b16 %v2654
    %v2851 = vunpack.c.h.b16 %v2654
    %v2852 = vunpack.c.l.b16 %v2655
    %v2853 = vunpack.c.h.b16 %v2655
    %v2854 = vunpack.c.l.b16 %v2656
    %v2855 = vunpack.c.h.b16 %v2656
    %v2856 = vunpack.c.l.b16 %v2657
    %v2857 = vunpack.c.h.b16 %v2657
    %v2858 = vunpack.c.l.b16 %v2658
    %v2859 = vunpack.c.h.b16 %v2658
    %v2860 = vunpack.c.l.b16 %v2659
    %v2861 = vunpack.c.h.b16 %v2659
    %v2862 = vpack.c.b16 %v2738, %v2734
    %v2863 = vpack.c.b16 %v2739, %v2735
    %v2864 = vpack.c.b16 %v2740, %v2736
    %v2865 = vpack.c.b16 %v2741, %v2737
    %v2866 = vpack.c.b16 %v2746, %v2742
    %v2867 = vpack.c.b16 %v2747, %v2743
    %v2868 = vpack.c.b16 %v2748, %v2744
    %v2869 = vpack.c.b16 %v2749, %v2745
    %v2870 = vpack.c.b16 %v2754, %v2750
    %v2871 = vpack.c.b16 %v2755, %v2751
    %v2872 = vpack.c.b16 %v2756, %v2752
    %v2873 = vpack.c.b16 %v2757, %v2753
    %v2874 = vpack.c.b16 %v2762, %v2758
    %v2875 = vpack.c.b16 %v2763, %v2759
    %v2876 = vpack.c.b16 %v2764, %v2760
    %v2877 = vpack.c.b16 %v2765, %v2761
    %v2878 = vpack.c.b16 %v2770, %v2766
    %v2879 = vpack.c.b16 %v2771, %v2767
    %v2880 = vpack.c.b16 %v2772, %v2768
    %v2881 = vpack.c.b16 %v2773, %v2769
    %v2882 = vpack.c.b16 %v2778, %v2774
    %v2883 = vpack.c.b16 %v2779, %v2775
    %v2884 = vpack.c.b16 %v2780, %v2776
    %v2885 = vpack.c.b16 %v2781, %v2777
    %v2886 = vpack.c.b16 %v2786, %v2782
    %v2887 = vpack.c.b16 %v2787, %v2783
    %v2888 = vpack.c.b16 %v2788, %v2784
    %v2889 = vpack.c.b16 %v2789, %v2785
    %v2890 = vpack.c.b16 %v2794, %v2790
    %v2891 = vpack.c.b16 %v2795, %v2791
    %v2892 = vpack.c.b16 %v2796, %v2792
    %v2893 = vpack.c.b16 %v2797, %v2793
    %v2894 = vpack.c.b16 %v2802, %v2798
    %v2895 = vpack.c.b16 %v2803, %v2799
    %v2896 = vpack.c.b16 %v2804, %v2800
    %v2897 = vpack.c.b16 %v2805, %v2801
    %v2898 = vpack.c.b16 %v2810, %v2806
    %v2899 = vpack.c.b16 %v2811, %v2807
    %v2900 = vpack.c.b16 %v2812, %v2808
    %v2901 = vpack.c.b16 %v2813, %v2809
    %v2902 = vpack.c.b16 %v2818, %v2814
    %v2903 = vpack.c.b16 %v2819, %v2815
    %v2904 = vpack.c.b16 %v2820, %v2816
    %v2905 = vpack.c.b16 %v2821, %v2817
    %v2906 = vpack.c.b16 %v2826, %v2822
    %v2907 = vpack.c.b16 %v2827, %v2823
    %v2908 = vpack.c.b16 %v2828, %v2824
    %v2909 = vpack.c.b16 %v2829, %v2825
    %v2910 = vpack.c.b16 %v2834, %v2830
    %v2911 = vpack.c.b16 %v2835, %v2831
    %v2912 = vpack.c.b16 %v2836, %v2832
    %v2913 = vpack.c.b16 %v2837, %v2833
    %v2914 = vpack.c.b16 %v2842, %v2838
    %v2915 = vpack.c.b16 %v2843, %v2839
    %v2916 = vpack.c.b16 %v2844, %v2840
    %v2917 = vpack.c.b16 %v2845, %v2841
    %v2918 = vpack.c.b16 %v2850, %v2846
    %v2919 = vpack.c.b16 %v2851, %v2847
    %v2920 = vpack.c.b16 %v2852, %v2848
    %v2921 = vpack.c.b16 %v2853, %v2849
    %v2922 = vpack.c.b16 %v2858, %v2854
    %v2923 = vpack.c.b16 %v2859, %v2855
    %v2924 = vpack.c.b16 %v2860, %v2856
    %v2925 = vpack.c.b16 %v2861, %v2857
    %2990 = vmatpush.bf16.msra.mxu0 %v2890
    %2991 = vmatpush.bf16.msra.mxu0 %v2886
    %2992 = vmatpush.bf16.msra.mxu0 %v2882
    %2993 = vmatpush.bf16.msra.mxu0 %v2878
    %2994 = vmatpush.bf16.msra.mxu0 %v2874
    %2995 = vmatpush.bf16.msra.mxu0 %v2870
    %2996 = vmatpush.bf16.msra.mxu0 %v2866
    %2997 = vmatpush.bf16.msra.mxu0 %v2862
    %2998 = vmatmul.bf16.gmra.mxu0 %v2594
    %v2999 = vpop.f32.mrf.mxu0
    %v3000 = vadd.f32 %v2662, %v2999
    %v3001 = vpop.f32.mrf.mxu0
    %3002 = vdwg.mxu0
    %3003 = vmatpush.bf16.msra.mxu0 %v2922
    %3004 = vmatpush.bf16.msra.mxu0 %v2918
    %3005 = vmatpush.bf16.msra.mxu0 %v2914
    %3006 = vmatpush.bf16.msra.mxu0 %v2910
    %3007 = vmatpush.bf16.msra.mxu0 %v2906
    %3008 = vmatpush.bf16.msra.mxu0 %v2902
    %3009 = vmatpush.bf16.msra.mxu0 %v2898
    %3010 = vmatpush.bf16.msra.mxu0 %v2894
    %3011 = vmatmul.bf16.gmra.mxu0 %v2595
    %v3012 = vpop.f32.mrf.mxu0
    %v3013 = vadd.f32 %v3000, %v3012
    %v3014 = vpop.f32.mrf.mxu0
    %3015 = vdwg.mxu0
    %3016 = vmatpush.bf16.msra.mxu0 %v2891
    %3017 = vmatpush.bf16.msra.mxu0 %v2887
    %3018 = vmatpush.bf16.msra.mxu0 %v2883
    %3019 = vmatpush.bf16.msra.mxu0 %v2879
    %3020 = vmatpush.bf16.msra.mxu0 %v2875
    %3021 = vmatpush.bf16.msra.mxu0 %v2871
    %3022 = vmatpush.bf16.msra.mxu0 %v2867
    %3023 = vmatpush.bf16.msra.mxu0 %v2863
    %3024 = vmatmul.bf16.gmra.mxu0 %v2594
    %v3025 = vpop.f32.mrf.mxu0
    %v3026 = vadd.f32 %v2663, %v3025
    %v3027 = vpop.f32.mrf.mxu0
    %3028 = vdwg.mxu0
    %3029 = vmatpush.bf16.msra.mxu0 %v2923
    %3030 = vmatpush.bf16.msra.mxu0 %v2919
    %3031 = vmatpush.bf16.msra.mxu0 %v2915
    %3032 = vmatpush.bf16.msra.mxu0 %v2911
    %3033 = vmatpush.bf16.msra.mxu0 %v2907
    %3034 = vmatpush.bf16.msra.mxu0 %v2903
    %3035 = vmatpush.bf16.msra.mxu0 %v2899
    %3036 = vmatpush.bf16.msra.mxu0 %v2895
    %3037 = vmatmul.bf16.gmra.mxu0 %v2595
    %v3038 = vpop.f32.mrf.mxu0
    %v3039 = vadd.f32 %v3026, %v3038
    %v3040 = vpop.f32.mrf.mxu0
    %3041 = vdwg.mxu0
    %3042 = vmatpush.bf16.msra.mxu0 %v2892
    %3043 = vmatpush.bf16.msra.mxu0 %v2888
    %3044 = vmatpush.bf16.msra.mxu0 %v2884
    %3045 = vmatpush.bf16.msra.mxu0 %v2880
    %3046 = vmatpush.bf16.msra.mxu0 %v2876
    %3047 = vmatpush.bf16.msra.mxu0 %v2872
    %3048 = vmatpush.bf16.msra.mxu0 %v2868
    %3049 = vmatpush.bf16.msra.mxu0 %v2864
    %3050 = vmatmul.bf16.gmra.mxu0 %v2594
    %v3051 = vpop.f32.mrf.mxu0
    %v3052 = vadd.f32 %v2664, %v3051
    %v3053 = vpop.f32.mrf.mxu0
    %3054 = vdwg.mxu0
    %3055 = vmatpush.bf16.msra.mxu0 %v2924
    %3056 = vmatpush.bf16.msra.mxu0 %v2920
    %3057 = vmatpush.bf16.msra.mxu0 %v2916
    %3058 = vmatpush.bf16.msra.mxu0 %v2912
    %3059 = vmatpush.bf16.msra.mxu0 %v2908
    %3060 = vmatpush.bf16.msra.mxu0 %v2904
    %3061 = vmatpush.bf16.msra.mxu0 %v2900
    %3062 = vmatpush.bf16.msra.mxu0 %v2896
    %3063 = vmatmul.bf16.gmra.mxu0 %v2595
    %v3064 = vpop.f32.mrf.mxu0
    %v3065 = vadd.f32 %v3052, %v3064
    %v3066 = vpop.f32.mrf.mxu0
    %3067 = vdwg.mxu0
    %3068 = vmatpush.bf16.msra.mxu0 %v2893
    %3069 = vmatpush.bf16.msra.mxu0 %v2889
    %3070 = vmatpush.bf16.msra.mxu0 %v2885
    %3071 = vmatpush.bf16.msra.mxu0 %v2881
    %3072 = vmatpush.bf16.msra.mxu0 %v2877
    %3073 = vmatpush.bf16.msra.mxu0 %v2873
    %3074 = vmatpush.bf16.msra.mxu0 %v2869
    %3075 = vmatpush.bf16.msra.mxu0 %v2865
    %3076 = vmatmul.bf16.gmra.mxu0 %v2594
    %v3077 = vpop.f32.mrf.mxu0
    %v3078 = vadd.f32 %v2665, %v3077
    %v3079 = vpop.f32.mrf.mxu0
    %3080 = vdwg.mxu0
    %3081 = vmatpush.bf16.msra.mxu0 %v2925
    %3082 = vmatpush.bf16.msra.mxu0 %v2921
    %3083 = vmatpush.bf16.msra.mxu0 %v2917
    %3084 = vmatpush.bf16.msra.mxu0 %v2913
    %3085 = vmatpush.bf16.msra.mxu0 %v2909
    %3086 = vmatpush.bf16.msra.mxu0 %v2905
    %3087 = vmatpush.bf16.msra.mxu0 %v2901
    %3088 = vmatpush.bf16.msra.mxu0 %v2897
    %3089 = vmatmul.bf16.gmra.mxu0 %v2595
    %v3090 = vpop.f32.mrf.mxu0
    %v3091 = vadd.f32 %v3078, %v3090
    %v3092 = vpop.f32.mrf.mxu0
    %3093 = vdwg.mxu0
    %v3094 = vmax.f32 %v3013, 0.0
    %v3095 = vmax.f32 %v3039, 0.0
    %v3096 = vmax.f32 %v3065, 0.0
    %v3097 = vmax.f32 %v3091, 0.0
    %v3098 = vpack.c.bf16 %v3094, %v3094
    %v3099 = vpack.c.bf16 %v3095, %v3095
    %v3100 = vpack.c.bf16 %v3096, %v3096
    %v3101 = vpack.c.bf16 %v3097, %v3097
    %v3102 = vld [vmem:[#allocation7] sm:$0xff]
    %v3103 = vld [vmem:[#allocation7 + $0x8] sm:$0xff]
    %v3104 = vld [vmem:[#allocation7 + $0x10] sm:$0xff]
    %v3105 = vld [vmem:[#allocation7 + $0x18] sm:$0xff]
    %v3106 = vld [vmem:[#allocation7 + $0x20] sm:$0xff]
    %v3107 = vld [vmem:[#allocation7 + $0x28] sm:$0xff]
    %v3108 = vld [vmem:[#allocation7 + $0x30] sm:$0xff]
    %v3109 = vld [vmem:[#allocation7 + $0x38] sm:$0xff]
    %v3110 = vld [vmem:[#allocation7 + $0x40] sm:$0xff]
    %v3111 = vld [vmem:[#allocation7 + $0x48] sm:$0xff]
    %v3112 = vld [vmem:[#allocation7 + $0x50] sm:$0xff]
    %v3113 = vld [vmem:[#allocation7 + $0x58] sm:$0xff]
    %v3114 = vld [vmem:[#allocation7 + $0x60] sm:$0xff]
    %v3115 = vld [vmem:[#allocation7 + $0x68] sm:$0xff]
    %v3116 = vld [vmem:[#allocation7 + $0x70] sm:$0xff]
    %v3117 = vld [vmem:[#allocation7 + $0x78] sm:$0xff]
    %v3118 = vld [vmem:[#allocation7 + $0x80] sm:$0xff]
    %v3119 = vld [vmem:[#allocation7 + $0x88] sm:$0xff]
    %v3120 = vld [vmem:[#allocation7 + $0x90] sm:$0xff]
    %v3121 = vld [vmem:[#allocation7 + $0x98] sm:$0xff]
    %v3122 = vld [vmem:[#allocation7 + $0xa0] sm:$0xff]
    %v3123 = vld [vmem:[#allocation7 + $0xa8] sm:$0xff]
    %v3124 = vld [vmem:[#allocation7 + $0xb0] sm:$0xff]
    %v3125 = vld [vmem:[#allocation7 + $0xb8] sm:$0xff]
    %v3126 = vld [vmem:[#allocation7 + $0xc0] sm:$0xff]
    %v3127 = vld [vmem:[#allocation7 + $0xc8] sm:$0xff]
    %v3128 = vld [vmem:[#allocation7 + $0xd0] sm:$0xff]
    %v3129 = vld [vmem:[#allocation7 + $0xd8] sm:$0xff]
    %v3130 = vld [vmem:[#allocation7 + $0xe0] sm:$0xff]
    %v3131 = vld [vmem:[#allocation7 + $0xe8] sm:$0xff]
    %v3132 = vld [vmem:[#allocation7 + $0xf0] sm:$0xff]
    %v3133 = vld [vmem:[#allocation7 + $0xf8] sm:$0xff]
    %v3134 = vld [vmem:[#allocation7 + $0x100] sm:$0xff]
    %v3135 = vld [vmem:[#allocation7 + $0x108] sm:$0xff]
    %v3136 = vld [vmem:[#allocation7 + $0x110] sm:$0xff]
    %v3137 = vld [vmem:[#allocation7 + $0x118] sm:$0xff]
    %v3138 = vld [vmem:[#allocation7 + $0x120] sm:$0xff]
    %v3139 = vld [vmem:[#allocation7 + $0x128] sm:$0xff]
    %v3140 = vld [vmem:[#allocation7 + $0x130] sm:$0xff]
    %v3141 = vld [vmem:[#allocation7 + $0x138] sm:$0xff]
    %v3142 = vld [vmem:[#allocation7 + $0x140] sm:$0xff]
    %v3143 = vld [vmem:[#allocation7 + $0x148] sm:$0xff]
    %v3144 = vld [vmem:[#allocation7 + $0x150] sm:$0xff]
    %v3145 = vld [vmem:[#allocation7 + $0x158] sm:$0xff]
    %v3146 = vld [vmem:[#allocation7 + $0x160] sm:$0xff]
    %v3147 = vld [vmem:[#allocation7 + $0x168] sm:$0xff]
    %v3148 = vld [vmem:[#allocation7 + $0x170] sm:$0xff]
    %v3149 = vld [vmem:[#allocation7 + $0x178] sm:$0xff]
    %v3150 = vld [vmem:[#allocation7 + $0x180] sm:$0xff]
    %v3151 = vld [vmem:[#allocation7 + $0x188] sm:$0xff]
    %v3152 = vld [vmem:[#allocation7 + $0x190] sm:$0xff]
    %v3153 = vld [vmem:[#allocation7 + $0x198] sm:$0xff]
    %v3154 = vld [vmem:[#allocation7 + $0x1a0] sm:$0xff]
    %v3155 = vld [vmem:[#allocation7 + $0x1a8] sm:$0xff]
    %v3156 = vld [vmem:[#allocation7 + $0x1b0] sm:$0xff]
    %v3157 = vld [vmem:[#allocation7 + $0x1b8] sm:$0xff]
    %v3158 = vld [vmem:[#allocation7 + $0x1c0] sm:$0xff]
    %v3159 = vld [vmem:[#allocation7 + $0x1c8] sm:$0xff]
    %v3160 = vld [vmem:[#allocation7 + $0x1d0] sm:$0xff]
    %v3161 = vld [vmem:[#allocation7 + $0x1d8] sm:$0xff]
    %v3162 = vld [vmem:[#allocation7 + $0x1e0] sm:$0xff]
    %v3163 = vld [vmem:[#allocation7 + $0x1e8] sm:$0xff]
    %v3164 = vld [vmem:[#allocation7 + $0x1f0] sm:$0xff]
    %v3165 = vld [vmem:[#allocation7 + $0x1f8] sm:$0xff]
    %v3166 = vld [vmem:[#allocation7 + $0x200] sm:$0xff]
    %v3167 = vld [vmem:[#allocation7 + $0x208] sm:$0xff]
    %v3168 = vld [vmem:[#allocation7 + $0x210] sm:$0xff]
    %v3169 = vld [vmem:[#allocation7 + $0x218] sm:$0xff]
    %v3170 = vld [vmem:[#allocation7 + $0x220] sm:$0xff]
    %v3171 = vld [vmem:[#allocation7 + $0x228] sm:$0xff]
    %v3172 = vld [vmem:[#allocation7 + $0x230] sm:$0xff]
    %v3173 = vld [vmem:[#allocation7 + $0x238] sm:$0xff]
    %v3174 = vld [vmem:[#allocation7 + $0x240] sm:$0xff]
    %v3175 = vld [vmem:[#allocation7 + $0x248] sm:$0xff]
    %v3176 = vld [vmem:[#allocation7 + $0x250] sm:$0xff]
    %v3177 = vld [vmem:[#allocation7 + $0x258] sm:$0xff]
    %v3178 = vld [vmem:[#allocation7 + $0x260] sm:$0xff]
    %v3179 = vld [vmem:[#allocation7 + $0x268] sm:$0xff]
    %v3180 = vld [vmem:[#allocation7 + $0x270] sm:$0xff]
    %v3181 = vld [vmem:[#allocation7 + $0x278] sm:$0xff]
    %v3182 = vld [vmem:[#allocation7 + $0x280] sm:$0xff]
    %v3183 = vld [vmem:[#allocation7 + $0x288] sm:$0xff]
    %v3184 = vld [vmem:[#allocation7 + $0x290] sm:$0xff]
    %v3185 = vld [vmem:[#allocation7 + $0x298] sm:$0xff]
    %v3186 = vld [vmem:[#allocation7 + $0x2a0] sm:$0xff]
    %v3187 = vld [vmem:[#allocation7 + $0x2a8] sm:$0xff]
    %v3188 = vld [vmem:[#allocation7 + $0x2b0] sm:$0xff]
    %v3189 = vld [vmem:[#allocation7 + $0x2b8] sm:$0xff]
    %v3190 = vld [vmem:[#allocation7 + $0x2c0] sm:$0xff]
    %v3191 = vld [vmem:[#allocation7 + $0x2c8] sm:$0xff]
    %v3192 = vld [vmem:[#allocation7 + $0x2d0] sm:$0xff]
    %v3193 = vld [vmem:[#allocation7 + $0x2d8] sm:$0xff]
    %v3194 = vld [vmem:[#allocation7 + $0x2e0] sm:$0xff]
    %v3195 = vld [vmem:[#allocation7 + $0x2e8] sm:$0xff]
    %v3196 = vld [vmem:[#allocation7 + $0x2f0] sm:$0xff]
    %v3197 = vld [vmem:[#allocation7 + $0x2f8] sm:$0xff]
    %v3198 = vld [vmem:[#allocation7 + $0x300] sm:$0xff]
    %v3199 = vld [vmem:[#allocation7 + $0x308] sm:$0xff]
    %v3200 = vld [vmem:[#allocation7 + $0x310] sm:$0xff]
    %v3201 = vld [vmem:[#allocation7 + $0x318] sm:$0xff]
    %v3202 = vld [vmem:[#allocation7 + $0x320] sm:$0xff]
    %v3203 = vld [vmem:[#allocation7 + $0x328] sm:$0xff]
    %v3204 = vld [vmem:[#allocation7 + $0x330] sm:$0xff]
    %v3205 = vld [vmem:[#allocation7 + $0x338] sm:$0xff]
    %v3206 = vld [vmem:[#allocation7 + $0x340] sm:$0xff]
    %v3207 = vld [vmem:[#allocation7 + $0x348] sm:$0xff]
    %v3208 = vld [vmem:[#allocation7 + $0x350] sm:$0xff]
    %v3209 = vld [vmem:[#allocation7 + $0x358] sm:$0xff]
    %v3210 = vld [vmem:[#allocation7 + $0x360] sm:$0xff]
    %v3211 = vld [vmem:[#allocation7 + $0x368] sm:$0xff]
    %v3212 = vld [vmem:[#allocation7 + $0x370] sm:$0xff]
    %v3213 = vld [vmem:[#allocation7 + $0x378] sm:$0xff]
    %v3214 = vld [vmem:[#allocation7 + $0x380] sm:$0xff]
    %v3215 = vld [vmem:[#allocation7 + $0x388] sm:$0xff]
    %v3216 = vld [vmem:[#allocation7 + $0x390] sm:$0xff]
    %v3217 = vld [vmem:[#allocation7 + $0x398] sm:$0xff]
    %v3218 = vld [vmem:[#allocation7 + $0x3a0] sm:$0xff]
    %v3219 = vld [vmem:[#allocation7 + $0x3a8] sm:$0xff]
    %v3220 = vld [vmem:[#allocation7 + $0x3b0] sm:$0xff]
    %v3221 = vld [vmem:[#allocation7 + $0x3b8] sm:$0xff]
    %v3222 = vld [vmem:[#allocation7 + $0x3c0] sm:$0xff]
    %v3223 = vld [vmem:[#allocation7 + $0x3c8] sm:$0xff]
    %v3224 = vld [vmem:[#allocation7 + $0x3d0] sm:$0xff]
    %v3225 = vld [vmem:[#allocation7 + $0x3d8] sm:$0xff]
    %v3226 = vld [vmem:[#allocation7 + $0x3e0] sm:$0xff]
    %v3227 = vld [vmem:[#allocation7 + $0x3e8] sm:$0xff]
    %v3228 = vld [vmem:[#allocation7 + $0x3f0] sm:$0xff]
    %v3229 = vld [vmem:[#allocation7 + $0x3f8] sm:$0xff]
    %v3230 = vld [vmem:[#allocation7 + $0x400] sm:$0xff]
    %v3231 = vld [vmem:[#allocation7 + $0x408] sm:$0xff]
    %v3232 = vld [vmem:[#allocation7 + $0x410] sm:$0xff]
    %v3233 = vld [vmem:[#allocation7 + $0x418] sm:$0xff]
    %v3234 = vld [vmem:[#allocation7 + $0x420] sm:$0xff]
    %v3235 = vld [vmem:[#allocation7 + $0x428] sm:$0xff]
    %v3236 = vld [vmem:[#allocation7 + $0x430] sm:$0xff]
    %v3237 = vld [vmem:[#allocation7 + $0x438] sm:$0xff]
    %v3238 = vld [vmem:[#allocation7 + $0x440] sm:$0xff]
    %v3239 = vld [vmem:[#allocation7 + $0x448] sm:$0xff]
    %v3240 = vld [vmem:[#allocation7 + $0x450] sm:$0xff]
    %v3241 = vld [vmem:[#allocation7 + $0x458] sm:$0xff]
    %v3242 = vld [vmem:[#allocation7 + $0x460] sm:$0xff]
    %v3243 = vld [vmem:[#allocation7 + $0x468] sm:$0xff]
    %v3244 = vld [vmem:[#allocation7 + $0x470] sm:$0xff]
    %v3245 = vld [vmem:[#allocation7 + $0x478] sm:$0xff]
    %v3246 = vld [vmem:[#allocation7 + $0x480] sm:$0xff]
    %v3247 = vld [vmem:[#allocation7 + $0x488] sm:$0xff]
    %v3248 = vld [vmem:[#allocation7 + $0x490] sm:$0xff]
    %v3249 = vld [vmem:[#allocation7 + $0x498] sm:$0xff]
    %v3250 = vld [vmem:[#allocation7 + $0x4a0] sm:$0xff]
    %v3251 = vld [vmem:[#allocation7 + $0x4a8] sm:$0xff]
    %v3252 = vld [vmem:[#allocation7 + $0x4b0] sm:$0xff]
    %v3253 = vld [vmem:[#allocation7 + $0x4b8] sm:$0xff]
    %v3254 = vld [vmem:[#allocation7 + $0x4c0] sm:$0xff]
    %v3255 = vld [vmem:[#allocation7 + $0x4c8] sm:$0xff]
    %v3256 = vld [vmem:[#allocation7 + $0x4d0] sm:$0xff]
    %v3257 = vld [vmem:[#allocation7 + $0x4d8] sm:$0xff]
    %v3258 = vld [vmem:[#allocation7 + $0x4e0] sm:$0xff]
    %v3259 = vld [vmem:[#allocation7 + $0x4e8] sm:$0xff]
    %v3260 = vld [vmem:[#allocation7 + $0x4f0] sm:$0xff]
    %v3261 = vld [vmem:[#allocation7 + $0x4f8] sm:$0xff]
    %v3262 = vld [vmem:[#allocation7 + $0x500] sm:$0xff]
    %v3263 = vld [vmem:[#allocation7 + $0x508] sm:$0xff]
    %v3264 = vld [vmem:[#allocation7 + $0x510] sm:$0xff]
    %v3265 = vld [vmem:[#allocation7 + $0x518] sm:$0xff]
    %v3266 = vld [vmem:[#allocation7 + $0x520] sm:$0xff]
    %v3267 = vld [vmem:[#allocation7 + $0x528] sm:$0xff]
    %v3268 = vld [vmem:[#allocation7 + $0x530] sm:$0xff]
    %v3269 = vld [vmem:[#allocation7 + $0x538] sm:$0xff]
    %v3270 = vld [vmem:[#allocation7 + $0x540] sm:$0xff]
    %v3271 = vld [vmem:[#allocation7 + $0x548] sm:$0xff]
    %v3272 = vld [vmem:[#allocation7 + $0x550] sm:$0xff]
    %v3273 = vld [vmem:[#allocation7 + $0x558] sm:$0xff]
    %v3274 = vld [vmem:[#allocation7 + $0x560] sm:$0xff]
    %v3275 = vld [vmem:[#allocation7 + $0x568] sm:$0xff]
    %v3276 = vld [vmem:[#allocation7 + $0x570] sm:$0xff]
    %v3277 = vld [vmem:[#allocation7 + $0x578] sm:$0xff]
    %v3278 = vld [vmem:[#allocation7 + $0x580] sm:$0xff]
    %v3279 = vld [vmem:[#allocation7 + $0x588] sm:$0xff]
    %v3280 = vld [vmem:[#allocation7 + $0x590] sm:$0xff]
    %v3281 = vld [vmem:[#allocation7 + $0x598] sm:$0xff]
    %v3282 = vld [vmem:[#allocation7 + $0x5a0] sm:$0xff]
    %v3283 = vld [vmem:[#allocation7 + $0x5a8] sm:$0xff]
    %v3284 = vld [vmem:[#allocation7 + $0x5b0] sm:$0xff]
    %v3285 = vld [vmem:[#allocation7 + $0x5b8] sm:$0xff]
    %v3286 = vld [vmem:[#allocation7 + $0x5c0] sm:$0xff]
    %v3287 = vld [vmem:[#allocation7 + $0x5c8] sm:$0xff]
    %v3288 = vld [vmem:[#allocation7 + $0x5d0] sm:$0xff]
    %v3289 = vld [vmem:[#allocation7 + $0x5d8] sm:$0xff]
    %v3290 = vld [vmem:[#allocation7 + $0x5e0] sm:$0xff]
    %v3291 = vld [vmem:[#allocation7 + $0x5e8] sm:$0xff]
    %v3292 = vld [vmem:[#allocation7 + $0x5f0] sm:$0xff]
    %v3293 = vld [vmem:[#allocation7 + $0x5f8] sm:$0xff]
    %v3294 = vld [vmem:[#allocation7 + $0x600] sm:$0xff]
    %v3295 = vld [vmem:[#allocation7 + $0x608] sm:$0xff]
    %v3296 = vld [vmem:[#allocation7 + $0x610] sm:$0xff]
    %v3297 = vld [vmem:[#allocation7 + $0x618] sm:$0xff]
    %v3298 = vld [vmem:[#allocation7 + $0x620] sm:$0xff]
    %v3299 = vld [vmem:[#allocation7 + $0x628] sm:$0xff]
    %v3300 = vld [vmem:[#allocation7 + $0x630] sm:$0xff]
    %v3301 = vld [vmem:[#allocation7 + $0x638] sm:$0xff]
    %v3302 = vld [vmem:[#allocation7 + $0x640] sm:$0xff]
    %v3303 = vld [vmem:[#allocation7 + $0x648] sm:$0xff]
    %v3304 = vld [vmem:[#allocation7 + $0x650] sm:$0xff]
    %v3305 = vld [vmem:[#allocation7 + $0x658] sm:$0xff]
    %v3306 = vld [vmem:[#allocation7 + $0x660] sm:$0xff]
    %v3307 = vld [vmem:[#allocation7 + $0x668] sm:$0xff]
    %v3308 = vld [vmem:[#allocation7 + $0x670] sm:$0xff]
    %v3309 = vld [vmem:[#allocation7 + $0x678] sm:$0xff]
    %v3310 = vld [vmem:[#allocation7 + $0x680] sm:$0xff]
    %v3311 = vld [vmem:[#allocation7 + $0x688] sm:$0xff]
    %v3312 = vld [vmem:[#allocation7 + $0x690] sm:$0xff]
    %v3313 = vld [vmem:[#allocation7 + $0x698] sm:$0xff]
    %v3314 = vld [vmem:[#allocation7 + $0x6a0] sm:$0xff]
    %v3315 = vld [vmem:[#allocation7 + $0x6a8] sm:$0xff]
    %v3316 = vld [vmem:[#allocation7 + $0x6b0] sm:$0xff]
    %v3317 = vld [vmem:[#allocation7 + $0x6b8] sm:$0xff]
    %v3318 = vld [vmem:[#allocation7 + $0x6c0] sm:$0xff]
    %v3319 = vld [vmem:[#allocation7 + $0x6c8] sm:$0xff]
    %v3320 = vld [vmem:[#allocation7 + $0x6d0] sm:$0xff]
    %v3321 = vld [vmem:[#allocation7 + $0x6d8] sm:$0xff]
    %v3322 = vld [vmem:[#allocation7 + $0x6e0] sm:$0xff]
    %v3323 = vld [vmem:[#allocation7 + $0x6e8] sm:$0xff]
    %v3324 = vld [vmem:[#allocation7 + $0x6f0] sm:$0xff]
    %v3325 = vld [vmem:[#allocation7 + $0x6f8] sm:$0xff]
    %v3326 = vld [vmem:[#allocation7 + $0x700] sm:$0xff]
    %v3327 = vld [vmem:[#allocation7 + $0x708] sm:$0xff]
    %v3328 = vld [vmem:[#allocation7 + $0x710] sm:$0xff]
    %v3329 = vld [vmem:[#allocation7 + $0x718] sm:$0xff]
    %v3330 = vld [vmem:[#allocation7 + $0x720] sm:$0xff]
    %v3331 = vld [vmem:[#allocation7 + $0x728] sm:$0xff]
    %v3332 = vld [vmem:[#allocation7 + $0x730] sm:$0xff]
    %v3333 = vld [vmem:[#allocation7 + $0x738] sm:$0xff]
    %v3334 = vld [vmem:[#allocation7 + $0x740] sm:$0xff]
    %v3335 = vld [vmem:[#allocation7 + $0x748] sm:$0xff]
    %v3336 = vld [vmem:[#allocation7 + $0x750] sm:$0xff]
    %v3337 = vld [vmem:[#allocation7 + $0x758] sm:$0xff]
    %v3338 = vld [vmem:[#allocation7 + $0x760] sm:$0xff]
    %v3339 = vld [vmem:[#allocation7 + $0x768] sm:$0xff]
    %v3340 = vld [vmem:[#allocation7 + $0x770] sm:$0xff]
    %v3341 = vld [vmem:[#allocation7 + $0x778] sm:$0xff]
    %v3342 = vld [vmem:[#allocation7 + $0x780] sm:$0xff]
    %v3343 = vld [vmem:[#allocation7 + $0x788] sm:$0xff]
    %v3344 = vld [vmem:[#allocation7 + $0x790] sm:$0xff]
    %v3345 = vld [vmem:[#allocation7 + $0x798] sm:$0xff]
    %v3346 = vld [vmem:[#allocation7 + $0x7a0] sm:$0xff]
    %v3347 = vld [vmem:[#allocation7 + $0x7a8] sm:$0xff]
    %v3348 = vld [vmem:[#allocation7 + $0x7b0] sm:$0xff]
    %v3349 = vld [vmem:[#allocation7 + $0x7b8] sm:$0xff]
    %v3350 = vld [vmem:[#allocation7 + $0x7c0] sm:$0xff]
    %v3351 = vld [vmem:[#allocation7 + $0x7c8] sm:$0xff]
    %v3352 = vld [vmem:[#allocation7 + $0x7d0] sm:$0xff]
    %v3353 = vld [vmem:[#allocation7 + $0x7d8] sm:$0xff]
    %v3354 = vld [vmem:[#allocation7 + $0x7e0] sm:$0xff]
    %v3355 = vld [vmem:[#allocation7 + $0x7e8] sm:$0xff]
    %v3356 = vld [vmem:[#allocation7 + $0x7f0] sm:$0xff]
    %v3357 = vld [vmem:[#allocation7 + $0x7f8] sm:$0xff]
    %v3358 = vld [vmem:[%s8] sm:$0xff]
    %v3360 = vperm.slane %v3358, 0
    %v3361 = vperm.slane %v3358, 1
    %v3362 = vperm.slane %v3358, 2
    %v3363 = vperm.slane %v3358, 3
    %v3364 = vperm.slane %v3358, 4
    %v3365 = vperm.slane %v3358, 5
    %v3366 = vperm.slane %v3358, 6
    %v3367 = vperm.slane %v3358, 7
    %v3632 = vunpack.c.l.b16 %v3102
    %v3633 = vunpack.c.h.b16 %v3102
    %v3634 = vunpack.c.l.b16 %v3103
    %v3635 = vunpack.c.h.b16 %v3103
    %v3636 = vunpack.c.l.b16 %v3104
    %v3637 = vunpack.c.h.b16 %v3104
    %v3638 = vunpack.c.l.b16 %v3105
    %v3639 = vunpack.c.h.b16 %v3105
    %v3640 = vunpack.c.l.b16 %v3106
    %v3641 = vunpack.c.h.b16 %v3106
    %v3642 = vunpack.c.l.b16 %v3107
    %v3643 = vunpack.c.h.b16 %v3107
    %v3644 = vunpack.c.l.b16 %v3108
    %v3645 = vunpack.c.h.b16 %v3108
    %v3646 = vunpack.c.l.b16 %v3109
    %v3647 = vunpack.c.h.b16 %v3109
    %v3648 = vunpack.c.l.b16 %v3110
    %v3649 = vunpack.c.h.b16 %v3110
    %v3650 = vunpack.c.l.b16 %v3111
    %v3651 = vunpack.c.h.b16 %v3111
    %v3652 = vunpack.c.l.b16 %v3112
    %v3653 = vunpack.c.h.b16 %v3112
    %v3654 = vunpack.c.l.b16 %v3113
    %v3655 = vunpack.c.h.b16 %v3113
    %v3656 = vunpack.c.l.b16 %v3114
    %v3657 = vunpack.c.h.b16 %v3114
    %v3658 = vunpack.c.l.b16 %v3115
    %v3659 = vunpack.c.h.b16 %v3115
    %v3660 = vunpack.c.l.b16 %v3116
    %v3661 = vunpack.c.h.b16 %v3116
    %v3662 = vunpack.c.l.b16 %v3117
    %v3663 = vunpack.c.h.b16 %v3117
    %v3664 = vunpack.c.l.b16 %v3118
    %v3665 = vunpack.c.h.b16 %v3118
    %v3666 = vunpack.c.l.b16 %v3119
    %v3667 = vunpack.c.h.b16 %v3119
    %v3668 = vunpack.c.l.b16 %v3120
    %v3669 = vunpack.c.h.b16 %v3120
    %v3670 = vunpack.c.l.b16 %v3121
    %v3671 = vunpack.c.h.b16 %v3121
    %v3672 = vunpack.c.l.b16 %v3122
    %v3673 = vunpack.c.h.b16 %v3122
    %v3674 = vunpack.c.l.b16 %v3123
    %v3675 = vunpack.c.h.b16 %v3123
    %v3676 = vunpack.c.l.b16 %v3124
    %v3677 = vunpack.c.h.b16 %v3124
    %v3678 = vunpack.c.l.b16 %v3125
    %v3679 = vunpack.c.h.b16 %v3125
    %v3680 = vunpack.c.l.b16 %v3126
    %v3681 = vunpack.c.h.b16 %v3126
    %v3682 = vunpack.c.l.b16 %v3127
    %v3683 = vunpack.c.h.b16 %v3127
    %v3684 = vunpack.c.l.b16 %v3128
    %v3685 = vunpack.c.h.b16 %v3128
    %v3686 = vunpack.c.l.b16 %v3129
    %v3687 = vunpack.c.h.b16 %v3129
    %v3688 = vunpack.c.l.b16 %v3130
    %v3689 = vunpack.c.h.b16 %v3130
    %v3690 = vunpack.c.l.b16 %v3131
    %v3691 = vunpack.c.h.b16 %v3131
    %v3692 = vunpack.c.l.b16 %v3132
    %v3693 = vunpack.c.h.b16 %v3132
    %v3694 = vunpack.c.l.b16 %v3133
    %v3695 = vunpack.c.h.b16 %v3133
    %v3696 = vunpack.c.l.b16 %v3134
    %v3697 = vunpack.c.h.b16 %v3134
    %v3698 = vunpack.c.l.b16 %v3135
    %v3699 = vunpack.c.h.b16 %v3135
    %v3700 = vunpack.c.l.b16 %v3136
    %v3701 = vunpack.c.h.b16 %v3136
    %v3702 = vunpack.c.l.b16 %v3137
    %v3703 = vunpack.c.h.b16 %v3137
    %v3704 = vunpack.c.l.b16 %v3138
    %v3705 = vunpack.c.h.b16 %v3138
    %v3706 = vunpack.c.l.b16 %v3139
    %v3707 = vunpack.c.h.b16 %v3139
    %v3708 = vunpack.c.l.b16 %v3140
    %v3709 = vunpack.c.h.b16 %v3140
    %v3710 = vunpack.c.l.b16 %v3141
    %v3711 = vunpack.c.h.b16 %v3141
    %v3712 = vunpack.c.l.b16 %v3142
    %v3713 = vunpack.c.h.b16 %v3142
    %v3714 = vunpack.c.l.b16 %v3143
    %v3715 = vunpack.c.h.b16 %v3143
    %v3716 = vunpack.c.l.b16 %v3144
    %v3717 = vunpack.c.h.b16 %v3144
    %v3718 = vunpack.c.l.b16 %v3145
    %v3719 = vunpack.c.h.b16 %v3145
    %v3720 = vunpack.c.l.b16 %v3146
    %v3721 = vunpack.c.h.b16 %v3146
    %v3722 = vunpack.c.l.b16 %v3147
    %v3723 = vunpack.c.h.b16 %v3147
    %v3724 = vunpack.c.l.b16 %v3148
    %v3725 = vunpack.c.h.b16 %v3148
    %v3726 = vunpack.c.l.b16 %v3149
    %v3727 = vunpack.c.h.b16 %v3149
    %v3728 = vunpack.c.l.b16 %v3150
    %v3729 = vunpack.c.h.b16 %v3150
    %v3730 = vunpack.c.l.b16 %v3151
    %v3731 = vunpack.c.h.b16 %v3151
    %v3732 = vunpack.c.l.b16 %v3152
    %v3733 = vunpack.c.h.b16 %v3152
    %v3734 = vunpack.c.l.b16 %v3153
    %v3735 = vunpack.c.h.b16 %v3153
    %v3736 = vunpack.c.l.b16 %v3154
    %v3737 = vunpack.c.h.b16 %v3154
    %v3738 = vunpack.c.l.b16 %v3155
    %v3739 = vunpack.c.h.b16 %v3155
    %v3740 = vunpack.c.l.b16 %v3156
    %v3741 = vunpack.c.h.b16 %v3156
    %v3742 = vunpack.c.l.b16 %v3157
    %v3743 = vunpack.c.h.b16 %v3157
    %v3744 = vunpack.c.l.b16 %v3158
    %v3745 = vunpack.c.h.b16 %v3158
    %v3746 = vunpack.c.l.b16 %v3159
    %v3747 = vunpack.c.h.b16 %v3159
    %v3748 = vunpack.c.l.b16 %v3160
    %v3749 = vunpack.c.h.b16 %v3160
    %v3750 = vunpack.c.l.b16 %v3161
    %v3751 = vunpack.c.h.b16 %v3161
    %v3752 = vunpack.c.l.b16 %v3162
    %v3753 = vunpack.c.h.b16 %v3162
    %v3754 = vunpack.c.l.b16 %v3163
    %v3755 = vunpack.c.h.b16 %v3163
    %v3756 = vunpack.c.l.b16 %v3164
    %v3757 = vunpack.c.h.b16 %v3164
    %v3758 = vunpack.c.l.b16 %v3165
    %v3759 = vunpack.c.h.b16 %v3165
    %v3760 = vunpack.c.l.b16 %v3166
    %v3761 = vunpack.c.h.b16 %v3166
    %v3762 = vunpack.c.l.b16 %v3167
    %v3763 = vunpack.c.h.b16 %v3167
    %v3764 = vunpack.c.l.b16 %v3168
    %v3765 = vunpack.c.h.b16 %v3168
    %v3766 = vunpack.c.l.b16 %v3169
    %v3767 = vunpack.c.h.b16 %v3169
    %v3768 = vunpack.c.l.b16 %v3170
    %v3769 = vunpack.c.h.b16 %v3170
    %v3770 = vunpack.c.l.b16 %v3171
    %v3771 = vunpack.c.h.b16 %v3171
    %v3772 = vunpack.c.l.b16 %v3172
    %v3773 = vunpack.c.h.b16 %v3172
    %v3774 = vunpack.c.l.b16 %v3173
    %v3775 = vunpack.c.h.b16 %v3173
    %v3776 = vunpack.c.l.b16 %v3174
    %v3777 = vunpack.c.h.b16 %v3174
    %v3778 = vunpack.c.l.b16 %v3175
    %v3779 = vunpack.c.h.b16 %v3175
    %v3780 = vunpack.c.l.b16 %v3176
    %v3781 = vunpack.c.h.b16 %v3176
    %v3782 = vunpack.c.l.b16 %v3177
    %v3783 = vunpack.c.h.b16 %v3177
    %v3784 = vunpack.c.l.b16 %v3178
    %v3785 = vunpack.c.h.b16 %v3178
    %v3786 = vunpack.c.l.b16 %v3179
    %v3787 = vunpack.c.h.b16 %v3179
    %v3788 = vunpack.c.l.b16 %v3180
    %v3789 = vunpack.c.h.b16 %v3180
    %v3790 = vunpack.c.l.b16 %v3181
    %v3791 = vunpack.c.h.b16 %v3181
    %v3792 = vunpack.c.l.b16 %v3182
    %v3793 = vunpack.c.h.b16 %v3182
    %v3794 = vunpack.c.l.b16 %v3183
    %v3795 = vunpack.c.h.b16 %v3183
    %v3796 = vunpack.c.l.b16 %v3184
    %v3797 = vunpack.c.h.b16 %v3184
    %v3798 = vunpack.c.l.b16 %v3185
    %v3799 = vunpack.c.h.b16 %v3185
    %v3800 = vunpack.c.l.b16 %v3186
    %v3801 = vunpack.c.h.b16 %v3186
    %v3802 = vunpack.c.l.b16 %v3187
    %v3803 = vunpack.c.h.b16 %v3187
    %v3804 = vunpack.c.l.b16 %v3188
    %v3805 = vunpack.c.h.b16 %v3188
    %v3806 = vunpack.c.l.b16 %v3189
    %v3807 = vunpack.c.h.b16 %v3189
    %v3808 = vunpack.c.l.b16 %v3190
    %v3809 = vunpack.c.h.b16 %v3190
    %v3810 = vunpack.c.l.b16 %v3191
    %v3811 = vunpack.c.h.b16 %v3191
    %v3812 = vunpack.c.l.b16 %v3192
    %v3813 = vunpack.c.h.b16 %v3192
    %v3814 = vunpack.c.l.b16 %v3193
    %v3815 = vunpack.c.h.b16 %v3193
    %v3816 = vunpack.c.l.b16 %v3194
    %v3817 = vunpack.c.h.b16 %v3194
    %v3818 = vunpack.c.l.b16 %v3195
    %v3819 = vunpack.c.h.b16 %v3195
    %v3820 = vunpack.c.l.b16 %v3196
    %v3821 = vunpack.c.h.b16 %v3196
    %v3822 = vunpack.c.l.b16 %v3197
    %v3823 = vunpack.c.h.b16 %v3197
    %v3824 = vunpack.c.l.b16 %v3198
    %v3825 = vunpack.c.h.b16 %v3198
    %v3826 = vunpack.c.l.b16 %v3199
    %v3827 = vunpack.c.h.b16 %v3199
    %v3828 = vunpack.c.l.b16 %v3200
    %v3829 = vunpack.c.h.b16 %v3200
    %v3830 = vunpack.c.l.b16 %v3201
    %v3831 = vunpack.c.h.b16 %v3201
    %v3832 = vunpack.c.l.b16 %v3202
    %v3833 = vunpack.c.h.b16 %v3202
    %v3834 = vunpack.c.l.b16 %v3203
    %v3835 = vunpack.c.h.b16 %v3203
    %v3836 = vunpack.c.l.b16 %v3204
    %v3837 = vunpack.c.h.b16 %v3204
    %v3838 = vunpack.c.l.b16 %v3205
    %v3839 = vunpack.c.h.b16 %v3205
    %v3840 = vunpack.c.l.b16 %v3206
    %v3841 = vunpack.c.h.b16 %v3206
    %v3842 = vunpack.c.l.b16 %v3207
    %v3843 = vunpack.c.h.b16 %v3207
    %v3844 = vunpack.c.l.b16 %v3208
    %v3845 = vunpack.c.h.b16 %v3208
    %v3846 = vunpack.c.l.b16 %v3209
    %v3847 = vunpack.c.h.b16 %v3209
    %v3848 = vunpack.c.l.b16 %v3210
    %v3849 = vunpack.c.h.b16 %v3210
    %v3850 = vunpack.c.l.b16 %v3211
    %v3851 = vunpack.c.h.b16 %v3211
    %v3852 = vunpack.c.l.b16 %v3212
    %v3853 = vunpack.c.h.b16 %v3212
    %v3854 = vunpack.c.l.b16 %v3213
    %v3855 = vunpack.c.h.b16 %v3213
    %v3856 = vunpack.c.l.b16 %v3214
    %v3857 = vunpack.c.h.b16 %v3214
    %v3858 = vunpack.c.l.b16 %v3215
    %v3859 = vunpack.c.h.b16 %v3215
    %v3860 = vunpack.c.l.b16 %v3216
    %v3861 = vunpack.c.h.b16 %v3216
    %v3862 = vunpack.c.l.b16 %v3217
    %v3863 = vunpack.c.h.b16 %v3217
    %v3864 = vunpack.c.l.b16 %v3218
    %v3865 = vunpack.c.h.b16 %v3218
    %v3866 = vunpack.c.l.b16 %v3219
    %v3867 = vunpack.c.h.b16 %v3219
    %v3868 = vunpack.c.l.b16 %v3220
    %v3869 = vunpack.c.h.b16 %v3220
    %v3870 = vunpack.c.l.b16 %v3221
    %v3871 = vunpack.c.h.b16 %v3221
    %v3872 = vunpack.c.l.b16 %v3222
    %v3873 = vunpack.c.h.b16 %v3222
    %v3874 = vunpack.c.l.b16 %v3223
    %v3875 = vunpack.c.h.b16 %v3223
    %v3876 = vunpack.c.l.b16 %v3224
    %v3877 = vunpack.c.h.b16 %v3224
    %v3878 = vunpack.c.l.b16 %v3225
    %v3879 = vunpack.c.h.b16 %v3225
    %v3880 = vunpack.c.l.b16 %v3226
    %v3881 = vunpack.c.h.b16 %v3226
    %v3882 = vunpack.c.l.b16 %v3227
    %v3883 = vunpack.c.h.b16 %v3227
    %v3884 = vunpack.c.l.b16 %v3228
    %v3885 = vunpack.c.h.b16 %v3228
    %v3886 = vunpack.c.l.b16 %v3229
    %v3887 = vunpack.c.h.b16 %v3229
    %v3888 = vunpack.c.l.b16 %v3230
    %v3889 = vunpack.c.h.b16 %v3230
    %v3890 = vunpack.c.l.b16 %v3231
    %v3891 = vunpack.c.h.b16 %v3231
    %v3892 = vunpack.c.l.b16 %v3232
    %v3893 = vunpack.c.h.b16 %v3232
    %v3894 = vunpack.c.l.b16 %v3233
    %v3895 = vunpack.c.h.b16 %v3233
    %v3896 = vunpack.c.l.b16 %v3234
    %v3897 = vunpack.c.h.b16 %v3234
    %v3898 = vunpack.c.l.b16 %v3235
    %v3899 = vunpack.c.h.b16 %v3235
    %v3900 = vunpack.c.l.b16 %v3236
    %v3901 = vunpack.c.h.b16 %v3236
    %v3902 = vunpack.c.l.b16 %v3237
    %v3903 = vunpack.c.h.b16 %v3237
    %v3904 = vunpack.c.l.b16 %v3238
    %v3905 = vunpack.c.h.b16 %v3238
    %v3906 = vunpack.c.l.b16 %v3239
    %v3907 = vunpack.c.h.b16 %v3239
    %v3908 = vunpack.c.l.b16 %v3240
    %v3909 = vunpack.c.h.b16 %v3240
    %v3910 = vunpack.c.l.b16 %v3241
    %v3911 = vunpack.c.h.b16 %v3241
    %v3912 = vunpack.c.l.b16 %v3242
    %v3913 = vunpack.c.h.b16 %v3242
    %v3914 = vunpack.c.l.b16 %v3243
    %v3915 = vunpack.c.h.b16 %v3243
    %v3916 = vunpack.c.l.b16 %v3244
    %v3917 = vunpack.c.h.b16 %v3244
    %v3918 = vunpack.c.l.b16 %v3245
    %v3919 = vunpack.c.h.b16 %v3245
    %v3920 = vunpack.c.l.b16 %v3246
    %v3921 = vunpack.c.h.b16 %v3246
    %v3922 = vunpack.c.l.b16 %v3247
    %v3923 = vunpack.c.h.b16 %v3247
    %v3924 = vunpack.c.l.b16 %v3248
    %v3925 = vunpack.c.h.b16 %v3248
    %v3926 = vunpack.c.l.b16 %v3249
    %v3927 = vunpack.c.h.b16 %v3249
    %v3928 = vunpack.c.l.b16 %v3250
    %v3929 = vunpack.c.h.b16 %v3250
    %v3930 = vunpack.c.l.b16 %v3251
    %v3931 = vunpack.c.h.b16 %v3251
    %v3932 = vunpack.c.l.b16 %v3252
    %v3933 = vunpack.c.h.b16 %v3252
    %v3934 = vunpack.c.l.b16 %v3253
    %v3935 = vunpack.c.h.b16 %v3253
    %v3936 = vunpack.c.l.b16 %v3254
    %v3937 = vunpack.c.h.b16 %v3254
    %v3938 = vunpack.c.l.b16 %v3255
    %v3939 = vunpack.c.h.b16 %v3255
    %v3940 = vunpack.c.l.b16 %v3256
    %v3941 = vunpack.c.h.b16 %v3256
    %v3942 = vunpack.c.l.b16 %v3257
    %v3943 = vunpack.c.h.b16 %v3257
    %v3944 = vunpack.c.l.b16 %v3258
    %v3945 = vunpack.c.h.b16 %v3258
    %v3946 = vunpack.c.l.b16 %v3259
    %v3947 = vunpack.c.h.b16 %v3259
    %v3948 = vunpack.c.l.b16 %v3260
    %v3949 = vunpack.c.h.b16 %v3260
    %v3950 = vunpack.c.l.b16 %v3261
    %v3951 = vunpack.c.h.b16 %v3261
    %v3952 = vunpack.c.l.b16 %v3262
    %v3953 = vunpack.c.h.b16 %v3262
    %v3954 = vunpack.c.l.b16 %v3263
    %v3955 = vunpack.c.h.b16 %v3263
    %v3956 = vunpack.c.l.b16 %v3264
    %v3957 = vunpack.c.h.b16 %v3264
    %v3958 = vunpack.c.l.b16 %v3265
    %v3959 = vunpack.c.h.b16 %v3265
    %v3960 = vunpack.c.l.b16 %v3266
    %v3961 = vunpack.c.h.b16 %v3266
    %v3962 = vunpack.c.l.b16 %v3267
    %v3963 = vunpack.c.h.b16 %v3267
    %v3964 = vunpack.c.l.b16 %v3268
    %v3965 = vunpack.c.h.b16 %v3268
    %v3966 = vunpack.c.l.b16 %v3269
    %v3967 = vunpack.c.h.b16 %v3269
    %v3968 = vunpack.c.l.b16 %v3270
    %v3969 = vunpack.c.h.b16 %v3270
    %v3970 = vunpack.c.l.b16 %v3271
    %v3971 = vunpack.c.h.b16 %v3271
    %v3972 = vunpack.c.l.b16 %v3272
    %v3973 = vunpack.c.h.b16 %v3272
    %v3974 = vunpack.c.l.b16 %v3273
    %v3975 = vunpack.c.h.b16 %v3273
    %v3976 = vunpack.c.l.b16 %v3274
    %v3977 = vunpack.c.h.b16 %v3274
    %v3978 = vunpack.c.l.b16 %v3275
    %v3979 = vunpack.c.h.b16 %v3275
    %v3980 = vunpack.c.l.b16 %v3276
    %v3981 = vunpack.c.h.b16 %v3276
    %v3982 = vunpack.c.l.b16 %v3277
    %v3983 = vunpack.c.h.b16 %v3277
    %v3984 = vunpack.c.l.b16 %v3278
    %v3985 = vunpack.c.h.b16 %v3278
    %v3986 = vunpack.c.l.b16 %v3279
    %v3987 = vunpack.c.h.b16 %v3279
    %v3988 = vunpack.c.l.b16 %v3280
    %v3989 = vunpack.c.h.b16 %v3280
    %v3990 = vunpack.c.l.b16 %v3281
    %v3991 = vunpack.c.h.b16 %v3281
    %v3992 = vunpack.c.l.b16 %v3282
    %v3993 = vunpack.c.h.b16 %v3282
    %v3994 = vunpack.c.l.b16 %v3283
    %v3995 = vunpack.c.h.b16 %v3283
    %v3996 = vunpack.c.l.b16 %v3284
    %v3997 = vunpack.c.h.b16 %v3284
    %v3998 = vunpack.c.l.b16 %v3285
    %v3999 = vunpack.c.h.b16 %v3285
    %v4000 = vunpack.c.l.b16 %v3286
    %v4001 = vunpack.c.h.b16 %v3286
    %v4002 = vunpack.c.l.b16 %v3287
    %v4003 = vunpack.c.h.b16 %v3287
    %v4004 = vunpack.c.l.b16 %v3288
    %v4005 = vunpack.c.h.b16 %v3288
    %v4006 = vunpack.c.l.b16 %v3289
    %v4007 = vunpack.c.h.b16 %v3289
    %v4008 = vunpack.c.l.b16 %v3290
    %v4009 = vunpack.c.h.b16 %v3290
    %v4010 = vunpack.c.l.b16 %v3291
    %v4011 = vunpack.c.h.b16 %v3291
    %v4012 = vunpack.c.l.b16 %v3292
    %v4013 = vunpack.c.h.b16 %v3292
    %v4014 = vunpack.c.l.b16 %v3293
    %v4015 = vunpack.c.h.b16 %v3293
    %v4016 = vunpack.c.l.b16 %v3294
    %v4017 = vunpack.c.h.b16 %v3294
    %v4018 = vunpack.c.l.b16 %v3295
    %v4019 = vunpack.c.h.b16 %v3295
    %v4020 = vunpack.c.l.b16 %v3296
    %v4021 = vunpack.c.h.b16 %v3296
    %v4022 = vunpack.c.l.b16 %v3297
    %v4023 = vunpack.c.h.b16 %v3297
    %v4024 = vunpack.c.l.b16 %v3298
    %v4025 = vunpack.c.h.b16 %v3298
    %v4026 = vunpack.c.l.b16 %v3299
    %v4027 = vunpack.c.h.b16 %v3299
    %v4028 = vunpack.c.l.b16 %v3300
    %v4029 = vunpack.c.h.b16 %v3300
    %v4030 = vunpack.c.l.b16 %v3301
    %v4031 = vunpack.c.h.b16 %v3301
    %v4032 = vunpack.c.l.b16 %v3302
    %v4033 = vunpack.c.h.b16 %v3302
    %v4034 = vunpack.c.l.b16 %v3303
    %v4035 = vunpack.c.h.b16 %v3303
    %v4036 = vunpack.c.l.b16 %v3304
    %v4037 = vunpack.c.h.b16 %v3304
    %v4038 = vunpack.c.l.b16 %v3305
    %v4039 = vunpack.c.h.b16 %v3305
    %v4040 = vunpack.c.l.b16 %v3306
    %v4041 = vunpack.c.h.b16 %v3306
    %v4042 = vunpack.c.l.b16 %v3307
    %v4043 = vunpack.c.h.b16 %v3307
    %v4044 = vunpack.c.l.b16 %v3308
    %v4045 = vunpack.c.h.b16 %v3308
    %v4046 = vunpack.c.l.b16 %v3309
    %v4047 = vunpack.c.h.b16 %v3309
    %v4048 = vunpack.c.l.b16 %v3310
    %v4049 = vunpack.c.h.b16 %v3310
    %v4050 = vunpack.c.l.b16 %v3311
    %v4051 = vunpack.c.h.b16 %v3311
    %v4052 = vunpack.c.l.b16 %v3312
    %v4053 = vunpack.c.h.b16 %v3312
    %v4054 = vunpack.c.l.b16 %v3313
    %v4055 = vunpack.c.h.b16 %v3313
    %v4056 = vunpack.c.l.b16 %v3314
    %v4057 = vunpack.c.h.b16 %v3314
    %v4058 = vunpack.c.l.b16 %v3315
    %v4059 = vunpack.c.h.b16 %v3315
    %v4060 = vunpack.c.l.b16 %v3316
    %v4061 = vunpack.c.h.b16 %v3316
    %v4062 = vunpack.c.l.b16 %v3317
    %v4063 = vunpack.c.h.b16 %v3317
    %v4064 = vunpack.c.l.b16 %v3318
    %v4065 = vunpack.c.h.b16 %v3318
    %v4066 = vunpack.c.l.b16 %v3319
    %v4067 = vunpack.c.h.b16 %v3319
    %v4068 = vunpack.c.l.b16 %v3320
    %v4069 = vunpack.c.h.b16 %v3320
    %v4070 = vunpack.c.l.b16 %v3321
    %v4071 = vunpack.c.h.b16 %v3321
    %v4072 = vunpack.c.l.b16 %v3322
    %v4073 = vunpack.c.h.b16 %v3322
    %v4074 = vunpack.c.l.b16 %v3323
    %v4075 = vunpack.c.h.b16 %v3323
    %v4076 = vunpack.c.l.b16 %v3324
    %v4077 = vunpack.c.h.b16 %v3324
    %v4078 = vunpack.c.l.b16 %v3325
    %v4079 = vunpack.c.h.b16 %v3325
    %v4080 = vunpack.c.l.b16 %v3326
    %v4081 = vunpack.c.h.b16 %v3326
    %v4082 = vunpack.c.l.b16 %v3327
    %v4083 = vunpack.c.h.b16 %v3327
    %v4084 = vunpack.c.l.b16 %v3328
    %v4085 = vunpack.c.h.b16 %v3328
    %v4086 = vunpack.c.l.b16 %v3329
    %v4087 = vunpack.c.h.b16 %v3329
    %v4088 = vunpack.c.l.b16 %v3330
    %v4089 = vunpack.c.h.b16 %v3330
    %v4090 = vunpack.c.l.b16 %v3331
    %v4091 = vunpack.c.h.b16 %v3331
    %v4092 = vunpack.c.l.b16 %v3332
    %v4093 = vunpack.c.h.b16 %v3332
    %v4094 = vunpack.c.l.b16 %v3333
    %v4095 = vunpack.c.h.b16 %v3333
    %v4096 = vunpack.c.l.b16 %v3334
    %v4097 = vunpack.c.h.b16 %v3334
    %v4098 = vunpack.c.l.b16 %v3335
    %v4099 = vunpack.c.h.b16 %v3335
    %v4100 = vunpack.c.l.b16 %v3336
    %v4101 = vunpack.c.h.b16 %v3336
    %v4102 = vunpack.c.l.b16 %v3337
    %v4103 = vunpack.c.h.b16 %v3337
    %v4104 = vunpack.c.l.b16 %v3338
    %v4105 = vunpack.c.h.b16 %v3338
    %v4106 = vunpack.c.l.b16 %v3339
    %v4107 = vunpack.c.h.b16 %v3339
    %v4108 = vunpack.c.l.b16 %v3340
    %v4109 = vunpack.c.h.b16 %v3340
    %v4110 = vunpack.c.l.b16 %v3341
    %v4111 = vunpack.c.h.b16 %v3341
    %v4112 = vunpack.c.l.b16 %v3342
    %v4113 = vunpack.c.h.b16 %v3342
    %v4114 = vunpack.c.l.b16 %v3343
    %v4115 = vunpack.c.h.b16 %v3343
    %v4116 = vunpack.c.l.b16 %v3344
    %v4117 = vunpack.c.h.b16 %v3344
    %v4118 = vunpack.c.l.b16 %v3345
    %v4119 = vunpack.c.h.b16 %v3345
    %v4120 = vunpack.c.l.b16 %v3346
    %v4121 = vunpack.c.h.b16 %v3346
    %v4122 = vunpack.c.l.b16 %v3347
    %v4123 = vunpack.c.h.b16 %v3347
    %v4124 = vunpack.c.l.b16 %v3348
    %v4125 = vunpack.c.h.b16 %v3348
    %v4126 = vunpack.c.l.b16 %v3349
    %v4127 = vunpack.c.h.b16 %v3349
    %v4128 = vunpack.c.l.b16 %v3350
    %v4129 = vunpack.c.h.b16 %v3350
    %v4130 = vunpack.c.l.b16 %v3351
    %v4131 = vunpack.c.h.b16 %v3351
    %v4132 = vunpack.c.l.b16 %v3352
    %v4133 = vunpack.c.h.b16 %v3352
    %v4134 = vunpack.c.l.b16 %v3353
    %v4135 = vunpack.c.h.b16 %v3353
    %v4136 = vunpack.c.l.b16 %v3354
    %v4137 = vunpack.c.h.b16 %v3354
    %v4138 = vunpack.c.l.b16 %v3355
    %v4139 = vunpack.c.h.b16 %v3355
    %v4140 = vunpack.c.l.b16 %v3356
    %v4141 = vunpack.c.h.b16 %v3356
    %v4142 = vunpack.c.l.b16 %v3357
    %v4143 = vunpack.c.h.b16 %v3357
    %v4144 = vpack.c.b16 %v3640, %v3632
    %v4145 = vpack.c.b16 %v3641, %v3633
    %v4146 = vpack.c.b16 %v3642, %v3634
    %v4147 = vpack.c.b16 %v3643, %v3635
    %v4148 = vpack.c.b16 %v3644, %v3636
    %v4149 = vpack.c.b16 %v3645, %v3637
    %v4150 = vpack.c.b16 %v3646, %v3638
    %v4151 = vpack.c.b16 %v3647, %v3639
    %v4152 = vpack.c.b16 %v3656, %v3648
    %v4153 = vpack.c.b16 %v3657, %v3649
    %v4154 = vpack.c.b16 %v3658, %v3650
    %v4155 = vpack.c.b16 %v3659, %v3651
    %v4156 = vpack.c.b16 %v3660, %v3652
    %v4157 = vpack.c.b16 %v3661, %v3653
    %v4158 = vpack.c.b16 %v3662, %v3654
    %v4159 = vpack.c.b16 %v3663, %v3655
    %v4160 = vpack.c.b16 %v3672, %v3664
    %v4161 = vpack.c.b16 %v3673, %v3665
    %v4162 = vpack.c.b16 %v3674, %v3666
    %v4163 = vpack.c.b16 %v3675, %v3667
    %v4164 = vpack.c.b16 %v3676, %v3668
    %v4165 = vpack.c.b16 %v3677, %v3669
    %v4166 = vpack.c.b16 %v3678, %v3670
    %v4167 = vpack.c.b16 %v3679, %v3671
    %v4168 = vpack.c.b16 %v3688, %v3680
    %v4169 = vpack.c.b16 %v3689, %v3681
    %v4170 = vpack.c.b16 %v3690, %v3682
    %v4171 = vpack.c.b16 %v3691, %v3683
    %v4172 = vpack.c.b16 %v3692, %v3684
    %v4173 = vpack.c.b16 %v3693, %v3685
    %v4174 = vpack.c.b16 %v3694, %v3686
    %v4175 = vpack.c.b16 %v3695, %v3687
    %v4176 = vpack.c.b16 %v3704, %v3696
    %v4177 = vpack.c.b16 %v3705, %v3697
    %v4178 = vpack.c.b16 %v3706, %v3698
    %v4179 = vpack.c.b16 %v3707, %v3699
    %v4180 = vpack.c.b16 %v3708, %v3700
    %v4181 = vpack.c.b16 %v3709, %v3701
    %v4182 = vpack.c.b16 %v3710, %v3702
    %v4183 = vpack.c.b16 %v3711, %v3703
    %v4184 = vpack.c.b16 %v3720, %v3712
    %v4185 = vpack.c.b16 %v3721, %v3713
    %v4186 = vpack.c.b16 %v3722, %v3714
    %v4187 = vpack.c.b16 %v3723, %v3715
    %v4188 = vpack.c.b16 %v3724, %v3716
    %v4189 = vpack.c.b16 %v3725, %v3717
    %v4190 = vpack.c.b16 %v3726, %v3718
    %v4191 = vpack.c.b16 %v3727, %v3719
    %v4192 = vpack.c.b16 %v3736, %v3728
    %v4193 = vpack.c.b16 %v3737, %v3729
    %v4194 = vpack.c.b16 %v3738, %v3730
    %v4195 = vpack.c.b16 %v3739, %v3731
    %v4196 = vpack.c.b16 %v3740, %v3732
    %v4197 = vpack.c.b16 %v3741, %v3733
    %v4198 = vpack.c.b16 %v3742, %v3734
    %v4199 = vpack.c.b16 %v3743, %v3735
    %v4200 = vpack.c.b16 %v3752, %v3744
    %v4201 = vpack.c.b16 %v3753, %v3745
    %v4202 = vpack.c.b16 %v3754, %v3746
    %v4203 = vpack.c.b16 %v3755, %v3747
    %v4204 = vpack.c.b16 %v3756, %v3748
    %v4205 = vpack.c.b16 %v3757, %v3749
    %v4206 = vpack.c.b16 %v3758, %v3750
    %v4207 = vpack.c.b16 %v3759, %v3751
    %v4208 = vpack.c.b16 %v3768, %v3760
    %v4209 = vpack.c.b16 %v3769, %v3761
    %v4210 = vpack.c.b16 %v3770, %v3762
    %v4211 = vpack.c.b16 %v3771, %v3763
    %v4212 = vpack.c.b16 %v3772, %v3764
    %v4213 = vpack.c.b16 %v3773, %v3765
    %v4214 = vpack.c.b16 %v3774, %v3766
    %v4215 = vpack.c.b16 %v3775, %v3767
    %v4216 = vpack.c.b16 %v3784, %v3776
    %v4217 = vpack.c.b16 %v3785, %v3777
    %v4218 = vpack.c.b16 %v3786, %v3778
    %v4219 = vpack.c.b16 %v3787, %v3779
    %v4220 = vpack.c.b16 %v3788, %v3780
    %v4221 = vpack.c.b16 %v3789, %v3781
    %v4222 = vpack.c.b16 %v3790, %v3782
    %v4223 = vpack.c.b16 %v3791, %v3783
    %v4224 = vpack.c.b16 %v3800, %v3792
    %v4225 = vpack.c.b16 %v3801, %v3793
    %v4226 = vpack.c.b16 %v3802, %v3794
    %v4227 = vpack.c.b16 %v3803, %v3795
    %v4228 = vpack.c.b16 %v3804, %v3796
    %v4229 = vpack.c.b16 %v3805, %v3797
    %v4230 = vpack.c.b16 %v3806, %v3798
    %v4231 = vpack.c.b16 %v3807, %v3799
    %v4232 = vpack.c.b16 %v3816, %v3808
    %v4233 = vpack.c.b16 %v3817, %v3809
    %v4234 = vpack.c.b16 %v3818, %v3810
    %v4235 = vpack.c.b16 %v3819, %v3811
    %v4236 = vpack.c.b16 %v3820, %v3812
    %v4237 = vpack.c.b16 %v3821, %v3813
    %v4238 = vpack.c.b16 %v3822, %v3814
    %v4239 = vpack.c.b16 %v3823, %v3815
    %v4240 = vpack.c.b16 %v3832, %v3824
    %v4241 = vpack.c.b16 %v3833, %v3825
    %v4242 = vpack.c.b16 %v3834, %v3826
    %v4243 = vpack.c.b16 %v3835, %v3827
    %v4244 = vpack.c.b16 %v3836, %v3828
    %v4245 = vpack.c.b16 %v3837, %v3829
    %v4246 = vpack.c.b16 %v3838, %v3830
    %v4247 = vpack.c.b16 %v3839, %v3831
    %v4248 = vpack.c.b16 %v3848, %v3840
    %v4249 = vpack.c.b16 %v3849, %v3841
    %v4250 = vpack.c.b16 %v3850, %v3842
    %v4251 = vpack.c.b16 %v3851, %v3843
    %v4252 = vpack.c.b16 %v3852, %v3844
    %v4253 = vpack.c.b16 %v3853, %v3845
    %v4254 = vpack.c.b16 %v3854, %v3846
    %v4255 = vpack.c.b16 %v3855, %v3847
    %v4256 = vpack.c.b16 %v3864, %v3856
    %v4257 = vpack.c.b16 %v3865, %v3857
    %v4258 = vpack.c.b16 %v3866, %v3858
    %v4259 = vpack.c.b16 %v3867, %v3859
    %v4260 = vpack.c.b16 %v3868, %v3860
    %v4261 = vpack.c.b16 %v3869, %v3861
    %v4262 = vpack.c.b16 %v3870, %v3862
    %v4263 = vpack.c.b16 %v3871, %v3863
    %v4264 = vpack.c.b16 %v3880, %v3872
    %v4265 = vpack.c.b16 %v3881, %v3873
    %v4266 = vpack.c.b16 %v3882, %v3874
    %v4267 = vpack.c.b16 %v3883, %v3875
    %v4268 = vpack.c.b16 %v3884, %v3876
    %v4269 = vpack.c.b16 %v3885, %v3877
    %v4270 = vpack.c.b16 %v3886, %v3878
    %v4271 = vpack.c.b16 %v3887, %v3879
    %v4272 = vpack.c.b16 %v3896, %v3888
    %v4273 = vpack.c.b16 %v3897, %v3889
    %v4274 = vpack.c.b16 %v3898, %v3890
    %v4275 = vpack.c.b16 %v3899, %v3891
    %v4276 = vpack.c.b16 %v3900, %v3892
    %v4277 = vpack.c.b16 %v3901, %v3893
    %v4278 = vpack.c.b16 %v3902, %v3894
    %v4279 = vpack.c.b16 %v3903, %v3895
    %v4280 = vpack.c.b16 %v3912, %v3904
    %v4281 = vpack.c.b16 %v3913, %v3905
    %v4282 = vpack.c.b16 %v3914, %v3906
    %v4283 = vpack.c.b16 %v3915, %v3907
    %v4284 = vpack.c.b16 %v3916, %v3908
    %v4285 = vpack.c.b16 %v3917, %v3909
    %v4286 = vpack.c.b16 %v3918, %v3910
    %v4287 = vpack.c.b16 %v3919, %v3911
    %v4288 = vpack.c.b16 %v3928, %v3920
    %v4289 = vpack.c.b16 %v3929, %v3921
    %v4290 = vpack.c.b16 %v3930, %v3922
    %v4291 = vpack.c.b16 %v3931, %v3923
    %v4292 = vpack.c.b16 %v3932, %v3924
    %v4293 = vpack.c.b16 %v3933, %v3925
    %v4294 = vpack.c.b16 %v3934, %v3926
    %v4295 = vpack.c.b16 %v3935, %v3927
    %v4296 = vpack.c.b16 %v3944, %v3936
    %v4297 = vpack.c.b16 %v3945, %v3937
    %v4298 = vpack.c.b16 %v3946, %v3938
    %v4299 = vpack.c.b16 %v3947, %v3939
    %v4300 = vpack.c.b16 %v3948, %v3940
    %v4301 = vpack.c.b16 %v3949, %v3941
    %v4302 = vpack.c.b16 %v3950, %v3942
    %v4303 = vpack.c.b16 %v3951, %v3943
    %v4304 = vpack.c.b16 %v3960, %v3952
    %v4305 = vpack.c.b16 %v3961, %v3953
    %v4306 = vpack.c.b16 %v3962, %v3954
    %v4307 = vpack.c.b16 %v3963, %v3955
    %v4308 = vpack.c.b16 %v3964, %v3956
    %v4309 = vpack.c.b16 %v3965, %v3957
    %v4310 = vpack.c.b16 %v3966, %v3958
    %v4311 = vpack.c.b16 %v3967, %v3959
    %v4312 = vpack.c.b16 %v3976, %v3968
    %v4313 = vpack.c.b16 %v3977, %v3969
    %v4314 = vpack.c.b16 %v3978, %v3970
    %v4315 = vpack.c.b16 %v3979, %v3971
    %v4316 = vpack.c.b16 %v3980, %v3972
    %v4317 = vpack.c.b16 %v3981, %v3973
    %v4318 = vpack.c.b16 %v3982, %v3974
    %v4319 = vpack.c.b16 %v3983, %v3975
    %v4320 = vpack.c.b16 %v3992, %v3984
    %v4321 = vpack.c.b16 %v3993, %v3985
    %v4322 = vpack.c.b16 %v3994, %v3986
    %v4323 = vpack.c.b16 %v3995, %v3987
    %v4324 = vpack.c.b16 %v3996, %v3988
    %v4325 = vpack.c.b16 %v3997, %v3989
    %v4326 = vpack.c.b16 %v3998, %v3990
    %v4327 = vpack.c.b16 %v3999, %v3991
    %v4328 = vpack.c.b16 %v4008, %v4000
    %v4329 = vpack.c.b16 %v4009, %v4001
    %v4330 = vpack.c.b16 %v4010, %v4002
    %v4331 = vpack.c.b16 %v4011, %v4003
    %v4332 = vpack.c.b16 %v4012, %v4004
    %v4333 = vpack.c.b16 %v4013, %v4005
    %v4334 = vpack.c.b16 %v4014, %v4006
    %v4335 = vpack.c.b16 %v4015, %v4007
    %v4336 = vpack.c.b16 %v4024, %v4016
    %v4337 = vpack.c.b16 %v4025, %v4017
    %v4338 = vpack.c.b16 %v4026, %v4018
    %v4339 = vpack.c.b16 %v4027, %v4019
    %v4340 = vpack.c.b16 %v4028, %v4020
    %v4341 = vpack.c.b16 %v4029, %v4021
    %v4342 = vpack.c.b16 %v4030, %v4022
    %v4343 = vpack.c.b16 %v4031, %v4023
    %v4344 = vpack.c.b16 %v4040, %v4032
    %v4345 = vpack.c.b16 %v4041, %v4033
    %v4346 = vpack.c.b16 %v4042, %v4034
    %v4347 = vpack.c.b16 %v4043, %v4035
    %v4348 = vpack.c.b16 %v4044, %v4036
    %v4349 = vpack.c.b16 %v4045, %v4037
    %v4350 = vpack.c.b16 %v4046, %v4038
    %v4351 = vpack.c.b16 %v4047, %v4039
    %v4352 = vpack.c.b16 %v4056, %v4048
    %v4353 = vpack.c.b16 %v4057, %v4049
    %v4354 = vpack.c.b16 %v4058, %v4050
    %v4355 = vpack.c.b16 %v4059, %v4051
    %v4356 = vpack.c.b16 %v4060, %v4052
    %v4357 = vpack.c.b16 %v4061, %v4053
    %v4358 = vpack.c.b16 %v4062, %v4054
    %v4359 = vpack.c.b16 %v4063, %v4055
    %v4360 = vpack.c.b16 %v4072, %v4064
    %v4361 = vpack.c.b16 %v4073, %v4065
    %v4362 = vpack.c.b16 %v4074, %v4066
    %v4363 = vpack.c.b16 %v4075, %v4067
    %v4364 = vpack.c.b16 %v4076, %v4068
    %v4365 = vpack.c.b16 %v4077, %v4069
    %v4366 = vpack.c.b16 %v4078, %v4070
    %v4367 = vpack.c.b16 %v4079, %v4071
    %v4368 = vpack.c.b16 %v4088, %v4080
    %v4369 = vpack.c.b16 %v4089, %v4081
    %v4370 = vpack.c.b16 %v4090, %v4082
    %v4371 = vpack.c.b16 %v4091, %v4083
    %v4372 = vpack.c.b16 %v4092, %v4084
    %v4373 = vpack.c.b16 %v4093, %v4085
    %v4374 = vpack.c.b16 %v4094, %v4086
    %v4375 = vpack.c.b16 %v4095, %v4087
    %v4376 = vpack.c.b16 %v4104, %v4096
    %v4377 = vpack.c.b16 %v4105, %v4097
    %v4378 = vpack.c.b16 %v4106, %v4098
    %v4379 = vpack.c.b16 %v4107, %v4099
    %v4380 = vpack.c.b16 %v4108, %v4100
    %v4381 = vpack.c.b16 %v4109, %v4101
    %v4382 = vpack.c.b16 %v4110, %v4102
    %v4383 = vpack.c.b16 %v4111, %v4103
    %v4384 = vpack.c.b16 %v4120, %v4112
    %v4385 = vpack.c.b16 %v4121, %v4113
    %v4386 = vpack.c.b16 %v4122, %v4114
    %v4387 = vpack.c.b16 %v4123, %v4115
    %v4388 = vpack.c.b16 %v4124, %v4116
    %v4389 = vpack.c.b16 %v4125, %v4117
    %v4390 = vpack.c.b16 %v4126, %v4118
    %v4391 = vpack.c.b16 %v4127, %v4119
    %v4392 = vpack.c.b16 %v4136, %v4128
    %v4393 = vpack.c.b16 %v4137, %v4129
    %v4394 = vpack.c.b16 %v4138, %v4130
    %v4395 = vpack.c.b16 %v4139, %v4131
    %v4396 = vpack.c.b16 %v4140, %v4132
    %v4397 = vpack.c.b16 %v4141, %v4133
    %v4398 = vpack.c.b16 %v4142, %v4134
    %v4399 = vpack.c.b16 %v4143, %v4135
    %4656 = vmatpush.bf16.msra.mxu0 %v4200
    %4657 = vmatpush.bf16.msra.mxu0 %v4192
    %4658 = vmatpush.bf16.msra.mxu0 %v4184
    %4659 = vmatpush.bf16.msra.mxu0 %v4176
    %4660 = vmatpush.bf16.msra.mxu0 %v4168
    %4661 = vmatpush.bf16.msra.mxu0 %v4160
    %4662 = vmatpush.bf16.msra.mxu0 %v4152
    %4663 = vmatpush.bf16.msra.mxu0 %v4144
    %4664 = vmatmul.bf16.gmra.mxu0 %v3098
    %v4665 = vpop.f32.mrf.mxu0
    %v4666 = vadd.f32 %v3360, %v4665
    %v4667 = vpop.f32.mrf.mxu0
    %4668 = vdwg.mxu0
    %4669 = vmatpush.bf16.msra.mxu0 %v4264
    %4670 = vmatpush.bf16.msra.mxu0 %v4256
    %4671 = vmatpush.bf16.msra.mxu0 %v4248
    %4672 = vmatpush.bf16.msra.mxu0 %v4240
    %4673 = vmatpush.bf16.msra.mxu0 %v4232
    %4674 = vmatpush.bf16.msra.mxu0 %v4224
    %4675 = vmatpush.bf16.msra.mxu0 %v4216
    %4676 = vmatpush.bf16.msra.mxu0 %v4208
    %4677 = vmatmul.bf16.gmra.mxu0 %v3099
    %v4678 = vpop.f32.mrf.mxu0
    %v4679 = vadd.f32 %v4666, %v4678
    %v4680 = vpop.f32.mrf.mxu0
    %4681 = vdwg.mxu0
    %4682 = vmatpush.bf16.msra.mxu0 %v4328
    %4683 = vmatpush.bf16.msra.mxu0 %v4320
    %4684 = vmatpush.bf16.msra.mxu0 %v4312
    %4685 = vmatpush.bf16.msra.mxu0 %v4304
    %4686 = vmatpush.bf16.msra.mxu0 %v4296
    %4687 = vmatpush.bf16.msra.mxu0 %v4288
    %4688 = vmatpush.bf16.msra.mxu0 %v4280
    %4689 = vmatpush.bf16.msra.mxu0 %v4272
    %4690 = vmatmul.bf16.gmra.mxu0 %v3100
    %v4691 = vpop.f32.mrf.mxu0
    %v4692 = vadd.f32 %v4679, %v4691
    %v4693 = vpop.f32.mrf.mxu0
    %4694 = vdwg.mxu0
    %4695 = vmatpush.bf16.msra.mxu0 %v4392
    %4696 = vmatpush.bf16.msra.mxu0 %v4384
    %4697 = vmatpush.bf16.msra.mxu0 %v4376
    %4698 = vmatpush.bf16.msra.mxu0 %v4368
    %4699 = vmatpush.bf16.msra.mxu0 %v4360
    %4700 = vmatpush.bf16.msra.mxu0 %v4352
    %4701 = vmatpush.bf16.msra.mxu0 %v4344
    %4702 = vmatpush.bf16.msra.mxu0 %v4336
    %4703 = vmatmul.bf16.gmra.mxu0 %v3101
    %v4704 = vpop.f32.mrf.mxu0
    %v4705 = vadd.f32 %v4692, %v4704
    %v4706 = vpop.f32.mrf.mxu0
    %4707 = vdwg.mxu0
    %4708 = vmatpush.bf16.msra.mxu0 %v4201
    %4709 = vmatpush.bf16.msra.mxu0 %v4193
    %4710 = vmatpush.bf16.msra.mxu0 %v4185
    %4711 = vmatpush.bf16.msra.mxu0 %v4177
    %4712 = vmatpush.bf16.msra.mxu0 %v4169
    %4713 = vmatpush.bf16.msra.mxu0 %v4161
    %4714 = vmatpush.bf16.msra.mxu0 %v4153
    %4715 = vmatpush.bf16.msra.mxu0 %v4145
    %4716 = vmatmul.bf16.gmra.mxu0 %v3098
    %v4717 = vpop.f32.mrf.mxu0
    %v4718 = vadd.f32 %v3361, %v4717
    %v4719 = vpop.f32.mrf.mxu0
    %4720 = vdwg.mxu0
    %4721 = vmatpush.bf16.msra.mxu0 %v4265
    %4722 = vmatpush.bf16.msra.mxu0 %v4257
    %4723 = vmatpush.bf16.msra.mxu0 %v4249
    %4724 = vmatpush.bf16.msra.mxu0 %v4241
    %4725 = vmatpush.bf16.msra.mxu0 %v4233
    %4726 = vmatpush.bf16.msra.mxu0 %v4225
    %4727 = vmatpush.bf16.msra.mxu0 %v4217
    %4728 = vmatpush.bf16.msra.mxu0 %v4209
    %4729 = vmatmul.bf16.gmra.mxu0 %v3099
    %v4730 = vpop.f32.mrf.mxu0
    %v4731 = vadd.f32 %v4718, %v4730
    %v4732 = vpop.f32.mrf.mxu0
    %4733 = vdwg.mxu0
    %4734 = vmatpush.bf16.msra.mxu0 %v4329
    %4735 = vmatpush.bf16.msra.mxu0 %v4321
    %4736 = vmatpush.bf16.msra.mxu0 %v4313
    %4737 = vmatpush.bf16.msra.mxu0 %v4305
    %4738 = vmatpush.bf16.msra.mxu0 %v4297
    %4739 = vmatpush.bf16.msra.mxu0 %v4289
    %4740 = vmatpush.bf16.msra.mxu0 %v4281
    %4741 = vmatpush.bf16.msra.mxu0 %v4273
    %4742 = vmatmul.bf16.gmra.mxu0 %v3100
    %v4743 = vpop.f32.mrf.mxu0
    %v4744 = vadd.f32 %v4731, %v4743
    %v4745 = vpop.f32.mrf.mxu0
    %4746 = vdwg.mxu0
    %4747 = vmatpush.bf16.msra.mxu0 %v4393
    %4748 = vmatpush.bf16.msra.mxu0 %v4385
    %4749 = vmatpush.bf16.msra.mxu0 %v4377
    %4750 = vmatpush.bf16.msra.mxu0 %v4369
    %4751 = vmatpush.bf16.msra.mxu0 %v4361
    %4752 = vmatpush.bf16.msra.mxu0 %v4353
    %4753 = vmatpush.bf16.msra.mxu0 %v4345
    %4754 = vmatpush.bf16.msra.mxu0 %v4337
    %4755 = vmatmul.bf16.gmra.mxu0 %v3101
    %v4756 = vpop.f32.mrf.mxu0
    %v4757 = vadd.f32 %v4744, %v4756
    %v4758 = vpop.f32.mrf.mxu0
    %4759 = vdwg.mxu0
    %4760 = vmatpush.bf16.msra.mxu0 %v4202
    %4761 = vmatpush.bf16.msra.mxu0 %v4194
    %4762 = vmatpush.bf16.msra.mxu0 %v4186
    %4763 = vmatpush.bf16.msra.mxu0 %v4178
    %4764 = vmatpush.bf16.msra.mxu0 %v4170
    %4765 = vmatpush.bf16.msra.mxu0 %v4162
    %4766 = vmatpush.bf16.msra.mxu0 %v4154
    %4767 = vmatpush.bf16.msra.mxu0 %v4146
    %4768 = vmatmul.bf16.gmra.mxu0 %v3098
    %v4769 = vpop.f32.mrf.mxu0
    %v4770 = vadd.f32 %v3362, %v4769
    %v4771 = vpop.f32.mrf.mxu0
    %4772 = vdwg.mxu0
    %4773 = vmatpush.bf16.msra.mxu0 %v4266
    %4774 = vmatpush.bf16.msra.mxu0 %v4258
    %4775 = vmatpush.bf16.msra.mxu0 %v4250
    %4776 = vmatpush.bf16.msra.mxu0 %v4242
    %4777 = vmatpush.bf16.msra.mxu0 %v4234
    %4778 = vmatpush.bf16.msra.mxu0 %v4226
    %4779 = vmatpush.bf16.msra.mxu0 %v4218
    %4780 = vmatpush.bf16.msra.mxu0 %v4210
    %4781 = vmatmul.bf16.gmra.mxu0 %v3099
    %v4782 = vpop.f32.mrf.mxu0
    %v4783 = vadd.f32 %v4770, %v4782
    %v4784 = vpop.f32.mrf.mxu0
    %4785 = vdwg.mxu0
    %4786 = vmatpush.bf16.msra.mxu0 %v4330
    %4787 = vmatpush.bf16.msra.mxu0 %v4322
    %4788 = vmatpush.bf16.msra.mxu0 %v4314
    %4789 = vmatpush.bf16.msra.mxu0 %v4306
    %4790 = vmatpush.bf16.msra.mxu0 %v4298
    %4791 = vmatpush.bf16.msra.mxu0 %v4290
    %4792 = vmatpush.bf16.msra.mxu0 %v4282
    %4793 = vmatpush.bf16.msra.mxu0 %v4274
    %4794 = vmatmul.bf16.gmra.mxu0 %v3100
    %v4795 = vpop.f32.mrf.mxu0
    %v4796 = vadd.f32 %v4783, %v4795
    %v4797 = vpop.f32.mrf.mxu0
    %4798 = vdwg.mxu0
    %4799 = vmatpush.bf16.msra.mxu0 %v4394
    %4800 = vmatpush.bf16.msra.mxu0 %v4386
    %4801 = vmatpush.bf16.msra.mxu0 %v4378
    %4802 = vmatpush.bf16.msra.mxu0 %v4370
    %4803 = vmatpush.bf16.msra.mxu0 %v4362
    %4804 = vmatpush.bf16.msra.mxu0 %v4354
    %4805 = vmatpush.bf16.msra.mxu0 %v4346
    %4806 = vmatpush.bf16.msra.mxu0 %v4338
    %4807 = vmatmul.bf16.gmra.mxu0 %v3101
    %v4808 = vpop.f32.mrf.mxu0
    %v4809 = vadd.f32 %v4796, %v4808
    %v4810 = vpop.f32.mrf.mxu0
    %4811 = vdwg.mxu0
    %4812 = vmatpush.bf16.msra.mxu0 %v4203
    %4813 = vmatpush.bf16.msra.mxu0 %v4195
    %4814 = vmatpush.bf16.msra.mxu0 %v4187
    %4815 = vmatpush.bf16.msra.mxu0 %v4179
    %4816 = vmatpush.bf16.msra.mxu0 %v4171
    %4817 = vmatpush.bf16.msra.mxu0 %v4163
    %4818 = vmatpush.bf16.msra.mxu0 %v4155
    %4819 = vmatpush.bf16.msra.mxu0 %v4147
    %4820 = vmatmul.bf16.gmra.mxu0 %v3098
    %v4821 = vpop.f32.mrf.mxu0
    %v4822 = vadd.f32 %v3363, %v4821
    %v4823 = vpop.f32.mrf.mxu0
    %4824 = vdwg.mxu0
    %4825 = vmatpush.bf16.msra.mxu0 %v4267
    %4826 = vmatpush.bf16.msra.mxu0 %v4259
    %4827 = vmatpush.bf16.msra.mxu0 %v4251
    %4828 = vmatpush.bf16.msra.mxu0 %v4243
    %4829 = vmatpush.bf16.msra.mxu0 %v4235
    %4830 = vmatpush.bf16.msra.mxu0 %v4227
    %4831 = vmatpush.bf16.msra.mxu0 %v4219
    %4832 = vmatpush.bf16.msra.mxu0 %v4211
    %4833 = vmatmul.bf16.gmra.mxu0 %v3099
    %v4834 = vpop.f32.mrf.mxu0
    %v4835 = vadd.f32 %v4822, %v4834
    %v4836 = vpop.f32.mrf.mxu0
    %4837 = vdwg.mxu0
    %4838 = vmatpush.bf16.msra.mxu0 %v4331
    %4839 = vmatpush.bf16.msra.mxu0 %v4323
    %4840 = vmatpush.bf16.msra.mxu0 %v4315
    %4841 = vmatpush.bf16.msra.mxu0 %v4307
    %4842 = vmatpush.bf16.msra.mxu0 %v4299
    %4843 = vmatpush.bf16.msra.mxu0 %v4291
    %4844 = vmatpush.bf16.msra.mxu0 %v4283
    %4845 = vmatpush.bf16.msra.mxu0 %v4275
    %4846 = vmatmul.bf16.gmra.mxu0 %v3100
    %v4847 = vpop.f32.mrf.mxu0
    %v4848 = vadd.f32 %v4835, %v4847
    %v4849 = vpop.f32.mrf.mxu0
    %4850 = vdwg.mxu0
    %4851 = vmatpush.bf16.msra.mxu0 %v4395
    %4852 = vmatpush.bf16.msra.mxu0 %v4387
    %4853 = vmatpush.bf16.msra.mxu0 %v4379
    %4854 = vmatpush.bf16.msra.mxu0 %v4371
    %4855 = vmatpush.bf16.msra.mxu0 %v4363
    %4856 = vmatpush.bf16.msra.mxu0 %v4355
    %4857 = vmatpush.bf16.msra.mxu0 %v4347
    %4858 = vmatpush.bf16.msra.mxu0 %v4339
    %4859 = vmatmul.bf16.gmra.mxu0 %v3101
    %v4860 = vpop.f32.mrf.mxu0
    %v4861 = vadd.f32 %v4848, %v4860
    %v4862 = vpop.f32.mrf.mxu0
    %4863 = vdwg.mxu0
    %4864 = vmatpush.bf16.msra.mxu0 %v4204
    %4865 = vmatpush.bf16.msra.mxu0 %v4196
    %4866 = vmatpush.bf16.msra.mxu0 %v4188
    %4867 = vmatpush.bf16.msra.mxu0 %v4180
    %4868 = vmatpush.bf16.msra.mxu0 %v4172
    %4869 = vmatpush.bf16.msra.mxu0 %v4164
    %4870 = vmatpush.bf16.msra.mxu0 %v4156
    %4871 = vmatpush.bf16.msra.mxu0 %v4148
    %4872 = vmatmul.bf16.gmra.mxu0 %v3098
    %v4873 = vpop.f32.mrf.mxu0
    %v4874 = vadd.f32 %v3364, %v4873
    %v4875 = vpop.f32.mrf.mxu0
    %4876 = vdwg.mxu0
    %4877 = vmatpush.bf16.msra.mxu0 %v4268
    %4878 = vmatpush.bf16.msra.mxu0 %v4260
    %4879 = vmatpush.bf16.msra.mxu0 %v4252
    %4880 = vmatpush.bf16.msra.mxu0 %v4244
    %4881 = vmatpush.bf16.msra.mxu0 %v4236
    %4882 = vmatpush.bf16.msra.mxu0 %v4228
    %4883 = vmatpush.bf16.msra.mxu0 %v4220
    %4884 = vmatpush.bf16.msra.mxu0 %v4212
    %4885 = vmatmul.bf16.gmra.mxu0 %v3099
    %v4886 = vpop.f32.mrf.mxu0
    %v4887 = vadd.f32 %v4874, %v4886
    %v4888 = vpop.f32.mrf.mxu0
    %4889 = vdwg.mxu0
    %4890 = vmatpush.bf16.msra.mxu0 %v4332
    %4891 = vmatpush.bf16.msra.mxu0 %v4324
    %4892 = vmatpush.bf16.msra.mxu0 %v4316
    %4893 = vmatpush.bf16.msra.mxu0 %v4308
    %4894 = vmatpush.bf16.msra.mxu0 %v4300
    %4895 = vmatpush.bf16.msra.mxu0 %v4292
    %4896 = vmatpush.bf16.msra.mxu0 %v4284
    %4897 = vmatpush.bf16.msra.mxu0 %v4276
    %4898 = vmatmul.bf16.gmra.mxu0 %v3100
    %v4899 = vpop.f32.mrf.mxu0
    %v4900 = vadd.f32 %v4887, %v4899
    %v4901 = vpop.f32.mrf.mxu0
    %4902 = vdwg.mxu0
    %4903 = vmatpush.bf16.msra.mxu0 %v4396
    %4904 = vmatpush.bf16.msra.mxu0 %v4388
    %4905 = vmatpush.bf16.msra.mxu0 %v4380
    %4906 = vmatpush.bf16.msra.mxu0 %v4372
    %4907 = vmatpush.bf16.msra.mxu0 %v4364
    %4908 = vmatpush.bf16.msra.mxu0 %v4356
    %4909 = vmatpush.bf16.msra.mxu0 %v4348
    %4910 = vmatpush.bf16.msra.mxu0 %v4340
    %4911 = vmatmul.bf16.gmra.mxu0 %v3101
    %v4912 = vpop.f32.mrf.mxu0
    %v4913 = vadd.f32 %v4900, %v4912
    %v4914 = vpop.f32.mrf.mxu0
    %4915 = vdwg.mxu0
    %4916 = vmatpush.bf16.msra.mxu0 %v4205
    %4917 = vmatpush.bf16.msra.mxu0 %v4197
    %4918 = vmatpush.bf16.msra.mxu0 %v4189
    %4919 = vmatpush.bf16.msra.mxu0 %v4181
    %4920 = vmatpush.bf16.msra.mxu0 %v4173
    %4921 = vmatpush.bf16.msra.mxu0 %v4165
    %4922 = vmatpush.bf16.msra.mxu0 %v4157
    %4923 = vmatpush.bf16.msra.mxu0 %v4149
    %4924 = vmatmul.bf16.gmra.mxu0 %v3098
    %v4925 = vpop.f32.mrf.mxu0
    %v4926 = vadd.f32 %v3365, %v4925
    %v4927 = vpop.f32.mrf.mxu0
    %4928 = vdwg.mxu0
    %4929 = vmatpush.bf16.msra.mxu0 %v4269
    %4930 = vmatpush.bf16.msra.mxu0 %v4261
    %4931 = vmatpush.bf16.msra.mxu0 %v4253
    %4932 = vmatpush.bf16.msra.mxu0 %v4245
    %4933 = vmatpush.bf16.msra.mxu0 %v4237
    %4934 = vmatpush.bf16.msra.mxu0 %v4229
    %4935 = vmatpush.bf16.msra.mxu0 %v4221
    %4936 = vmatpush.bf16.msra.mxu0 %v4213
    %4937 = vmatmul.bf16.gmra.mxu0 %v3099
    %v4938 = vpop.f32.mrf.mxu0
    %v4939 = vadd.f32 %v4926, %v4938
    %v4940 = vpop.f32.mrf.mxu0
    %4941 = vdwg.mxu0
    %4942 = vmatpush.bf16.msra.mxu0 %v4333
    %4943 = vmatpush.bf16.msra.mxu0 %v4325
    %4944 = vmatpush.bf16.msra.mxu0 %v4317
    %4945 = vmatpush.bf16.msra.mxu0 %v4309
    %4946 = vmatpush.bf16.msra.mxu0 %v4301
    %4947 = vmatpush.bf16.msra.mxu0 %v4293
    %4948 = vmatpush.bf16.msra.mxu0 %v4285
    %4949 = vmatpush.bf16.msra.mxu0 %v4277
    %4950 = vmatmul.bf16.gmra.mxu0 %v3100
    %v4951 = vpop.f32.mrf.mxu0
    %v4952 = vadd.f32 %v4939, %v4951
    %v4953 = vpop.f32.mrf.mxu0
    %4954 = vdwg.mxu0
    %4955 = vmatpush.bf16.msra.mxu0 %v4397
    %4956 = vmatpush.bf16.msra.mxu0 %v4389
    %4957 = vmatpush.bf16.msra.mxu0 %v4381
    %4958 = vmatpush.bf16.msra.mxu0 %v4373
    %4959 = vmatpush.bf16.msra.mxu0 %v4365
    %4960 = vmatpush.bf16.msra.mxu0 %v4357
    %4961 = vmatpush.bf16.msra.mxu0 %v4349
    %4962 = vmatpush.bf16.msra.mxu0 %v4341
    %4963 = vmatmul.bf16.gmra.mxu0 %v3101
    %v4964 = vpop.f32.mrf.mxu0
    %v4965 = vadd.f32 %v4952, %v4964
    %v4966 = vpop.f32.mrf.mxu0
    %4967 = vdwg.mxu0
    %4968 = vmatpush.bf16.msra.mxu0 %v4206
    %4969 = vmatpush.bf16.msra.mxu0 %v4198
    %4970 = vmatpush.bf16.msra.mxu0 %v4190
    %4971 = vmatpush.bf16.msra.mxu0 %v4182
    %4972 = vmatpush.bf16.msra.mxu0 %v4174
    %4973 = vmatpush.bf16.msra.mxu0 %v4166
    %4974 = vmatpush.bf16.msra.mxu0 %v4158
    %4975 = vmatpush.bf16.msra.mxu0 %v4150
    %4976 = vmatmul.bf16.gmra.mxu0 %v3098
    %v4977 = vpop.f32.mrf.mxu0
    %v4978 = vadd.f32 %v3366, %v4977
    %v4979 = vpop.f32.mrf.mxu0
    %4980 = vdwg.mxu0
    %4981 = vmatpush.bf16.msra.mxu0 %v4270
    %4982 = vmatpush.bf16.msra.mxu0 %v4262
    %4983 = vmatpush.bf16.msra.mxu0 %v4254
    %4984 = vmatpush.bf16.msra.mxu0 %v4246
    %4985 = vmatpush.bf16.msra.mxu0 %v4238
    %4986 = vmatpush.bf16.msra.mxu0 %v4230
    %4987 = vmatpush.bf16.msra.mxu0 %v4222
    %4988 = vmatpush.bf16.msra.mxu0 %v4214
    %4989 = vmatmul.bf16.gmra.mxu0 %v3099
    %v4990 = vpop.f32.mrf.mxu0
    %v4991 = vadd.f32 %v4978, %v4990
    %v4992 = vpop.f32.mrf.mxu0
    %4993 = vdwg.mxu0
    %4994 = vmatpush.bf16.msra.mxu0 %v4334
    %4995 = vmatpush.bf16.msra.mxu0 %v4326
    %4996 = vmatpush.bf16.msra.mxu0 %v4318
    %4997 = vmatpush.bf16.msra.mxu0 %v4310
    %4998 = vmatpush.bf16.msra.mxu0 %v4302
    %4999 = vmatpush.bf16.msra.mxu0 %v4294
    %5000 = vmatpush.bf16.msra.mxu0 %v4286
    %5001 = vmatpush.bf16.msra.mxu0 %v4278
    %5002 = vmatmul.bf16.gmra.mxu0 %v3100
    %v5003 = vpop.f32.mrf.mxu0
    %v5004 = vadd.f32 %v4991, %v5003
    %v5005 = vpop.f32.mrf.mxu0
    %5006 = vdwg.mxu0
    %5007 = vmatpush.bf16.msra.mxu0 %v4398
    %5008 = vmatpush.bf16.msra.mxu0 %v4390
    %5009 = vmatpush.bf16.msra.mxu0 %v4382
    %5010 = vmatpush.bf16.msra.mxu0 %v4374
    %5011 = vmatpush.bf16.msra.mxu0 %v4366
    %5012 = vmatpush.bf16.msra.mxu0 %v4358
    %5013 = vmatpush.bf16.msra.mxu0 %v4350
    %5014 = vmatpush.bf16.msra.mxu0 %v4342
    %5015 = vmatmul.bf16.gmra.mxu0 %v3101
    %v5016 = vpop.f32.mrf.mxu0
    %v5017 = vadd.f32 %v5004, %v5016
    %v5018 = vpop.f32.mrf.mxu0
    %5019 = vdwg.mxu0
    %5020 = vmatpush.bf16.msra.mxu0 %v4207
    %5021 = vmatpush.bf16.msra.mxu0 %v4199
    %5022 = vmatpush.bf16.msra.mxu0 %v4191
    %5023 = vmatpush.bf16.msra.mxu0 %v4183
    %5024 = vmatpush.bf16.msra.mxu0 %v4175
    %5025 = vmatpush.bf16.msra.mxu0 %v4167
    %5026 = vmatpush.bf16.msra.mxu0 %v4159
    %5027 = vmatpush.bf16.msra.mxu0 %v4151
    %5028 = vmatmul.bf16.gmra.mxu0 %v3098
    %v5029 = vpop.f32.mrf.mxu0
    %v5030 = vadd.f32 %v3367, %v5029
    %v5031 = vpop.f32.mrf.mxu0
    %5032 = vdwg.mxu0
    %5033 = vmatpush.bf16.msra.mxu0 %v4271
    %5034 = vmatpush.bf16.msra.mxu0 %v4263
    %5035 = vmatpush.bf16.msra.mxu0 %v4255
    %5036 = vmatpush.bf16.msra.mxu0 %v4247
    %5037 = vmatpush.bf16.msra.mxu0 %v4239
    %5038 = vmatpush.bf16.msra.mxu0 %v4231
    %5039 = vmatpush.bf16.msra.mxu0 %v4223
    %5040 = vmatpush.bf16.msra.mxu0 %v4215
    %5041 = vmatmul.bf16.gmra.mxu0 %v3099
    %v5042 = vpop.f32.mrf.mxu0
    %v5043 = vadd.f32 %v5030, %v5042
    %v5044 = vpop.f32.mrf.mxu0
    %5045 = vdwg.mxu0
    %5046 = vmatpush.bf16.msra.mxu0 %v4335
    %5047 = vmatpush.bf16.msra.mxu0 %v4327
    %5048 = vmatpush.bf16.msra.mxu0 %v4319
    %5049 = vmatpush.bf16.msra.mxu0 %v4311
    %5050 = vmatpush.bf16.msra.mxu0 %v4303
    %5051 = vmatpush.bf16.msra.mxu0 %v4295
    %5052 = vmatpush.bf16.msra.mxu0 %v4287
    %5053 = vmatpush.bf16.msra.mxu0 %v4279
    %5054 = vmatmul.bf16.gmra.mxu0 %v3100
    %v5055 = vpop.f32.mrf.mxu0
    %v5056 = vadd.f32 %v5043, %v5055
    %v5057 = vpop.f32.mrf.mxu0
    %5058 = vdwg.mxu0
    %5059 = vmatpush.bf16.msra.mxu0 %v4399
    %5060 = vmatpush.bf16.msra.mxu0 %v4391
    %5061 = vmatpush.bf16.msra.mxu0 %v4383
    %5062 = vmatpush.bf16.msra.mxu0 %v4375
    %5063 = vmatpush.bf16.msra.mxu0 %v4367
    %5064 = vmatpush.bf16.msra.mxu0 %v4359
    %5065 = vmatpush.bf16.msra.mxu0 %v4351
    %5066 = vmatpush.bf16.msra.mxu0 %v4343
    %5067 = vmatmul.bf16.gmra.mxu0 %v3101
    %v5068 = vpop.f32.mrf.mxu0
    %v5069 = vadd.f32 %v5056, %v5068
    %v5070 = vpop.f32.mrf.mxu0
    %5071 = vdwg.mxu0
    %v5080 = vrot.slane %v4757, 6
    %v5081 = vrot.slane %v4809, 4
    %v5082 = vrot.slane %v4861, 2
    %v5083 = vrot.slane %v4965, 6
    %v5084 = vrot.slane %v5017, 4
    %v5085 = vrot.slane %v5069, 2
    %vm5086 = vcmask 1041408
    %v5087 = vsel %vm5086, %v4705, %v5080
    %vm5088 = vcmask 1045508
    %v5089 = vsel %vm5088, %v5081, %v5082
    %vm5090 = vcmask 1043456
    %v5091 = vsel %vm5090, %v5087, %v5089
    %v5092 = vsel %vm5086, %v4913, %v5083
    %v5093 = vsel %vm5088, %v5084, %v5085
    %v5094 = vsel %vm5090, %v5092, %v5093
    %5097 = vst [vmem:[%s9] sm:$0xff] %v5091
    %5098 = vst [vmem:[%s9 + $0x8] sm:$0xff] %v5094
    %5099 = vst [vmem:[#allocation1] ss:$4 sm:$0xff] %v97
    %s5100 = scalar_lea.vmem [#allocation1], 32
    %5101 = vst [vmem:[%s5100] ss:$4 sm:$0xff] %v98
    %v5102 = vld.sshfl [vmem:[#allocation1] sm:$0xff pattern:$0x73625140]
    %v5103 = vld.sshfl [vmem:[#allocation1 + $0x8] sm:$0xff pattern:$0x73625140]
    %v5104 = vld.sshfl [vmem:[#allocation1 + $0x10] sm:$0xff pattern:$0x73625140]
    %v5105 = vld.sshfl [vmem:[#allocation1 + $0x18] sm:$0xff pattern:$0x73625140]
    %v5106 = vld.sshfl [vmem:[#allocation1 + $0x20] sm:$0xff pattern:$0x73625140]
    %v5107 = vld.sshfl [vmem:[#allocation1 + $0x28] sm:$0xff pattern:$0x73625140]
    %v5108 = vld.sshfl [vmem:[#allocation1 + $0x30] sm:$0xff pattern:$0x73625140]
    %v5109 = vld.sshfl [vmem:[#allocation1 + $0x38] sm:$0xff pattern:$0x73625140]
    %v5118 = vsub.f32 %v4705, %v5102
    %v5119 = vsub.f32 %v4757, %v5103
    %v5120 = vsub.f32 %v4809, %v5104
    %v5121 = vsub.f32 %v4861, %v5105
    %v5122 = vsub.f32 %v4913, %v5106
    %v5123 = vsub.f32 %v4965, %v5107
    %v5124 = vsub.f32 %v5017, %v5108
    %v5125 = vsub.f32 %v5069, %v5109
    %v5126 = vmul.f32 %v5118, %v5118
    %v5127 = vmul.f32 %v5119, %v5119
    %v5128 = vmul.f32 %v5120, %v5120
    %v5129 = vmul.f32 %v5121, %v5121
    %v5130 = vmul.f32 %v5122, %v5122
    %v5131 = vmul.f32 %v5123, %v5123
    %v5132 = vmul.f32 %v5124, %v5124
    %v5133 = vmul.f32 %v5125, %v5125
    %v5134 = vsel %vm5086, %v5126, 0.0
    %v5135 = vsel %vm5086, %v5127, 0.0
    %v5136 = vadd.f32 %v5134, %v5135
    %v5137 = vsel %vm5086, %v5128, 0.0
    %v5138 = vadd.f32 %v5136, %v5137
    %v5139 = vsel %vm5086, %v5129, 0.0
    %v5140 = vadd.f32 %v5138, %v5139
    %v5141 = vsel %vm5086, %v5130, 0.0
    %v5142 = vadd.f32 %v5140, %v5141
    %v5143 = vsel %vm5086, %v5131, 0.0
    %v5144 = vadd.f32 %v5142, %v5143
    %v5145 = vsel %vm5086, %v5132, 0.0
    %v5146 = vadd.f32 %v5144, %v5145
    %v5147 = vsel %vm5086, %v5133, 0.0
    %v5148 = vadd.f32 %v5146, %v5147
    %5149 = vadd.xlane.f32.xlu0 %v5148
    %v5150 = vpop.xlane.xlu0 %5149
    %v5151 = vrcp.pop 1024.0
    %v5152 = vmul.f32 1024.0, %v5151
    %v5153 = vsub.f32 1.0, %v5152
    %v5154 = vmul.f32 %v5151, %v5153
    %v5155 = vadd.f32 %v5151, %v5154
    %vm5156 = vweird.f32 %v5151
    %v5157 = vsel %vm5156, %v5151, %v5155
    %v5158 = vmul.f32 %v5150, %v5157
    %vm5159 = vcmask 1024
    %5160 = vst.msk [vmem:[%s10] sm:$0x3] %vm5159, %v5158
    // Predicated region
    $region54: #{_ae_apply.1} parent=1 // pred_check
      _
    $region55: #{_ae_apply.1} parent=1 // pred_check_branch
      %5162 = sbr.rel (0) target = $region57
    $region56: #{_ae_apply.1} parent=1 // pred_region
      _
    $region57: #{_ae_apply.1} parent=1 // pred_fallthru
      _
    // Predicated region
    $region58: #{_ae_apply.1} parent=1 // pred_check
      _
    $region59: #{_ae_apply.1} parent=1 // pred_check_branch
      %5164 = sbr.rel (0) target = $region61
    $region60: #{_ae_apply.1} parent=1 // pred_region
      _
    $region61: #{_ae_apply.1} parent=1 // pred_fallthru
      _
    // Predicated region
    $region62: #{_ae_apply.1} parent=1 // pred_check
      _
    $region63: #{_ae_apply.1} parent=1 // pred_check_branch
      %5166 = sbr.rel (0) target = $region65
    $region64: #{_ae_apply.1} parent=1 // pred_region
      _
    $region65: #{_ae_apply.1} parent=1 // pred_fallthru
      _
    // Predicated region
    $region66: #{_ae_apply.1} parent=1 // pred_check
      _
    $region67: #{_ae_apply.1} parent=1 // pred_check_branch
      %5168 = sbr.rel (0) target = $region69
    $region68: #{_ae_apply.1} parent=1 // pred_region
      _
    $region69: #{_ae_apply.1} parent=1 // pred_fallthru
      _
    %5169 = vsyncpa [#allocation3], 1
    %5170 = vsyncpa [#allocation5], 1
    %5171 = vsyncpa [#allocation8], 1

</llo_original>
